<compile_context>
chip_gen: v6e
topology: v6e:2x2x1
jax: 0.10.0
libtpu: 0.0.40
codegen_flags: <defaults>
</compile_context>

<pallas_src>
import functools

import jax
import jax.numpy as jnp
from jax import lax
from jax.experimental import pallas as pl
from jax.experimental.pallas import tpu as pltpu


# ----------------------------------------------------------------------------
# Fused Pallas kernel: linear1+ReLU, fused (lane-padded) heads, reparam, KL
# ----------------------------------------------------------------------------
def _vae_encoder_kernel(x_ref, w1_ref, b1_ref, w23_ref, b23_ref, eps_ref,
                        out_ref, kl_ref, *, head_pad, batch, block_b,
                        mask_rows):
    """
    x_ref    : (TB, 1600)    flattened input tile               (VMEM, f32)
    w1_ref   : (1600, 512)   linear1 weight, (in,out) layout    (VMEM, bf16, resident)
    b1_ref   : (1, 512)      linear1 bias                       (VMEM, f32, resident)
    w23_ref  : (512, 2*HP)   [mu | log_sigma] head weight       (VMEM, bf16, resident)
    b23_ref  : (1, 2*HP)     fused head bias                    (VMEM, f32, resident)
    eps_ref  : (TB, HP)      standard-normal noise (zero-padded columns)
    out_ref  : (TB, 3*HP)    output slab [z | mu | sigma]       (VMEM, f32)
    kl_ref   : (1, 1)        per-block partial KL               (SMEM, f32)
    """
    HP = head_pad

    # linear1 + ReLU: bf16 x bf16 on the MXU, f32 accumulation; f32 tail.
    h = jnp.dot(x_ref[...].astype(jnp.bfloat16), w1_ref[...],
                preferred_element_type=jnp.float32)
    h = jnp.maximum(h + b1_ref[...], 0.0)

    # Fused mu / log_sigma heads: one (TB,512) @ (512,2*HP) matmul.
    heads = jnp.dot(h.astype(jnp.bfloat16), w23_ref[...],
                    preferred_element_type=jnp.float32)
    heads = heads + b23_ref[...]

    mu = heads[:, :HP]           # lanes [0, HP)      -- 128-lane aligned
    log_sigma = heads[:, HP:]    # lanes [HP, 2*HP)   -- 128-lane aligned
    sigma = jnp.exp(log_sigma)   # EUP
    z = mu + sigma * eps_ref[...]

    # One lane-dense output slab, all stores 128-lane aligned and unmasked.
    out_ref[:, 0 * HP:1 * HP] = z
    out_ref[:, 1 * HP:2 * HP] = mu
    out_ref[:, 2 * HP:3 * HP] = sigma

    # KL = 0.5 * sum(sigma^2 + mu^2 - 2*log(sigma) - 1); log(sigma)==log_sigma.
    # Zero-padded head columns contribute exactly 0 (1 + 0 - 0 - 1).
    kl_terms = sigma * sigma + mu * mu - 2.0 * log_sigma - 1.0
    if mask_rows:  # only emitted when B % TB != 0 (padded rows in last block)
        row = lax.broadcasted_iota(jnp.int32, kl_terms.shape, 0)
        valid = (pl.program_id(0) * block_b + row) < batch
        kl_terms = jnp.where(valid, kl_terms, 0.0)
    kl_ref[0, 0] = 0.5 * jnp.sum(kl_terms)


# ----------------------------------------------------------------------------
# One-time parameter preparation (hoisted out of the forward path)
# ----------------------------------------------------------------------------
def prepare_params(tp, *, weight_dtype=jnp.bfloat16):
    """tp holds PyTorch-layout tensors: w* are (out, in), b* are (out,)."""
    L = tp["w2"].shape[0]
    H = tp["w2"].shape[1]                      # 512
    HP = max(128, ((L + 127) // 128) * 128)    # per-head lane-padded width

    w2t = jnp.transpose(tp["w2"])              # (512, L)
    w3t = jnp.transpose(tp["w3"])              # (512, L)
    w23 = jnp.zeros((H, 2 * HP), jnp.float32)
    w23 = w23.at[:, :L].set(w2t).at[:, HP:HP + L].set(w3t)
    b23 = jnp.zeros((1, 2 * HP), jnp.float32)
    b23 = b23.at[0, :L].set(tp["b2"]).at[0, HP:HP + L].set(tp["b3"])

    return dict(
        w1=jnp.transpose(tp["w1"]).astype(weight_dtype),     # (1600, 512) bf16
        b1=tp["b1"].reshape(1, -1).astype(jnp.float32),      # (1, 512)    f32
        w23=w23.astype(weight_dtype),                        # (512, 2*HP) bf16
        b23=b23,                                             # (1, 2*HP)   f32
        latent_dims=L,
        head_pad=HP,
    )


def init_torch_style_params(key, latent_dims, in_features=1600, hidden=512):
    """Mimics PyTorch nn.Linear default init (uniform +-1/sqrt(fan_in))."""
    ks = jax.random.split(key, 6)

    def linear(kw, kb, fan_in, fan_out):
        bound = 1.0 / float(fan_in) ** 0.5
        w = jax.random.uniform(kw, (fan_out, fan_in), jnp.float32, -bound, bound)
        b = jax.random.uniform(kb, (fan_out,), jnp.float32, -bound, bound)
        return w, b

    w1, b1 = linear(ks[0], ks[1], in_features, hidden)
    w2, b2 = linear(ks[2], ks[3], hidden, latent_dims)
    w3, b3 = linear(ks[4], ks[5], hidden, latent_dims)
    return dict(w1=w1, b1=b1, w2=w2, b2=b2, w3=w3, b3=b3)


# ----------------------------------------------------------------------------
# Forward wrapper: flatten + batch-gridded pallas_call with resident weights
# ----------------------------------------------------------------------------
def variational_encoder_forward(x, params, eps, *, block_b=256):
    """x: (B, ...) with prod(...) == 1600; eps: (B, L) ~ N(0,1).
    Returns (z, mu, sigma, kl)."""
    B = x.shape[0]
    L = params["latent_dims"]
    HP = params["head_pad"]
    xf = x.reshape(B, -1).astype(jnp.float32)      # torch.flatten(x, start_dim=1)
    K = xf.shape[1]                                # 1600
    H = params["w1"].shape[1]                      # 512

    tb = B if B <= block_b else block_b            # (use block_b=128 on v5e)
    grid_b = pl.cdiv(B, tb)
    mask_rows = (B % tb) != 0

    # Pad the noise to the lane-padded head width (padded lanes are unused).
    eps_p = jnp.pad(eps.astype(jnp.float32), ((0, 0), (0, HP - L)))

    kernel = functools.partial(_vae_encoder_kernel, head_pad=HP, batch=B,
                               block_b=tb, mask_rows=mask_rows)

    slab, kl_parts = pl.pallas_call(
        kernel,
        out_shape=(
            jax.ShapeDtypeStruct((B, 3 * HP), jnp.float32),   # [z | mu | sigma]
            jax.ShapeDtypeStruct((grid_b, 1), jnp.float32),   # per-block KL
        ),
        grid_spec=pltpu.PrefetchScalarGridSpec(
            num_scalar_prefetch=0,
            grid=(grid_b,),
            in_specs=[
                pl.BlockSpec((tb, K), lambda i: (i, 0)),        # x tile
                pl.BlockSpec((K, H), lambda i: (0, 0)),         # w1 (resident)
                pl.BlockSpec((1, H), lambda i: (0, 0)),         # b1 (resident)
                pl.BlockSpec((H, 2 * HP), lambda i: (0, 0)),    # w23 (resident)
                pl.BlockSpec((1, 2 * HP), lambda i: (0, 0)),    # b23 (resident)
                pl.BlockSpec((tb, HP), lambda i: (i, 0)),       # eps tile
            ],
            out_specs=(
                pl.BlockSpec((tb, 3 * HP), lambda i: (i, 0)),   # output slab
                pl.BlockSpec((1, 1), lambda i: (i, 0),
                             memory_space=pltpu.MemorySpace.SMEM),
            ),
        ),
        compiler_params=pltpu.CompilerParams(
            dimension_semantics=("parallel",)),
    )(xf, params["w1"], params["b1"], params["w23"], params["b23"], eps_p)

    z = slab[:, 0 * HP:0 * HP + L]
    mu = slab[:, 1 * HP:1 * HP + L]
    sigma = slab[:, 2 * HP:2 * HP + L]
    kl = jnp.sum(kl_parts)
    return z, mu, sigma, kl


# ----------------------------------------------------------------------------
# References for verification
# ----------------------------------------------------------------------------
def _ref_forward_f32(x, tp, eps):
    """Pure-f32 mirror of the PyTorch module."""
    B = x.shape[0]
    xf = x.reshape(B, -1)
    h = jnp.maximum(xf @ tp["w1"].T + tp["b1"], 0.0)
    mu = h @ tp["w2"].T + tp["b2"]
    sigma = jnp.exp(h @ tp["w3"].T + tp["b3"])
    z = mu + sigma * eps
    kl = 0.5 * jnp.sum(sigma ** 2 + mu ** 2 - 2.0 * jnp.log(sigma) - 1.0)
    return z, mu, sigma, kl


def _ref_forward_quantized(x, params, eps):
    """Mirror of the kernel's numerics (bf16 matmul operands, f32 acc/tail)."""
    B = x.shape[0]
    L = params["latent_dims"]
    HP = params["head_pad"]
    xf = x.reshape(B, -1).astype(jnp.float32)
    h = jnp.dot(xf.astype(jnp.bfloat16), params["w1"],
                preferred_element_type=jnp.float32)
    h = jnp.maximum(h + params["b1"], 0.0)
    heads = jnp.dot(h.astype(jnp.bfloat16), params["w23"],
                    preferred_element_type=jnp.float32) + params["b23"]
    mu = heads[:, :L]
    log_sigma = heads[:, HP:HP + L]
    sigma = jnp.exp(log_sigma)
    z = mu + sigma * eps
    kl = 0.5 * jnp.sum(sigma ** 2 + mu ** 2 - 2.0 * log_sigma - 1.0)
    return z, mu, sigma, kl


# ----------------------------------------------------------------------------
if __name__ == "__main__":
    key = jax.random.PRNGKey(0)
    kx, kp, ke = jax.random.split(key, 3)

    B, latent_dims = 2, 32
    x = jax.random.normal(kx, (B, 4, 20, 20), jnp.float32)   # flattens to 1600
    torch_params = init_torch_style_params(kp, latent_dims)
    params = prepare_params(torch_params)                     # one-time re-layout
    eps = jax.random.normal(ke, (B, latent_dims), jnp.float32)

    z, mu, sigma, kl = variational_encoder_forward(x, params, eps)
    z = jax.block_until_ready(z)
    assert z.shape == (B, latent_dims), z.shape
    assert mu.shape == (B, latent_dims) and sigma.shape == (B, latent_dims)

    # Tight check against a reference that mirrors the kernel's numerics
    # (same bf16 weights, f32 accumulation).
    zq, muq, sigq, klq = _ref_forward_quantized(x, params, eps)
    assert jnp.allclose(z, zq, atol=1e-3, rtol=1e-3), float(jnp.max(jnp.abs(z - zq)))
    assert jnp.allclose(mu, muq, atol=1e-3, rtol=1e-3), float(jnp.max(jnp.abs(mu - muq)))
    assert jnp.allclose(sigma, sigq, atol=1e-3, rtol=1e-3), float(jnp.max(jnp.abs(sigma - sigq)))
    assert jnp.allclose(kl, klq, atol=1e-3, rtol=1e-3), float(jnp.abs(kl - klq))

    # Loose sanity check against the full-f32 PyTorch-semantics reference
    # (difference is purely the bf16 weight/activation quantization).
    zf, muf, sigf, klf = _ref_forward_f32(x, torch_params, eps)
    assert jnp.allclose(z, zf, atol=5e-2, rtol=5e-2), float(jnp.max(jnp.abs(z - zf)))
    assert jnp.allclose(mu, muf, atol=5e-2, rtol=5e-2), float(jnp.max(jnp.abs(mu - muf)))
    assert jnp.allclose(sigma, sigf, atol=5e-2, rtol=5e-2), float(jnp.max(jnp.abs(sigma - sigf)))
    assert jnp.allclose(kl, klf, atol=5e-2, rtol=5e-2), float(jnp.abs(kl - klf))

    print("KERNEL_OK")
</pallas_src>

<mosaic_0001>
module attributes {stable_mosaic.version = 11 : i64} {
  func.func @_vae_encoder_kernel(%arg0: i32, %arg1: memref<2x1600xf32, #tpu.memory_space<vmem>>, %arg2: memref<1600x512xbf16, #tpu.memory_space<vmem>>, %arg3: memref<1x512xf32, #tpu.memory_space<vmem>>, %arg4: memref<512x256xbf16, #tpu.memory_space<vmem>>, %arg5: memref<1x256xf32, #tpu.memory_space<vmem>>, %arg6: memref<2x128xf32, #tpu.memory_space<vmem>>, %arg7: memref<2x384xf32, #tpu.memory_space<vmem>>, %arg8: memref<1x1xf32, #tpu.memory_space<smem>>) attributes {dimension_semantics = [#tpu.dimension_semantics<parallel>], iteration_bounds = array<i64: 1>, scalar_prefetch = 0 : i64, scratch_operands = 0 : i64, tpu.core_type = #tpu.core_type<tc>, window_params = [{transform_indices = @transform_0, window_bounds = array<i64: 2, 1600>}, {pipeline_mode = #tpu.pipeline_mode<synchronous>, transform_indices = @transform_1, window_bounds = array<i64: 1600, 512>}, {pipeline_mode = #tpu.pipeline_mode<synchronous>, transform_indices = @transform_2, window_bounds = array<i64: 1, 512>}, {pipeline_mode = #tpu.pipeline_mode<synchronous>, transform_indices = @transform_3, window_bounds = array<i64: 512, 256>}, {pipeline_mode = #tpu.pipeline_mode<synchronous>, transform_indices = @transform_4, window_bounds = array<i64: 1, 256>}, {transform_indices = @transform_5, window_bounds = array<i64: 2, 128>}, {transform_indices = @transform_6, window_bounds = array<i64: 2, 384>}, {transform_indices = @transform_7, window_bounds = array<i64: 1, 1>}]} {
    %c0 = arith.constant 0 : index
    %c0_0 = arith.constant 0 : index
    %0 = vector.load %arg1[%c0, %c0_0] : memref<2x1600xf32, #tpu.memory_space<vmem>>, vector<2x1600xf32>
    %1 = arith.truncf %0 : vector<2x1600xf32> to vector<2x1600xbf16>
    %c0_1 = arith.constant 0 : index
    %c0_2 = arith.constant 0 : index
    %2 = vector.load %arg2[%c0_1, %c0_2] : memref<1600x512xbf16, #tpu.memory_space<vmem>>, vector<1600x512xbf16>
    %cst = arith.constant dense<0.000000e+00> : vector<2x512xf32>
    %3 = tpu.matmul %1, %2, %cst {dimension_numbers = #tpu.dot_dimension_numbers<[1], [0], [0], [1], [0, 0, 1, 1], [], []>} : vector<2x1600xbf16>, vector<1600x512xbf16>, vector<2x512xf32> -> vector<2x512xf32>
    %c0_3 = arith.constant 0 : index
    %c0_4 = arith.constant 0 : index
    %4 = vector.load %arg3[%c0_3, %c0_4] : memref<1x512xf32, #tpu.memory_space<vmem>>, vector<1x512xf32>
    %5 = vector.broadcast %4 : vector<1x512xf32> to vector<2x512xf32>
    %6 = arith.addf %3, %5 : vector<2x512xf32>
    %cst_5 = arith.constant 0.000000e+00 : f32
    %7 = vector.broadcast %cst_5 : f32 to vector<2x512xf32>
    %8 = arith.maximumf %6, %7 : vector<2x512xf32>
    %9 = arith.truncf %8 : vector<2x512xf32> to vector<2x512xbf16>
    %c0_6 = arith.constant 0 : index
    %c0_7 = arith.constant 0 : index
    %10 = vector.load %arg4[%c0_6, %c0_7] : memref<512x256xbf16, #tpu.memory_space<vmem>>, vector<512x256xbf16>
    %cst_8 = arith.constant dense<0.000000e+00> : vector<2x256xf32>
    %11 = tpu.matmul %9, %10, %cst_8 {dimension_numbers = #tpu.dot_dimension_numbers<[1], [0], [0], [1], [0, 0, 1, 1], [], []>} : vector<2x512xbf16>, vector<512x256xbf16>, vector<2x256xf32> -> vector<2x256xf32>
    %c0_9 = arith.constant 0 : index
    %c0_10 = arith.constant 0 : index
    %12 = vector.load %arg5[%c0_9, %c0_10] : memref<1x256xf32, #tpu.memory_space<vmem>>, vector<1x256xf32>
    %13 = vector.broadcast %12 : vector<1x256xf32> to vector<2x256xf32>
    %14 = arith.addf %11, %13 : vector<2x256xf32>
    %15 = vector.extract_strided_slice %14 {offsets = [0, 0], sizes = [2, 128], strides = [1, 1]} : vector<2x256xf32> to vector<2x128xf32>
    %16 = vector.extract_strided_slice %14 {offsets = [0, 128], sizes = [2, 128], strides = [1, 1]} : vector<2x256xf32> to vector<2x128xf32>
    %17 = math.exp %16 : vector<2x128xf32>
    %c0_11 = arith.constant 0 : index
    %c0_12 = arith.constant 0 : index
    %18 = vector.load %arg6[%c0_11, %c0_12] : memref<2x128xf32, #tpu.memory_space<vmem>>, vector<2x128xf32>
    %19 = arith.mulf %17, %18 : vector<2x128xf32>
    %20 = arith.addf %15, %19 : vector<2x128xf32>
    %c0_13 = arith.constant 0 : index
    %c0_14 = arith.constant 0 : index
    %21 = vector.load %arg7[%c0_13, %c0_14] : memref<2x384xf32, #tpu.memory_space<vmem>>, vector<2x128xf32>
    tpu.vector_store %arg7[%c0_13, %c0_14], %20 {strides = array<i32>} : memref<2x384xf32, #tpu.memory_space<vmem>>, vector<2x128xf32>,
    %c0_15 = arith.constant 0 : index
    %c128 = arith.constant 128 : index
    %22 = vector.load %arg7[%c0_15, %c128] : memref<2x384xf32, #tpu.memory_space<vmem>>, vector<2x128xf32>
    tpu.vector_store %arg7[%c0_15, %c128], %15 {strides = array<i32>} : memref<2x384xf32, #tpu.memory_space<vmem>>, vector<2x128xf32>,
    %c0_16 = arith.constant 0 : index
    %c256 = arith.constant 256 : index
    %23 = vector.load %arg7[%c0_16, %c256] : memref<2x384xf32, #tpu.memory_space<vmem>>, vector<2x128xf32>
    tpu.vector_store %arg7[%c0_16, %c256], %17 {strides = array<i32>} : memref<2x384xf32, #tpu.memory_space<vmem>>, vector<2x128xf32>,
    %24 = arith.mulf %17, %17 : vector<2x128xf32>
    %25 = arith.mulf %15, %15 : vector<2x128xf32>
    %26 = arith.addf %24, %25 : vector<2x128xf32>
    %cst_17 = arith.constant 2.000000e+00 : f32
    %27 = vector.broadcast %cst_17 : f32 to vector<2x128xf32>
    %28 = arith.mulf %27, %16 : vector<2x128xf32>
    %29 = arith.subf %26, %28 : vector<2x128xf32>
    %cst_18 = arith.constant 1.000000e+00 : f32
    %30 = vector.broadcast %cst_18 : f32 to vector<2x128xf32>
    %31 = arith.subf %29, %30 : vector<2x128xf32>
    %32 = vector.shape_cast %31 : vector<2x128xf32> to vector<1x2x128xf32>
    %cst_19 = arith.constant dense<0.000000e+00> : vector<1xf32>
    %33 = vector.multi_reduction <add>, %32, %cst_19 [1, 2] : vector<1x2x128xf32> to vector<1xf32>
    %34 = vector.shape_cast %33 : vector<1xf32> to vector<1x1x1xf32>
    %35 = vector.extract %34[0, 0, 0] : f32 from vector<1x1x1xf32>
    %cst_20 = arith.constant 5.000000e-01 : f32
    %36 = arith.mulf %cst_20, %35 : f32
    %c0_21 = arith.constant 0 : index
    %c0_22 = arith.constant 0 : index
    %37 = memref.load %arg8[%c0_21, %c0_22] : memref<1x1xf32, #tpu.memory_space<smem>>
    memref.store %36, %arg8[%c0_21, %c0_22] : memref<1x1xf32, #tpu.memory_space<smem>>
    return
  }
  func.func @transform_0(%arg0: i32) -> (i32, i32) {
    %c0_i32 = arith.constant 0 : i32
    %c0_i32_0 = arith.constant 0 : i32
    return %arg0, %c0_i32 : i32, i32
  }
  func.func @transform_1(%arg0: i32) -> (i32, i32) {
    %c0_i32 = arith.constant 0 : i32
    %c0_i32_0 = arith.constant 0 : i32
    %c0_i32_1 = arith.constant 0 : i32
    return %c0_i32, %c0_i32_0 : i32, i32
  }
  func.func @transform_2(%arg0: i32) -> (i32, i32) {
    %c0_i32 = arith.constant 0 : i32
    %c0_i32_0 = arith.constant 0 : i32
    %c0_i32_1 = arith.constant 0 : i32
    return %c0_i32, %c0_i32_0 : i32, i32
  }
  func.func @transform_3(%arg0: i32) -> (i32, i32) {
    %c0_i32 = arith.constant 0 : i32
    %c0_i32_0 = arith.constant 0 : i32
    %c0_i32_1 = arith.constant 0 : i32
    return %c0_i32, %c0_i32_0 : i32, i32
  }
  func.func @transform_4(%arg0: i32) -> (i32, i32) {
    %c0_i32 = arith.constant 0 : i32
    %c0_i32_0 = arith.constant 0 : i32
    %c0_i32_1 = arith.constant 0 : i32
    return %c0_i32, %c0_i32_0 : i32, i32
  }
  func.func @transform_5(%arg0: i32) -> (i32, i32) {
    %c0_i32 = arith.constant 0 : i32
    %c0_i32_0 = arith.constant 0 : i32
    return %arg0, %c0_i32 : i32, i32
  }
  func.func @transform_6(%arg0: i32) -> (i32, i32) {
    %c0_i32 = arith.constant 0 : i32
    %c0_i32_0 = arith.constant 0 : i32
    return %arg0, %c0_i32 : i32, i32
  }
  func.func @transform_7(%arg0: i32) -> (i32, i32) {
    %c0_i32 = arith.constant 0 : i32
    %c0_i32_0 = arith.constant 0 : i32
    return %arg0, %c0_i32 : i32, i32
  }
}

</mosaic_0001>

<llo_original>
// kernel: tpu_custom_call.1
$region0: #{tpu_custom_call.1}
  #allocation0 [shape = 'u32[]', space=smem, size = 0x4, offset = 0x4, fixed_abs, tag = 'smem constant byte address 0x4 - core index']
  #allocation1 [shape = 'u32[144,128]{1,0:T(1,128)}', space=vmem, size = 0x12000, scoped, tag = 'internal scratch']
  %s0 = inlined_call_operand.hbm [shape: f32[2,1600], index: 0, kind: input, shape index: {}]
  %s1 = inlined_call_operand.hbm [shape: bf16[1600,512], index: 1, kind: input, shape index: {}]
  %s2 = inlined_call_operand.hbm [shape: f32[1,512], index: 2, kind: input, shape index: {}]
  %s3 = inlined_call_operand.hbm [shape: bf16[512,256], index: 3, kind: input, shape index: {}]
  %s4 = inlined_call_operand.hbm [shape: f32[1,256], index: 4, kind: input, shape index: {}]
  %s5 = inlined_call_operand.hbm [shape: f32[2,128], index: 5, kind: input, shape index: {}]
  %s6 = inlined_call_operand.hbm [shape: f32[2,384], index: 6, kind: output, shape index: {0}]
  %s7 = inlined_call_operand.hbm [shape: f32[1,1], index: 7, kind: output, shape index: {1}]
  %8 = xla_tuple %s6, %s7
  %s9 = sld [smem:[#allocation0]]
  $region66: #{tpu_custom_call.1} parent=0
    _
  %s11 = ssub.s32 1, %s9
  %s12 = scalar_select 0, %s11, %s9
  $region1: #{tpu_custom_call.1} parent=0
    #allocation2 [shape = 'u8[13312]{0}', space=vmem, size = 0x3400, scoped, tag = 'input window, operand 0, single buffered']
    #allocation3 [shape = 's32[1]{0}', space=sflag, size = 0x4, scoped, tag = 'scoped memory for tpu_custom_call.1']
    #allocation4 [shape = 's32[1]{0}', space=sflag, size = 0x4, scoped, tag = 'scoped memory for tpu_custom_call.1']
    #allocation5 [shape = 's32[1]{0}', space=sflag, size = 0x4, scoped, tag = 'scoped memory for tpu_custom_call.1']
    #allocation6 [shape = 'u8[1638400]{0}', space=vmem, size = 0x190000, scoped, tag = 'input window, operand 1, single buffered']
    #allocation7 [shape = 's32[1]{0}', space=sflag, size = 0x4, scoped, tag = 'scoped memory for tpu_custom_call.1']
    #allocation8 [shape = 'u8[2048]{0}', space=vmem, size = 0x800, scoped, tag = 'input window, operand 2, single buffered']
    #allocation9 [shape = 'u8[262144]{0}', space=vmem, size = 0x40000, scoped, tag = 'input window, operand 3, single buffered']
    #allocation10 [shape = 's32[1]{0}', space=sflag, size = 0x4, scoped, tag = 'scoped memory for tpu_custom_call.1']
    #allocation11 [shape = 'u8[1024]{0}', space=vmem, size = 0x400, scoped, tag = 'input window, operand 4, single buffered']
    #allocation12 [shape = 'u8[1024]{0}', space=vmem, size = 0x400, scoped, tag = 'input window, operand 5, single buffered']
    #allocation13 [shape = 's32[1]{0}', space=sflag, size = 0x4, scoped, tag = 'scoped memory for tpu_custom_call.1']
    #allocation14 [shape = 'u8[3072]{0}', space=vmem, size = 0xc00, scoped, tag = 'output window, operand 0, single buffered']
    #allocation15 [shape = 'u8[512]{0}', space=smem, size = 0x200, scoped, tag = 'output window, operand 1, single buffered']
    %13 = vsyncpa [#allocation3], 0
    %14 = vsyncpa [#allocation7], 0
    %15 = vsyncpa [#allocation10], 0
    %16 = vsyncpa [#allocation13], 0
    %17 = vsyncpa [#allocation4], 0
    %18 = vsyncpa [#allocation5], 0
    // Predicated region
    $region2: #{tpu_custom_call.1} parent=1 // pred_check
      _
    $region3: #{tpu_custom_call.1} parent=1 // pred_check_branch
      %20 = sbr.rel (0) target = $region5
    $region4: #{tpu_custom_call.1} parent=1 // pred_region
      %s22 = ssub.s32 416, 416
      %23 = vsyncadd [#allocation3], %s22
      %s25 = sshll.u32 [#allocation2], 4
      %s26 = int_to_ptr.vmem [resolvable:$true] %s25
      %28 = dma.hbm_to_vmem [thread:$0]  %s0, 416, %s26, [#allocation3]
    $region5: #{tpu_custom_call.1} parent=1 // pred_fallthru
      _
    // Predicated region
    $region6: #{tpu_custom_call.1} parent=1 // pred_check
      _
    $region7: #{tpu_custom_call.1} parent=1 // pred_check_branch
      %30 = sbr.rel (0) target = $region9
    $region8: #{tpu_custom_call.1} parent=1 // pred_region
      %s32 = ssub.s32 51200, 51200
      %33 = vsyncadd [#allocation7], %s32
      %s34 = sshll.u32 [#allocation6], 4
      %s35 = int_to_ptr.vmem [resolvable:$true] %s34
      %40 = dma.hbm_to_vmem [thread:$0]  %s1, 51200, %s35, [#allocation7], 256, 256, 16
    $region9: #{tpu_custom_call.1} parent=1 // pred_fallthru
      _
    // Predicated region
    $region10: #{tpu_custom_call.1} parent=1 // pred_check
      _
    $region11: #{tpu_custom_call.1} parent=1 // pred_check_branch
      %42 = sbr.rel (0) target = $region13
    $region12: #{tpu_custom_call.1} parent=1 // pred_region
      %s44 = ssub.s32 64, 64
      %45 = vsyncadd [#allocation7], %s44
      %s47 = sshll.u32 [#allocation8], 4
      %s48 = int_to_ptr.vmem [resolvable:$true] %s47
      %50 = dma.hbm_to_vmem [thread:$0]  %s2, 64, %s48, [#allocation7]
    $region13: #{tpu_custom_call.1} parent=1 // pred_fallthru
      _
    // Predicated region
    $region14: #{tpu_custom_call.1} parent=1 // pred_check
      _
    $region15: #{tpu_custom_call.1} parent=1 // pred_check_branch
      %52 = sbr.rel (0) target = $region17
    $region16: #{tpu_custom_call.1} parent=1 // pred_region
      %s54 = ssub.s32 8192, 8192
      %55 = vsyncadd [#allocation10], %s54
      %s56 = sshll.u32 [#allocation9], 4
      %s57 = int_to_ptr.vmem [resolvable:$true] %s56
      %62 = dma.hbm_to_vmem [thread:$0]  %s3, 8192, %s57, [#allocation10], 128, 128, 8
    $region17: #{tpu_custom_call.1} parent=1 // pred_fallthru
      _
    // Predicated region
    $region18: #{tpu_custom_call.1} parent=1 // pred_check
      _
    $region19: #{tpu_custom_call.1} parent=1 // pred_check_branch
      %64 = sbr.rel (0) target = $region21
    $region20: #{tpu_custom_call.1} parent=1 // pred_region
      %s66 = ssub.s32 32, 32
      %67 = vsyncadd [#allocation10], %s66
      %s69 = sshll.u32 [#allocation11], 4
      %s70 = int_to_ptr.vmem [resolvable:$true] %s69
      %72 = dma.hbm_to_vmem [thread:$0]  %s4, 32, %s70, [#allocation10]
    $region21: #{tpu_custom_call.1} parent=1 // pred_fallthru
      _
    // Predicated region
    $region22: #{tpu_custom_call.1} parent=1 // pred_check
      _
    $region23: #{tpu_custom_call.1} parent=1 // pred_check_branch
      %74 = sbr.rel (0) target = $region25
    $region24: #{tpu_custom_call.1} parent=1 // pred_region
      %s76 = ssub.s32 32, 32
      %77 = vsyncadd [#allocation13], %s76
      %s79 = sshll.u32 [#allocation12], 4
      %s80 = int_to_ptr.vmem [resolvable:$true] %s79
      %82 = dma.hbm_to_vmem [thread:$0]  %s5, 32, %s80, [#allocation13]
    $region25: #{tpu_custom_call.1} parent=1 // pred_fallthru
      _
    // Predicated region
    $region26: #{tpu_custom_call.1} parent=1 // pred_check
      _
    $region27: #{tpu_custom_call.1} parent=1 // pred_check_branch
      %84 = sbr.rel (0) target = $region29
    $region28: #{tpu_custom_call.1} parent=1 // pred_region
      %85 = dma.done [#allocation3], 416
    $region29: #{tpu_custom_call.1} parent=1 // pred_fallthru
      _
    // Predicated region
    $region30: #{tpu_custom_call.1} parent=1 // pred_check
      _
    $region31: #{tpu_custom_call.1} parent=1 // pred_check_branch
      %87 = sbr.rel (0) target = $region33
    $region32: #{tpu_custom_call.1} parent=1 // pred_region
      %88 = dma.done [#allocation7], 51200
    $region33: #{tpu_custom_call.1} parent=1 // pred_fallthru
      _
    // Predicated region
    $region34: #{tpu_custom_call.1} parent=1 // pred_check
      _
    $region35: #{tpu_custom_call.1} parent=1 // pred_check_branch
      %90 = sbr.rel (0) target = $region37
    $region36: #{tpu_custom_call.1} parent=1 // pred_region
      %91 = dma.done [#allocation7], 64
    $region37: #{tpu_custom_call.1} parent=1 // pred_fallthru
      _
    // Predicated region
    $region38: #{tpu_custom_call.1} parent=1 // pred_check
      _
    $region39: #{tpu_custom_call.1} parent=1 // pred_check_branch
      %93 = sbr.rel (0) target = $region41
    $region40: #{tpu_custom_call.1} parent=1 // pred_region
      %94 = dma.done [#allocation10], 8192
    $region41: #{tpu_custom_call.1} parent=1 // pred_fallthru
      _
    // Predicated region
    $region42: #{tpu_custom_call.1} parent=1 // pred_check
      _
    $region43: #{tpu_custom_call.1} parent=1 // pred_check_branch
      %96 = sbr.rel (0) target = $region45
    $region44: #{tpu_custom_call.1} parent=1 // pred_region
      %97 = dma.done [#allocation10], 32
    $region45: #{tpu_custom_call.1} parent=1 // pred_fallthru
      _
    // Predicated region
    $region46: #{tpu_custom_call.1} parent=1 // pred_check
      _
    $region47: #{tpu_custom_call.1} parent=1 // pred_check_branch
      %99 = sbr.rel (0) target = $region49
    $region48: #{tpu_custom_call.1} parent=1 // pred_region
      %100 = dma.done [#allocation13], 32
    $region49: #{tpu_custom_call.1} parent=1 // pred_fallthru
      _
    %v102 = vld [vmem:[#allocation2] sm:$0xff]
    %v103 = vld [vmem:[#allocation2 + $0x8] sm:$0xff]
    %v104 = vld [vmem:[#allocation2 + $0x10] sm:$0xff]
    %v105 = vld [vmem:[#allocation2 + $0x18] sm:$0x3]
    %v110 = vcombine.high %v102, %v102
    %v112 = vunpack.c.l.s4 1983009808
    %v113 = vunpack.c.0.s8 %v112
    %v114 = vlaneseq
    %v115 = vshrl.u32 %v114, 7
    %v116 = vsub.s32 %v113, %v115
    %v117 = vrot.slane %v102, %v116
    %v119 = vunpack.c.l.s4 1983009808
    %v120 = vunpack.c.0.s8 %v119
    %v121 = vlaneseq
    %v122 = vshrl.u32 %v121, 7
    %v123 = vsub.s32 %v120, %v122
    %v124 = vrot.slane %v110, %v123
    %v125 = vcombine.high %v117, %v117
    %v126 = vcombine.high %v124, %v124
    %v127 = vcombine.high %v103, %v103
    %v129 = vunpack.c.l.s4 1983009808
    %v130 = vunpack.c.0.s8 %v129
    %v131 = vlaneseq
    %v132 = vshrl.u32 %v131, 7
    %v133 = vsub.s32 %v130, %v132
    %v134 = vrot.slane %v103, %v133
    %v136 = vunpack.c.l.s4 1983009808
    %v137 = vunpack.c.0.s8 %v136
    %v138 = vlaneseq
    %v139 = vshrl.u32 %v138, 7
    %v140 = vsub.s32 %v137, %v139
    %v141 = vrot.slane %v127, %v140
    %v142 = vcombine.high %v134, %v134
    %v143 = vcombine.high %v141, %v141
    %v144 = vcombine.high %v104, %v104
    %v146 = vunpack.c.l.s4 1983009808
    %v147 = vunpack.c.0.s8 %v146
    %v148 = vlaneseq
    %v149 = vshrl.u32 %v148, 7
    %v150 = vsub.s32 %v147, %v149
    %v151 = vrot.slane %v104, %v150
    %v153 = vunpack.c.l.s4 1983009808
    %v154 = vunpack.c.0.s8 %v153
    %v155 = vlaneseq
    %v156 = vshrl.u32 %v155, 7
    %v157 = vsub.s32 %v154, %v156
    %v158 = vrot.slane %v144, %v157
    %v159 = vcombine.high %v151, %v151
    %v160 = vcombine.high %v158, %v158
    %v162 = vunpack.c.l.s4 1983009808
    %v163 = vunpack.c.0.s8 %v162
    %v164 = vlaneseq
    %v165 = vshrl.u32 %v164, 7
    %v166 = vsub.s32 %v163, %v165
    %v167 = vrot.slane %v105, %v166
    %v181 = vpack.c.bf16 %v117, %v117
    %v182 = vpack.c.bf16 %v125, %v125
    %v183 = vpack.c.bf16 %v124, %v124
    %v184 = vpack.c.bf16 %v126, %v126
    %v185 = vpack.c.bf16 %v134, %v134
    %v186 = vpack.c.bf16 %v142, %v142
    %v187 = vpack.c.bf16 %v141, %v141
    %v188 = vpack.c.bf16 %v143, %v143
    %v189 = vpack.c.bf16 %v151, %v151
    %v190 = vpack.c.bf16 %v159, %v159
    %v191 = vpack.c.bf16 %v158, %v158
    %v192 = vpack.c.bf16 %v160, %v160
    %v193 = vpack.c.bf16 %v167, %v167
    %v194 = vld [vmem:[#allocation6] sm:$0xff]
    %v195 = vld [vmem:[#allocation6 + $0x8] sm:$0xff]
    %v196 = vld [vmem:[#allocation6 + $0x10] sm:$0xff]
    %v197 = vld [vmem:[#allocation6 + $0x18] sm:$0xff]
    %v198 = vld [vmem:[#allocation6 + $0x20] sm:$0xff]
    %v199 = vld [vmem:[#allocation6 + $0x28] sm:$0xff]
    %v200 = vld [vmem:[#allocation6 + $0x30] sm:$0xff]
    %v201 = vld [vmem:[#allocation6 + $0x38] sm:$0xff]
    %v202 = vld [vmem:[#allocation6 + $0x40] sm:$0xff]
    %v203 = vld [vmem:[#allocation6 + $0x48] sm:$0xff]
    %v204 = vld [vmem:[#allocation6 + $0x50] sm:$0xff]
    %v205 = vld [vmem:[#allocation6 + $0x58] sm:$0xff]
    %v206 = vld [vmem:[#allocation6 + $0x60] sm:$0xff]
    %v207 = vld [vmem:[#allocation6 + $0x68] sm:$0xff]
    %v208 = vld [vmem:[#allocation6 + $0x70] sm:$0xff]
    %v209 = vld [vmem:[#allocation6 + $0x78] sm:$0xff]
    %v210 = vld [vmem:[#allocation6 + $0x80] sm:$0xff]
    %v211 = vld [vmem:[#allocation6 + $0x88] sm:$0xff]
    %v212 = vld [vmem:[#allocation6 + $0x90] sm:$0xff]
    %v213 = vld [vmem:[#allocation6 + $0x98] sm:$0xff]
    %v214 = vld [vmem:[#allocation6 + $0xa0] sm:$0xff]
    %v215 = vld [vmem:[#allocation6 + $0xa8] sm:$0xff]
    %v216 = vld [vmem:[#allocation6 + $0xb0] sm:$0xff]
    %v217 = vld [vmem:[#allocation6 + $0xb8] sm:$0xff]
    %v218 = vld [vmem:[#allocation6 + $0xc0] sm:$0xff]
    %v219 = vld [vmem:[#allocation6 + $0xc8] sm:$0xff]
    %v220 = vld [vmem:[#allocation6 + $0xd0] sm:$0xff]
    %v221 = vld [vmem:[#allocation6 + $0xd8] sm:$0xff]
    %v222 = vld [vmem:[#allocation6 + $0xe0] sm:$0xff]
    %v223 = vld [vmem:[#allocation6 + $0xe8] sm:$0xff]
    %v224 = vld [vmem:[#allocation6 + $0xf0] sm:$0xff]
    %v225 = vld [vmem:[#allocation6 + $0xf8] sm:$0xff]
    %v226 = vld [vmem:[#allocation6 + $0x100] sm:$0xff]
    %v227 = vld [vmem:[#allocation6 + $0x108] sm:$0xff]
    %v228 = vld [vmem:[#allocation6 + $0x110] sm:$0xff]
    %v229 = vld [vmem:[#allocation6 + $0x118] sm:$0xff]
    %v230 = vld [vmem:[#allocation6 + $0x120] sm:$0xff]
    %v231 = vld [vmem:[#allocation6 + $0x128] sm:$0xff]
    %v232 = vld [vmem:[#allocation6 + $0x130] sm:$0xff]
    %v233 = vld [vmem:[#allocation6 + $0x138] sm:$0xff]
    %v234 = vld [vmem:[#allocation6 + $0x140] sm:$0xff]
    %v235 = vld [vmem:[#allocation6 + $0x148] sm:$0xff]
    %v236 = vld [vmem:[#allocation6 + $0x150] sm:$0xff]
    %v237 = vld [vmem:[#allocation6 + $0x158] sm:$0xff]
    %v238 = vld [vmem:[#allocation6 + $0x160] sm:$0xff]
    %v239 = vld [vmem:[#allocation6 + $0x168] sm:$0xff]
    %v240 = vld [vmem:[#allocation6 + $0x170] sm:$0xff]
    %v241 = vld [vmem:[#allocation6 + $0x178] sm:$0xff]
    %v242 = vld [vmem:[#allocation6 + $0x180] sm:$0xff]
    %v243 = vld [vmem:[#allocation6 + $0x188] sm:$0xff]
    %v244 = vld [vmem:[#allocation6 + $0x190] sm:$0xff]
    %v245 = vld [vmem:[#allocation6 + $0x198] sm:$0xff]
    %v246 = vld [vmem:[#allocation6 + $0x1a0] sm:$0xff]
    %v247 = vld [vmem:[#allocation6 + $0x1a8] sm:$0xff]
    %v248 = vld [vmem:[#allocation6 + $0x1b0] sm:$0xff]
    %v249 = vld [vmem:[#allocation6 + $0x1b8] sm:$0xff]
    %v250 = vld [vmem:[#allocation6 + $0x1c0] sm:$0xff]
    %v251 = vld [vmem:[#allocation6 + $0x1c8] sm:$0xff]
    %v252 = vld [vmem:[#allocation6 + $0x1d0] sm:$0xff]
    %v253 = vld [vmem:[#allocation6 + $0x1d8] sm:$0xff]
    %v254 = vld [vmem:[#allocation6 + $0x1e0] sm:$0xff]
    %v255 = vld [vmem:[#allocation6 + $0x1e8] sm:$0xff]
    %v256 = vld [vmem:[#allocation6 + $0x1f0] sm:$0xff]
    %v257 = vld [vmem:[#allocation6 + $0x1f8] sm:$0xff]
    %v258 = vld [vmem:[#allocation6 + $0x200] sm:$0xff]
    %v259 = vld [vmem:[#allocation6 + $0x208] sm:$0xff]
    %v260 = vld [vmem:[#allocation6 + $0x210] sm:$0xff]
    %v261 = vld [vmem:[#allocation6 + $0x218] sm:$0xff]
    %v262 = vld [vmem:[#allocation6 + $0x220] sm:$0xff]
    %v263 = vld [vmem:[#allocation6 + $0x228] sm:$0xff]
    %v264 = vld [vmem:[#allocation6 + $0x230] sm:$0xff]
    %v265 = vld [vmem:[#allocation6 + $0x238] sm:$0xff]
    %v266 = vld [vmem:[#allocation6 + $0x240] sm:$0xff]
    %v267 = vld [vmem:[#allocation6 + $0x248] sm:$0xff]
    %v268 = vld [vmem:[#allocation6 + $0x250] sm:$0xff]
    %v269 = vld [vmem:[#allocation6 + $0x258] sm:$0xff]
    %v270 = vld [vmem:[#allocation6 + $0x260] sm:$0xff]
    %v271 = vld [vmem:[#allocation6 + $0x268] sm:$0xff]
    %v272 = vld [vmem:[#allocation6 + $0x270] sm:$0xff]
    %v273 = vld [vmem:[#allocation6 + $0x278] sm:$0xff]
    %v274 = vld [vmem:[#allocation6 + $0x280] sm:$0xff]
    %v275 = vld [vmem:[#allocation6 + $0x288] sm:$0xff]
    %v276 = vld [vmem:[#allocation6 + $0x290] sm:$0xff]
    %v277 = vld [vmem:[#allocation6 + $0x298] sm:$0xff]
    %v278 = vld [vmem:[#allocation6 + $0x2a0] sm:$0xff]
    %v279 = vld [vmem:[#allocation6 + $0x2a8] sm:$0xff]
    %v280 = vld [vmem:[#allocation6 + $0x2b0] sm:$0xff]
    %v281 = vld [vmem:[#allocation6 + $0x2b8] sm:$0xff]
    %v282 = vld [vmem:[#allocation6 + $0x2c0] sm:$0xff]
    %v283 = vld [vmem:[#allocation6 + $0x2c8] sm:$0xff]
    %v284 = vld [vmem:[#allocation6 + $0x2d0] sm:$0xff]
    %v285 = vld [vmem:[#allocation6 + $0x2d8] sm:$0xff]
    %v286 = vld [vmem:[#allocation6 + $0x2e0] sm:$0xff]
    %v287 = vld [vmem:[#allocation6 + $0x2e8] sm:$0xff]
    %v288 = vld [vmem:[#allocation6 + $0x2f0] sm:$0xff]
    %v289 = vld [vmem:[#allocation6 + $0x2f8] sm:$0xff]
    %v290 = vld [vmem:[#allocation6 + $0x300] sm:$0xff]
    %v291 = vld [vmem:[#allocation6 + $0x308] sm:$0xff]
    %v292 = vld [vmem:[#allocation6 + $0x310] sm:$0xff]
    %v293 = vld [vmem:[#allocation6 + $0x318] sm:$0xff]
    %v294 = vld [vmem:[#allocation6 + $0x320] sm:$0xff]
    %v295 = vld [vmem:[#allocation6 + $0x328] sm:$0xff]
    %v296 = vld [vmem:[#allocation6 + $0x330] sm:$0xff]
    %v297 = vld [vmem:[#allocation6 + $0x338] sm:$0xff]
    %v298 = vld [vmem:[#allocation6 + $0x340] sm:$0xff]
    %v299 = vld [vmem:[#allocation6 + $0x348] sm:$0xff]
    %v300 = vld [vmem:[#allocation6 + $0x350] sm:$0xff]
    %v301 = vld [vmem:[#allocation6 + $0x358] sm:$0xff]
    %v302 = vld [vmem:[#allocation6 + $0x360] sm:$0xff]
    %v303 = vld [vmem:[#allocation6 + $0x368] sm:$0xff]
    %v304 = vld [vmem:[#allocation6 + $0x370] sm:$0xff]
    %v305 = vld [vmem:[#allocation6 + $0x378] sm:$0xff]
    %v306 = vld [vmem:[#allocation6 + $0x380] sm:$0xff]
    %v307 = vld [vmem:[#allocation6 + $0x388] sm:$0xff]
    %v308 = vld [vmem:[#allocation6 + $0x390] sm:$0xff]
    %v309 = vld [vmem:[#allocation6 + $0x398] sm:$0xff]
    %v310 = vld [vmem:[#allocation6 + $0x3a0] sm:$0xff]
    %v311 = vld [vmem:[#allocation6 + $0x3a8] sm:$0xff]
    %v312 = vld [vmem:[#allocation6 + $0x3b0] sm:$0xff]
    %v313 = vld [vmem:[#allocation6 + $0x3b8] sm:$0xff]
    %v314 = vld [vmem:[#allocation6 + $0x3c0] sm:$0xff]
    %v315 = vld [vmem:[#allocation6 + $0x3c8] sm:$0xff]
    %v316 = vld [vmem:[#allocation6 + $0x3d0] sm:$0xff]
    %v317 = vld [vmem:[#allocation6 + $0x3d8] sm:$0xff]
    %v318 = vld [vmem:[#allocation6 + $0x3e0] sm:$0xff]
    %v319 = vld [vmem:[#allocation6 + $0x3e8] sm:$0xff]
    %v320 = vld [vmem:[#allocation6 + $0x3f0] sm:$0xff]
    %v321 = vld [vmem:[#allocation6 + $0x3f8] sm:$0xff]
    %v322 = vld [vmem:[#allocation6 + $0x400] sm:$0xff]
    %v323 = vld [vmem:[#allocation6 + $0x408] sm:$0xff]
    %v324 = vld [vmem:[#allocation6 + $0x410] sm:$0xff]
    %v325 = vld [vmem:[#allocation6 + $0x418] sm:$0xff]
    %v326 = vld [vmem:[#allocation6 + $0x420] sm:$0xff]
    %v327 = vld [vmem:[#allocation6 + $0x428] sm:$0xff]
    %v328 = vld [vmem:[#allocation6 + $0x430] sm:$0xff]
    %v329 = vld [vmem:[#allocation6 + $0x438] sm:$0xff]
    %v330 = vld [vmem:[#allocation6 + $0x440] sm:$0xff]
    %v331 = vld [vmem:[#allocation6 + $0x448] sm:$0xff]
    %v332 = vld [vmem:[#allocation6 + $0x450] sm:$0xff]
    %v333 = vld [vmem:[#allocation6 + $0x458] sm:$0xff]
    %v334 = vld [vmem:[#allocation6 + $0x460] sm:$0xff]
    %v335 = vld [vmem:[#allocation6 + $0x468] sm:$0xff]
    %v336 = vld [vmem:[#allocation6 + $0x470] sm:$0xff]
    %v337 = vld [vmem:[#allocation6 + $0x478] sm:$0xff]
    %v338 = vld [vmem:[#allocation6 + $0x480] sm:$0xff]
    %v339 = vld [vmem:[#allocation6 + $0x488] sm:$0xff]
    %v340 = vld [vmem:[#allocation6 + $0x490] sm:$0xff]
    %v341 = vld [vmem:[#allocation6 + $0x498] sm:$0xff]
    %v342 = vld [vmem:[#allocation6 + $0x4a0] sm:$0xff]
    %v343 = vld [vmem:[#allocation6 + $0x4a8] sm:$0xff]
    %v344 = vld [vmem:[#allocation6 + $0x4b0] sm:$0xff]
    %v345 = vld [vmem:[#allocation6 + $0x4b8] sm:$0xff]
    %v346 = vld [vmem:[#allocation6 + $0x4c0] sm:$0xff]
    %v347 = vld [vmem:[#allocation6 + $0x4c8] sm:$0xff]
    %v348 = vld [vmem:[#allocation6 + $0x4d0] sm:$0xff]
    %v349 = vld [vmem:[#allocation6 + $0x4d8] sm:$0xff]
    %v350 = vld [vmem:[#allocation6 + $0x4e0] sm:$0xff]
    %v351 = vld [vmem:[#allocation6 + $0x4e8] sm:$0xff]
    %v352 = vld [vmem:[#allocation6 + $0x4f0] sm:$0xff]
    %v353 = vld [vmem:[#allocation6 + $0x4f8] sm:$0xff]
    %v354 = vld [vmem:[#allocation6 + $0x500] sm:$0xff]
    %v355 = vld [vmem:[#allocation6 + $0x508] sm:$0xff]
    %v356 = vld [vmem:[#allocation6 + $0x510] sm:$0xff]
    %v357 = vld [vmem:[#allocation6 + $0x518] sm:$0xff]
    %v358 = vld [vmem:[#allocation6 + $0x520] sm:$0xff]
    %v359 = vld [vmem:[#allocation6 + $0x528] sm:$0xff]
    %v360 = vld [vmem:[#allocation6 + $0x530] sm:$0xff]
    %v361 = vld [vmem:[#allocation6 + $0x538] sm:$0xff]
    %v362 = vld [vmem:[#allocation6 + $0x540] sm:$0xff]
    %v363 = vld [vmem:[#allocation6 + $0x548] sm:$0xff]
    %v364 = vld [vmem:[#allocation6 + $0x550] sm:$0xff]
    %v365 = vld [vmem:[#allocation6 + $0x558] sm:$0xff]
    %v366 = vld [vmem:[#allocation6 + $0x560] sm:$0xff]
    %v367 = vld [vmem:[#allocation6 + $0x568] sm:$0xff]
    %v368 = vld [vmem:[#allocation6 + $0x570] sm:$0xff]
    %v369 = vld [vmem:[#allocation6 + $0x578] sm:$0xff]
    %v370 = vld [vmem:[#allocation6 + $0x580] sm:$0xff]
    %v371 = vld [vmem:[#allocation6 + $0x588] sm:$0xff]
    %v372 = vld [vmem:[#allocation6 + $0x590] sm:$0xff]
    %v373 = vld [vmem:[#allocation6 + $0x598] sm:$0xff]
    %v374 = vld [vmem:[#allocation6 + $0x5a0] sm:$0xff]
    %v375 = vld [vmem:[#allocation6 + $0x5a8] sm:$0xff]
    %v376 = vld [vmem:[#allocation6 + $0x5b0] sm:$0xff]
    %v377 = vld [vmem:[#allocation6 + $0x5b8] sm:$0xff]
    %v378 = vld [vmem:[#allocation6 + $0x5c0] sm:$0xff]
    %v379 = vld [vmem:[#allocation6 + $0x5c8] sm:$0xff]
    %v380 = vld [vmem:[#allocation6 + $0x5d0] sm:$0xff]
    %v381 = vld [vmem:[#allocation6 + $0x5d8] sm:$0xff]
    %v382 = vld [vmem:[#allocation6 + $0x5e0] sm:$0xff]
    %v383 = vld [vmem:[#allocation6 + $0x5e8] sm:$0xff]
    %v384 = vld [vmem:[#allocation6 + $0x5f0] sm:$0xff]
    %v385 = vld [vmem:[#allocation6 + $0x5f8] sm:$0xff]
    %v386 = vld [vmem:[#allocation6 + $0x600] sm:$0xff]
    %v387 = vld [vmem:[#allocation6 + $0x608] sm:$0xff]
    %v388 = vld [vmem:[#allocation6 + $0x610] sm:$0xff]
    %v389 = vld [vmem:[#allocation6 + $0x618] sm:$0xff]
    %v390 = vld [vmem:[#allocation6 + $0x620] sm:$0xff]
    %v391 = vld [vmem:[#allocation6 + $0x628] sm:$0xff]
    %v392 = vld [vmem:[#allocation6 + $0x630] sm:$0xff]
    %v393 = vld [vmem:[#allocation6 + $0x638] sm:$0xff]
    %v394 = vld [vmem:[#allocation6 + $0x640] sm:$0xff]
    %v395 = vld [vmem:[#allocation6 + $0x648] sm:$0xff]
    %v396 = vld [vmem:[#allocation6 + $0x650] sm:$0xff]
    %v397 = vld [vmem:[#allocation6 + $0x658] sm:$0xff]
    %v398 = vld [vmem:[#allocation6 + $0x660] sm:$0xff]
    %v399 = vld [vmem:[#allocation6 + $0x668] sm:$0xff]
    %v400 = vld [vmem:[#allocation6 + $0x670] sm:$0xff]
    %v401 = vld [vmem:[#allocation6 + $0x678] sm:$0xff]
    %v402 = vld [vmem:[#allocation6 + $0x680] sm:$0xff]
    %v403 = vld [vmem:[#allocation6 + $0x688] sm:$0xff]
    %v404 = vld [vmem:[#allocation6 + $0x690] sm:$0xff]
    %v405 = vld [vmem:[#allocation6 + $0x698] sm:$0xff]
    %v406 = vld [vmem:[#allocation6 + $0x6a0] sm:$0xff]
    %v407 = vld [vmem:[#allocation6 + $0x6a8] sm:$0xff]
    %v408 = vld [vmem:[#allocation6 + $0x6b0] sm:$0xff]
    %v409 = vld [vmem:[#allocation6 + $0x6b8] sm:$0xff]
    %v410 = vld [vmem:[#allocation6 + $0x6c0] sm:$0xff]
    %v411 = vld [vmem:[#allocation6 + $0x6c8] sm:$0xff]
    %v412 = vld [vmem:[#allocation6 + $0x6d0] sm:$0xff]
    %v413 = vld [vmem:[#allocation6 + $0x6d8] sm:$0xff]
    %v414 = vld [vmem:[#allocation6 + $0x6e0] sm:$0xff]
    %v415 = vld [vmem:[#allocation6 + $0x6e8] sm:$0xff]
    %v416 = vld [vmem:[#allocation6 + $0x6f0] sm:$0xff]
    %v417 = vld [vmem:[#allocation6 + $0x6f8] sm:$0xff]
    %v418 = vld [vmem:[#allocation6 + $0x700] sm:$0xff]
    %v419 = vld [vmem:[#allocation6 + $0x708] sm:$0xff]
    %v420 = vld [vmem:[#allocation6 + $0x710] sm:$0xff]
    %v421 = vld [vmem:[#allocation6 + $0x718] sm:$0xff]
    %v422 = vld [vmem:[#allocation6 + $0x720] sm:$0xff]
    %v423 = vld [vmem:[#allocation6 + $0x728] sm:$0xff]
    %v424 = vld [vmem:[#allocation6 + $0x730] sm:$0xff]
    %v425 = vld [vmem:[#allocation6 + $0x738] sm:$0xff]
    %v426 = vld [vmem:[#allocation6 + $0x740] sm:$0xff]
    %v427 = vld [vmem:[#allocation6 + $0x748] sm:$0xff]
    %v428 = vld [vmem:[#allocation6 + $0x750] sm:$0xff]
    %v429 = vld [vmem:[#allocation6 + $0x758] sm:$0xff]
    %v430 = vld [vmem:[#allocation6 + $0x760] sm:$0xff]
    %v431 = vld [vmem:[#allocation6 + $0x768] sm:$0xff]
    %v432 = vld [vmem:[#allocation6 + $0x770] sm:$0xff]
    %v433 = vld [vmem:[#allocation6 + $0x778] sm:$0xff]
    %v434 = vld [vmem:[#allocation6 + $0x780] sm:$0xff]
    %v435 = vld [vmem:[#allocation6 + $0x788] sm:$0xff]
    %v436 = vld [vmem:[#allocation6 + $0x790] sm:$0xff]
    %v437 = vld [vmem:[#allocation6 + $0x798] sm:$0xff]
    %v438 = vld [vmem:[#allocation6 + $0x7a0] sm:$0xff]
    %v439 = vld [vmem:[#allocation6 + $0x7a8] sm:$0xff]
    %v440 = vld [vmem:[#allocation6 + $0x7b0] sm:$0xff]
    %v441 = vld [vmem:[#allocation6 + $0x7b8] sm:$0xff]
    %v442 = vld [vmem:[#allocation6 + $0x7c0] sm:$0xff]
    %v443 = vld [vmem:[#allocation6 + $0x7c8] sm:$0xff]
    %v444 = vld [vmem:[#allocation6 + $0x7d0] sm:$0xff]
    %v445 = vld [vmem:[#allocation6 + $0x7d8] sm:$0xff]
    %v446 = vld [vmem:[#allocation6 + $0x7e0] sm:$0xff]
    %v447 = vld [vmem:[#allocation6 + $0x7e8] sm:$0xff]
    %v448 = vld [vmem:[#allocation6 + $0x7f0] sm:$0xff]
    %v449 = vld [vmem:[#allocation6 + $0x7f8] sm:$0xff]
    %v450 = vld [vmem:[#allocation6 + $0x800] sm:$0xff]
    %v451 = vld [vmem:[#allocation6 + $0x808] sm:$0xff]
    %v452 = vld [vmem:[#allocation6 + $0x810] sm:$0xff]
    %v453 = vld [vmem:[#allocation6 + $0x818] sm:$0xff]
    %v454 = vld [vmem:[#allocation6 + $0x820] sm:$0xff]
    %v455 = vld [vmem:[#allocation6 + $0x828] sm:$0xff]
    %v456 = vld [vmem:[#allocation6 + $0x830] sm:$0xff]
    %v457 = vld [vmem:[#allocation6 + $0x838] sm:$0xff]
    %v458 = vld [vmem:[#allocation6 + $0x840] sm:$0xff]
    %v459 = vld [vmem:[#allocation6 + $0x848] sm:$0xff]
    %v460 = vld [vmem:[#allocation6 + $0x850] sm:$0xff]
    %v461 = vld [vmem:[#allocation6 + $0x858] sm:$0xff]
    %v462 = vld [vmem:[#allocation6 + $0x860] sm:$0xff]
    %v463 = vld [vmem:[#allocation6 + $0x868] sm:$0xff]
    %v464 = vld [vmem:[#allocation6 + $0x870] sm:$0xff]
    %v465 = vld [vmem:[#allocation6 + $0x878] sm:$0xff]
    %v466 = vld [vmem:[#allocation6 + $0x880] sm:$0xff]
    %v467 = vld [vmem:[#allocation6 + $0x888] sm:$0xff]
    %v468 = vld [vmem:[#allocation6 + $0x890] sm:$0xff]
    %v469 = vld [vmem:[#allocation6 + $0x898] sm:$0xff]
    %v470 = vld [vmem:[#allocation6 + $0x8a0] sm:$0xff]
    %v471 = vld [vmem:[#allocation6 + $0x8a8] sm:$0xff]
    %v472 = vld [vmem:[#allocation6 + $0x8b0] sm:$0xff]
    %v473 = vld [vmem:[#allocation6 + $0x8b8] sm:$0xff]
    %v474 = vld [vmem:[#allocation6 + $0x8c0] sm:$0xff]
    %v475 = vld [vmem:[#allocation6 + $0x8c8] sm:$0xff]
    %v476 = vld [vmem:[#allocation6 + $0x8d0] sm:$0xff]
    %v477 = vld [vmem:[#allocation6 + $0x8d8] sm:$0xff]
    %v478 = vld [vmem:[#allocation6 + $0x8e0] sm:$0xff]
    %v479 = vld [vmem:[#allocation6 + $0x8e8] sm:$0xff]
    %v480 = vld [vmem:[#allocation6 + $0x8f0] sm:$0xff]
    %v481 = vld [vmem:[#allocation6 + $0x8f8] sm:$0xff]
    %v482 = vld [vmem:[#allocation6 + $0x900] sm:$0xff]
    %v483 = vld [vmem:[#allocation6 + $0x908] sm:$0xff]
    %v484 = vld [vmem:[#allocation6 + $0x910] sm:$0xff]
    %v485 = vld [vmem:[#allocation6 + $0x918] sm:$0xff]
    %v486 = vld [vmem:[#allocation6 + $0x920] sm:$0xff]
    %v487 = vld [vmem:[#allocation6 + $0x928] sm:$0xff]
    %v488 = vld [vmem:[#allocation6 + $0x930] sm:$0xff]
    %v489 = vld [vmem:[#allocation6 + $0x938] sm:$0xff]
    %v490 = vld [vmem:[#allocation6 + $0x940] sm:$0xff]
    %v491 = vld [vmem:[#allocation6 + $0x948] sm:$0xff]
    %v492 = vld [vmem:[#allocation6 + $0x950] sm:$0xff]
    %v493 = vld [vmem:[#allocation6 + $0x958] sm:$0xff]
    %v494 = vld [vmem:[#allocation6 + $0x960] sm:$0xff]
    %v495 = vld [vmem:[#allocation6 + $0x968] sm:$0xff]
    %v496 = vld [vmem:[#allocation6 + $0x970] sm:$0xff]
    %v497 = vld [vmem:[#allocation6 + $0x978] sm:$0xff]
    %v498 = vld [vmem:[#allocation6 + $0x980] sm:$0xff]
    %v499 = vld [vmem:[#allocation6 + $0x988] sm:$0xff]
    %v500 = vld [vmem:[#allocation6 + $0x990] sm:$0xff]
    %v501 = vld [vmem:[#allocation6 + $0x998] sm:$0xff]
    %v502 = vld [vmem:[#allocation6 + $0x9a0] sm:$0xff]
    %v503 = vld [vmem:[#allocation6 + $0x9a8] sm:$0xff]
    %v504 = vld [vmem:[#allocation6 + $0x9b0] sm:$0xff]
    %v505 = vld [vmem:[#allocation6 + $0x9b8] sm:$0xff]
    %v506 = vld [vmem:[#allocation6 + $0x9c0] sm:$0xff]
    %v507 = vld [vmem:[#allocation6 + $0x9c8] sm:$0xff]
    %v508 = vld [vmem:[#allocation6 + $0x9d0] sm:$0xff]
    %v509 = vld [vmem:[#allocation6 + $0x9d8] sm:$0xff]
    %v510 = vld [vmem:[#allocation6 + $0x9e0] sm:$0xff]
    %v511 = vld [vmem:[#allocation6 + $0x9e8] sm:$0xff]
    %v512 = vld [vmem:[#allocation6 + $0x9f0] sm:$0xff]
    %v513 = vld [vmem:[#allocation6 + $0x9f8] sm:$0xff]
    %v514 = vld [vmem:[#allocation6 + $0xa00] sm:$0xff]
    %v515 = vld [vmem:[#allocation6 + $0xa08] sm:$0xff]
    %v516 = vld [vmem:[#allocation6 + $0xa10] sm:$0xff]
    %v517 = vld [vmem:[#allocation6 + $0xa18] sm:$0xff]
    %v518 = vld [vmem:[#allocation6 + $0xa20] sm:$0xff]
    %v519 = vld [vmem:[#allocation6 + $0xa28] sm:$0xff]
    %v520 = vld [vmem:[#allocation6 + $0xa30] sm:$0xff]
    %v521 = vld [vmem:[#allocation6 + $0xa38] sm:$0xff]
    %v522 = vld [vmem:[#allocation6 + $0xa40] sm:$0xff]
    %v523 = vld [vmem:[#allocation6 + $0xa48] sm:$0xff]
    %v524 = vld [vmem:[#allocation6 + $0xa50] sm:$0xff]
    %v525 = vld [vmem:[#allocation6 + $0xa58] sm:$0xff]
    %v526 = vld [vmem:[#allocation6 + $0xa60] sm:$0xff]
    %v527 = vld [vmem:[#allocation6 + $0xa68] sm:$0xff]
    %v528 = vld [vmem:[#allocation6 + $0xa70] sm:$0xff]
    %v529 = vld [vmem:[#allocation6 + $0xa78] sm:$0xff]
    %v530 = vld [vmem:[#allocation6 + $0xa80] sm:$0xff]
    %v531 = vld [vmem:[#allocation6 + $0xa88] sm:$0xff]
    %v532 = vld [vmem:[#allocation6 + $0xa90] sm:$0xff]
    %v533 = vld [vmem:[#allocation6 + $0xa98] sm:$0xff]
    %v534 = vld [vmem:[#allocation6 + $0xaa0] sm:$0xff]
    %v535 = vld [vmem:[#allocation6 + $0xaa8] sm:$0xff]
    %v536 = vld [vmem:[#allocation6 + $0xab0] sm:$0xff]
    %v537 = vld [vmem:[#allocation6 + $0xab8] sm:$0xff]
    %v538 = vld [vmem:[#allocation6 + $0xac0] sm:$0xff]
    %v539 = vld [vmem:[#allocation6 + $0xac8] sm:$0xff]
    %v540 = vld [vmem:[#allocation6 + $0xad0] sm:$0xff]
    %v541 = vld [vmem:[#allocation6 + $0xad8] sm:$0xff]
    %v542 = vld [vmem:[#allocation6 + $0xae0] sm:$0xff]
    %v543 = vld [vmem:[#allocation6 + $0xae8] sm:$0xff]
    %v544 = vld [vmem:[#allocation6 + $0xaf0] sm:$0xff]
    %v545 = vld [vmem:[#allocation6 + $0xaf8] sm:$0xff]
    %v546 = vld [vmem:[#allocation6 + $0xb00] sm:$0xff]
    %v547 = vld [vmem:[#allocation6 + $0xb08] sm:$0xff]
    %v548 = vld [vmem:[#allocation6 + $0xb10] sm:$0xff]
    %v549 = vld [vmem:[#allocation6 + $0xb18] sm:$0xff]
    %v550 = vld [vmem:[#allocation6 + $0xb20] sm:$0xff]
    %v551 = vld [vmem:[#allocation6 + $0xb28] sm:$0xff]
    %v552 = vld [vmem:[#allocation6 + $0xb30] sm:$0xff]
    %v553 = vld [vmem:[#allocation6 + $0xb38] sm:$0xff]
    %v554 = vld [vmem:[#allocation6 + $0xb40] sm:$0xff]
    %v555 = vld [vmem:[#allocation6 + $0xb48] sm:$0xff]
    %v556 = vld [vmem:[#allocation6 + $0xb50] sm:$0xff]
    %v557 = vld [vmem:[#allocation6 + $0xb58] sm:$0xff]
    %v558 = vld [vmem:[#allocation6 + $0xb60] sm:$0xff]
    %v559 = vld [vmem:[#allocation6 + $0xb68] sm:$0xff]
    %v560 = vld [vmem:[#allocation6 + $0xb70] sm:$0xff]
    %v561 = vld [vmem:[#allocation6 + $0xb78] sm:$0xff]
    %v562 = vld [vmem:[#allocation6 + $0xb80] sm:$0xff]
    %v563 = vld [vmem:[#allocation6 + $0xb88] sm:$0xff]
    %v564 = vld [vmem:[#allocation6 + $0xb90] sm:$0xff]
    %v565 = vld [vmem:[#allocation6 + $0xb98] sm:$0xff]
    %v566 = vld [vmem:[#allocation6 + $0xba0] sm:$0xff]
    %v567 = vld [vmem:[#allocation6 + $0xba8] sm:$0xff]
    %v568 = vld [vmem:[#allocation6 + $0xbb0] sm:$0xff]
    %v569 = vld [vmem:[#allocation6 + $0xbb8] sm:$0xff]
    %v570 = vld [vmem:[#allocation6 + $0xbc0] sm:$0xff]
    %v571 = vld [vmem:[#allocation6 + $0xbc8] sm:$0xff]
    %v572 = vld [vmem:[#allocation6 + $0xbd0] sm:$0xff]
    %v573 = vld [vmem:[#allocation6 + $0xbd8] sm:$0xff]
    %v574 = vld [vmem:[#allocation6 + $0xbe0] sm:$0xff]
    %v575 = vld [vmem:[#allocation6 + $0xbe8] sm:$0xff]
    %v576 = vld [vmem:[#allocation6 + $0xbf0] sm:$0xff]
    %v577 = vld [vmem:[#allocation6 + $0xbf8] sm:$0xff]
    %v578 = vld [vmem:[#allocation6 + $0xc00] sm:$0xff]
    %v579 = vld [vmem:[#allocation6 + $0xc08] sm:$0xff]
    %v580 = vld [vmem:[#allocation6 + $0xc10] sm:$0xff]
    %v581 = vld [vmem:[#allocation6 + $0xc18] sm:$0xff]
    %v582 = vld [vmem:[#allocation6 + $0xc20] sm:$0xff]
    %v583 = vld [vmem:[#allocation6 + $0xc28] sm:$0xff]
    %v584 = vld [vmem:[#allocation6 + $0xc30] sm:$0xff]
    %v585 = vld [vmem:[#allocation6 + $0xc38] sm:$0xff]
    %v586 = vld [vmem:[#allocation6 + $0xc40] sm:$0xff]
    %v587 = vld [vmem:[#allocation6 + $0xc48] sm:$0xff]
    %v588 = vld [vmem:[#allocation6 + $0xc50] sm:$0xff]
    %v589 = vld [vmem:[#allocation6 + $0xc58] sm:$0xff]
    %v590 = vld [vmem:[#allocation6 + $0xc60] sm:$0xff]
    %v591 = vld [vmem:[#allocation6 + $0xc68] sm:$0xff]
    %v592 = vld [vmem:[#allocation6 + $0xc70] sm:$0xff]
    %v593 = vld [vmem:[#allocation6 + $0xc78] sm:$0xff]
    %v594 = vld [vmem:[#allocation8] sm:$0xf]
    %v596 = vlaneseq
    %v597 = vshrl.u32 %v596, 7
    %v598 = vsub.s32 0, %v597
    %v599 = vrot.slane %v594, %v598
    %v600 = vlaneseq
    %v601 = vshrl.u32 %v600, 7
    %v602 = vsub.s32 1, %v601
    %v603 = vrot.slane %v594, %v602
    %v604 = vlaneseq
    %v605 = vshrl.u32 %v604, 7
    %v606 = vsub.s32 2, %v605
    %v607 = vrot.slane %v594, %v606
    %v608 = vlaneseq
    %v609 = vshrl.u32 %v608, 7
    %v610 = vsub.s32 3, %v609
    %v611 = vrot.slane %v594, %v610
    %v1016 = vunpack.c.l.b16 %v194
    %v1017 = vunpack.c.h.b16 %v194
    %v1018 = vunpack.c.l.b16 %v195
    %v1019 = vunpack.c.h.b16 %v195
    %v1020 = vunpack.c.l.b16 %v196
    %v1021 = vunpack.c.h.b16 %v196
    %v1022 = vunpack.c.l.b16 %v197
    %v1023 = vunpack.c.h.b16 %v197
    %v1024 = vunpack.c.l.b16 %v198
    %v1025 = vunpack.c.h.b16 %v198
    %v1026 = vunpack.c.l.b16 %v199
    %v1027 = vunpack.c.h.b16 %v199
    %v1028 = vunpack.c.l.b16 %v200
    %v1029 = vunpack.c.h.b16 %v200
    %v1030 = vunpack.c.l.b16 %v201
    %v1031 = vunpack.c.h.b16 %v201
    %v1032 = vunpack.c.l.b16 %v202
    %v1033 = vunpack.c.h.b16 %v202
    %v1034 = vunpack.c.l.b16 %v203
    %v1035 = vunpack.c.h.b16 %v203
    %v1036 = vunpack.c.l.b16 %v204
    %v1037 = vunpack.c.h.b16 %v204
    %v1038 = vunpack.c.l.b16 %v205
    %v1039 = vunpack.c.h.b16 %v205
    %v1040 = vunpack.c.l.b16 %v206
    %v1041 = vunpack.c.h.b16 %v206
    %v1042 = vunpack.c.l.b16 %v207
    %v1043 = vunpack.c.h.b16 %v207
    %v1044 = vunpack.c.l.b16 %v208
    %v1045 = vunpack.c.h.b16 %v208
    %v1046 = vunpack.c.l.b16 %v209
    %v1047 = vunpack.c.h.b16 %v209
    %v1048 = vunpack.c.l.b16 %v210
    %v1049 = vunpack.c.h.b16 %v210
    %v1050 = vunpack.c.l.b16 %v211
    %v1051 = vunpack.c.h.b16 %v211
    %v1052 = vunpack.c.l.b16 %v212
    %v1053 = vunpack.c.h.b16 %v212
    %v1054 = vunpack.c.l.b16 %v213
    %v1055 = vunpack.c.h.b16 %v213
    %v1056 = vunpack.c.l.b16 %v214
    %v1057 = vunpack.c.h.b16 %v214
    %v1058 = vunpack.c.l.b16 %v215
    %v1059 = vunpack.c.h.b16 %v215
    %v1060 = vunpack.c.l.b16 %v216
    %v1061 = vunpack.c.h.b16 %v216
    %v1062 = vunpack.c.l.b16 %v217
    %v1063 = vunpack.c.h.b16 %v217
    %v1064 = vunpack.c.l.b16 %v218
    %v1065 = vunpack.c.h.b16 %v218
    %v1066 = vunpack.c.l.b16 %v219
    %v1067 = vunpack.c.h.b16 %v219
    %v1068 = vunpack.c.l.b16 %v220
    %v1069 = vunpack.c.h.b16 %v220
    %v1070 = vunpack.c.l.b16 %v221
    %v1071 = vunpack.c.h.b16 %v221
    %v1072 = vunpack.c.l.b16 %v222
    %v1073 = vunpack.c.h.b16 %v222
    %v1074 = vunpack.c.l.b16 %v223
    %v1075 = vunpack.c.h.b16 %v223
    %v1076 = vunpack.c.l.b16 %v224
    %v1077 = vunpack.c.h.b16 %v224
    %v1078 = vunpack.c.l.b16 %v225
    %v1079 = vunpack.c.h.b16 %v225
    %v1080 = vunpack.c.l.b16 %v226
    %v1081 = vunpack.c.h.b16 %v226
    %v1082 = vunpack.c.l.b16 %v227
    %v1083 = vunpack.c.h.b16 %v227
    %v1084 = vunpack.c.l.b16 %v228
    %v1085 = vunpack.c.h.b16 %v228
    %v1086 = vunpack.c.l.b16 %v229
    %v1087 = vunpack.c.h.b16 %v229
    %v1088 = vunpack.c.l.b16 %v230
    %v1089 = vunpack.c.h.b16 %v230
    %v1090 = vunpack.c.l.b16 %v231
    %v1091 = vunpack.c.h.b16 %v231
    %v1092 = vunpack.c.l.b16 %v232
    %v1093 = vunpack.c.h.b16 %v232
    %v1094 = vunpack.c.l.b16 %v233
    %v1095 = vunpack.c.h.b16 %v233
    %v1096 = vunpack.c.l.b16 %v234
    %v1097 = vunpack.c.h.b16 %v234
    %v1098 = vunpack.c.l.b16 %v235
    %v1099 = vunpack.c.h.b16 %v235
    %v1100 = vunpack.c.l.b16 %v236
    %v1101 = vunpack.c.h.b16 %v236
    %v1102 = vunpack.c.l.b16 %v237
    %v1103 = vunpack.c.h.b16 %v237
    %v1104 = vunpack.c.l.b16 %v238
    %v1105 = vunpack.c.h.b16 %v238
    %v1106 = vunpack.c.l.b16 %v239
    %v1107 = vunpack.c.h.b16 %v239
    %v1108 = vunpack.c.l.b16 %v240
    %v1109 = vunpack.c.h.b16 %v240
    %v1110 = vunpack.c.l.b16 %v241
    %v1111 = vunpack.c.h.b16 %v241
    %v1112 = vunpack.c.l.b16 %v242
    %v1113 = vunpack.c.h.b16 %v242
    %v1114 = vunpack.c.l.b16 %v243
    %v1115 = vunpack.c.h.b16 %v243
    %v1116 = vunpack.c.l.b16 %v244
    %v1117 = vunpack.c.h.b16 %v244
    %v1118 = vunpack.c.l.b16 %v245
    %v1119 = vunpack.c.h.b16 %v245
    %v1120 = vunpack.c.l.b16 %v246
    %v1121 = vunpack.c.h.b16 %v246
    %v1122 = vunpack.c.l.b16 %v247
    %v1123 = vunpack.c.h.b16 %v247
    %v1124 = vunpack.c.l.b16 %v248
    %v1125 = vunpack.c.h.b16 %v248
    %v1126 = vunpack.c.l.b16 %v249
    %v1127 = vunpack.c.h.b16 %v249
    %v1128 = vunpack.c.l.b16 %v250
    %v1129 = vunpack.c.h.b16 %v250
    %v1130 = vunpack.c.l.b16 %v251
    %v1131 = vunpack.c.h.b16 %v251
    %v1132 = vunpack.c.l.b16 %v252
    %v1133 = vunpack.c.h.b16 %v252
    %v1134 = vunpack.c.l.b16 %v253
    %v1135 = vunpack.c.h.b16 %v253
    %v1136 = vunpack.c.l.b16 %v254
    %v1137 = vunpack.c.h.b16 %v254
    %v1138 = vunpack.c.l.b16 %v255
    %v1139 = vunpack.c.h.b16 %v255
    %v1140 = vunpack.c.l.b16 %v256
    %v1141 = vunpack.c.h.b16 %v256
    %v1142 = vunpack.c.l.b16 %v257
    %v1143 = vunpack.c.h.b16 %v257
    %v1144 = vunpack.c.l.b16 %v258
    %v1145 = vunpack.c.h.b16 %v258
    %v1146 = vunpack.c.l.b16 %v259
    %v1147 = vunpack.c.h.b16 %v259
    %v1148 = vunpack.c.l.b16 %v260
    %v1149 = vunpack.c.h.b16 %v260
    %v1150 = vunpack.c.l.b16 %v261
    %v1151 = vunpack.c.h.b16 %v261
    %v1152 = vunpack.c.l.b16 %v262
    %v1153 = vunpack.c.h.b16 %v262
    %v1154 = vunpack.c.l.b16 %v263
    %v1155 = vunpack.c.h.b16 %v263
    %v1156 = vunpack.c.l.b16 %v264
    %v1157 = vunpack.c.h.b16 %v264
    %v1158 = vunpack.c.l.b16 %v265
    %v1159 = vunpack.c.h.b16 %v265
    %v1160 = vunpack.c.l.b16 %v266
    %v1161 = vunpack.c.h.b16 %v266
    %v1162 = vunpack.c.l.b16 %v267
    %v1163 = vunpack.c.h.b16 %v267
    %v1164 = vunpack.c.l.b16 %v268
    %v1165 = vunpack.c.h.b16 %v268
    %v1166 = vunpack.c.l.b16 %v269
    %v1167 = vunpack.c.h.b16 %v269
    %v1168 = vunpack.c.l.b16 %v270
    %v1169 = vunpack.c.h.b16 %v270
    %v1170 = vunpack.c.l.b16 %v271
    %v1171 = vunpack.c.h.b16 %v271
    %v1172 = vunpack.c.l.b16 %v272
    %v1173 = vunpack.c.h.b16 %v272
    %v1174 = vunpack.c.l.b16 %v273
    %v1175 = vunpack.c.h.b16 %v273
    %v1176 = vunpack.c.l.b16 %v274
    %v1177 = vunpack.c.h.b16 %v274
    %v1178 = vunpack.c.l.b16 %v275
    %v1179 = vunpack.c.h.b16 %v275
    %v1180 = vunpack.c.l.b16 %v276
    %v1181 = vunpack.c.h.b16 %v276
    %v1182 = vunpack.c.l.b16 %v277
    %v1183 = vunpack.c.h.b16 %v277
    %v1184 = vunpack.c.l.b16 %v278
    %v1185 = vunpack.c.h.b16 %v278
    %v1186 = vunpack.c.l.b16 %v279
    %v1187 = vunpack.c.h.b16 %v279
    %v1188 = vunpack.c.l.b16 %v280
    %v1189 = vunpack.c.h.b16 %v280
    %v1190 = vunpack.c.l.b16 %v281
    %v1191 = vunpack.c.h.b16 %v281
    %v1192 = vunpack.c.l.b16 %v282
    %v1193 = vunpack.c.h.b16 %v282
    %v1194 = vunpack.c.l.b16 %v283
    %v1195 = vunpack.c.h.b16 %v283
    %v1196 = vunpack.c.l.b16 %v284
    %v1197 = vunpack.c.h.b16 %v284
    %v1198 = vunpack.c.l.b16 %v285
    %v1199 = vunpack.c.h.b16 %v285
    %v1200 = vunpack.c.l.b16 %v286
    %v1201 = vunpack.c.h.b16 %v286
    %v1202 = vunpack.c.l.b16 %v287
    %v1203 = vunpack.c.h.b16 %v287
    %v1204 = vunpack.c.l.b16 %v288
    %v1205 = vunpack.c.h.b16 %v288
    %v1206 = vunpack.c.l.b16 %v289
    %v1207 = vunpack.c.h.b16 %v289
    %v1208 = vunpack.c.l.b16 %v290
    %v1209 = vunpack.c.h.b16 %v290
    %v1210 = vunpack.c.l.b16 %v291
    %v1211 = vunpack.c.h.b16 %v291
    %v1212 = vunpack.c.l.b16 %v292
    %v1213 = vunpack.c.h.b16 %v292
    %v1214 = vunpack.c.l.b16 %v293
    %v1215 = vunpack.c.h.b16 %v293
    %v1216 = vunpack.c.l.b16 %v294
    %v1217 = vunpack.c.h.b16 %v294
    %v1218 = vunpack.c.l.b16 %v295
    %v1219 = vunpack.c.h.b16 %v295
    %v1220 = vunpack.c.l.b16 %v296
    %v1221 = vunpack.c.h.b16 %v296
    %v1222 = vunpack.c.l.b16 %v297
    %v1223 = vunpack.c.h.b16 %v297
    %v1224 = vunpack.c.l.b16 %v298
    %v1225 = vunpack.c.h.b16 %v298
    %v1226 = vunpack.c.l.b16 %v299
    %v1227 = vunpack.c.h.b16 %v299
    %v1228 = vunpack.c.l.b16 %v300
    %v1229 = vunpack.c.h.b16 %v300
    %v1230 = vunpack.c.l.b16 %v301
    %v1231 = vunpack.c.h.b16 %v301
    %v1232 = vunpack.c.l.b16 %v302
    %v1233 = vunpack.c.h.b16 %v302
    %v1234 = vunpack.c.l.b16 %v303
    %v1235 = vunpack.c.h.b16 %v303
    %v1236 = vunpack.c.l.b16 %v304
    %v1237 = vunpack.c.h.b16 %v304
    %v1238 = vunpack.c.l.b16 %v305
    %v1239 = vunpack.c.h.b16 %v305
    %v1240 = vunpack.c.l.b16 %v306
    %v1241 = vunpack.c.h.b16 %v306
    %v1242 = vunpack.c.l.b16 %v307
    %v1243 = vunpack.c.h.b16 %v307
    %v1244 = vunpack.c.l.b16 %v308
    %v1245 = vunpack.c.h.b16 %v308
    %v1246 = vunpack.c.l.b16 %v309
    %v1247 = vunpack.c.h.b16 %v309
    %v1248 = vunpack.c.l.b16 %v310
    %v1249 = vunpack.c.h.b16 %v310
    %v1250 = vunpack.c.l.b16 %v311
    %v1251 = vunpack.c.h.b16 %v311
    %v1252 = vunpack.c.l.b16 %v312
    %v1253 = vunpack.c.h.b16 %v312
    %v1254 = vunpack.c.l.b16 %v313
    %v1255 = vunpack.c.h.b16 %v313
    %v1256 = vunpack.c.l.b16 %v314
    %v1257 = vunpack.c.h.b16 %v314
    %v1258 = vunpack.c.l.b16 %v315
    %v1259 = vunpack.c.h.b16 %v315
    %v1260 = vunpack.c.l.b16 %v316
    %v1261 = vunpack.c.h.b16 %v316
    %v1262 = vunpack.c.l.b16 %v317
    %v1263 = vunpack.c.h.b16 %v317
    %v1264 = vunpack.c.l.b16 %v318
    %v1265 = vunpack.c.h.b16 %v318
    %v1266 = vunpack.c.l.b16 %v319
    %v1267 = vunpack.c.h.b16 %v319
    %v1268 = vunpack.c.l.b16 %v320
    %v1269 = vunpack.c.h.b16 %v320
    %v1270 = vunpack.c.l.b16 %v321
    %v1271 = vunpack.c.h.b16 %v321
    %v1272 = vunpack.c.l.b16 %v322
    %v1273 = vunpack.c.h.b16 %v322
    %v1274 = vunpack.c.l.b16 %v323
    %v1275 = vunpack.c.h.b16 %v323
    %v1276 = vunpack.c.l.b16 %v324
    %v1277 = vunpack.c.h.b16 %v324
    %v1278 = vunpack.c.l.b16 %v325
    %v1279 = vunpack.c.h.b16 %v325
    %v1280 = vunpack.c.l.b16 %v326
    %v1281 = vunpack.c.h.b16 %v326
    %v1282 = vunpack.c.l.b16 %v327
    %v1283 = vunpack.c.h.b16 %v327
    %v1284 = vunpack.c.l.b16 %v328
    %v1285 = vunpack.c.h.b16 %v328
    %v1286 = vunpack.c.l.b16 %v329
    %v1287 = vunpack.c.h.b16 %v329
    %v1288 = vunpack.c.l.b16 %v330
    %v1289 = vunpack.c.h.b16 %v330
    %v1290 = vunpack.c.l.b16 %v331
    %v1291 = vunpack.c.h.b16 %v331
    %v1292 = vunpack.c.l.b16 %v332
    %v1293 = vunpack.c.h.b16 %v332
    %v1294 = vunpack.c.l.b16 %v333
    %v1295 = vunpack.c.h.b16 %v333
    %v1296 = vunpack.c.l.b16 %v334
    %v1297 = vunpack.c.h.b16 %v334
    %v1298 = vunpack.c.l.b16 %v335
    %v1299 = vunpack.c.h.b16 %v335
    %v1300 = vunpack.c.l.b16 %v336
    %v1301 = vunpack.c.h.b16 %v336
    %v1302 = vunpack.c.l.b16 %v337
    %v1303 = vunpack.c.h.b16 %v337
    %v1304 = vunpack.c.l.b16 %v338
    %v1305 = vunpack.c.h.b16 %v338
    %v1306 = vunpack.c.l.b16 %v339
    %v1307 = vunpack.c.h.b16 %v339
    %v1308 = vunpack.c.l.b16 %v340
    %v1309 = vunpack.c.h.b16 %v340
    %v1310 = vunpack.c.l.b16 %v341
    %v1311 = vunpack.c.h.b16 %v341
    %v1312 = vunpack.c.l.b16 %v342
    %v1313 = vunpack.c.h.b16 %v342
    %v1314 = vunpack.c.l.b16 %v343
    %v1315 = vunpack.c.h.b16 %v343
    %v1316 = vunpack.c.l.b16 %v344
    %v1317 = vunpack.c.h.b16 %v344
    %v1318 = vunpack.c.l.b16 %v345
    %v1319 = vunpack.c.h.b16 %v345
    %v1320 = vunpack.c.l.b16 %v346
    %v1321 = vunpack.c.h.b16 %v346
    %v1322 = vunpack.c.l.b16 %v347
    %v1323 = vunpack.c.h.b16 %v347
    %v1324 = vunpack.c.l.b16 %v348
    %v1325 = vunpack.c.h.b16 %v348
    %v1326 = vunpack.c.l.b16 %v349
    %v1327 = vunpack.c.h.b16 %v349
    %v1328 = vunpack.c.l.b16 %v350
    %v1329 = vunpack.c.h.b16 %v350
    %v1330 = vunpack.c.l.b16 %v351
    %v1331 = vunpack.c.h.b16 %v351
    %v1332 = vunpack.c.l.b16 %v352
    %v1333 = vunpack.c.h.b16 %v352
    %v1334 = vunpack.c.l.b16 %v353
    %v1335 = vunpack.c.h.b16 %v353
    %v1336 = vunpack.c.l.b16 %v354
    %v1337 = vunpack.c.h.b16 %v354
    %v1338 = vunpack.c.l.b16 %v355
    %v1339 = vunpack.c.h.b16 %v355
    %v1340 = vunpack.c.l.b16 %v356
    %v1341 = vunpack.c.h.b16 %v356
    %v1342 = vunpack.c.l.b16 %v357
    %v1343 = vunpack.c.h.b16 %v357
    %v1344 = vunpack.c.l.b16 %v358
    %v1345 = vunpack.c.h.b16 %v358
    %v1346 = vunpack.c.l.b16 %v359
    %v1347 = vunpack.c.h.b16 %v359
    %v1348 = vunpack.c.l.b16 %v360
    %v1349 = vunpack.c.h.b16 %v360
    %v1350 = vunpack.c.l.b16 %v361
    %v1351 = vunpack.c.h.b16 %v361
    %v1352 = vunpack.c.l.b16 %v362
    %v1353 = vunpack.c.h.b16 %v362
    %v1354 = vunpack.c.l.b16 %v363
    %v1355 = vunpack.c.h.b16 %v363
    %v1356 = vunpack.c.l.b16 %v364
    %v1357 = vunpack.c.h.b16 %v364
    %v1358 = vunpack.c.l.b16 %v365
    %v1359 = vunpack.c.h.b16 %v365
    %v1360 = vunpack.c.l.b16 %v366
    %v1361 = vunpack.c.h.b16 %v366
    %v1362 = vunpack.c.l.b16 %v367
    %v1363 = vunpack.c.h.b16 %v367
    %v1364 = vunpack.c.l.b16 %v368
    %v1365 = vunpack.c.h.b16 %v368
    %v1366 = vunpack.c.l.b16 %v369
    %v1367 = vunpack.c.h.b16 %v369
    %v1368 = vunpack.c.l.b16 %v370
    %v1369 = vunpack.c.h.b16 %v370
    %v1370 = vunpack.c.l.b16 %v371
    %v1371 = vunpack.c.h.b16 %v371
    %v1372 = vunpack.c.l.b16 %v372
    %v1373 = vunpack.c.h.b16 %v372
    %v1374 = vunpack.c.l.b16 %v373
    %v1375 = vunpack.c.h.b16 %v373
    %v1376 = vunpack.c.l.b16 %v374
    %v1377 = vunpack.c.h.b16 %v374
    %v1378 = vunpack.c.l.b16 %v375
    %v1379 = vunpack.c.h.b16 %v375
    %v1380 = vunpack.c.l.b16 %v376
    %v1381 = vunpack.c.h.b16 %v376
    %v1382 = vunpack.c.l.b16 %v377
    %v1383 = vunpack.c.h.b16 %v377
    %v1384 = vunpack.c.l.b16 %v378
    %v1385 = vunpack.c.h.b16 %v378
    %v1386 = vunpack.c.l.b16 %v379
    %v1387 = vunpack.c.h.b16 %v379
    %v1388 = vunpack.c.l.b16 %v380
    %v1389 = vunpack.c.h.b16 %v380
    %v1390 = vunpack.c.l.b16 %v381
    %v1391 = vunpack.c.h.b16 %v381
    %v1392 = vunpack.c.l.b16 %v382
    %v1393 = vunpack.c.h.b16 %v382
    %v1394 = vunpack.c.l.b16 %v383
    %v1395 = vunpack.c.h.b16 %v383
    %v1396 = vunpack.c.l.b16 %v384
    %v1397 = vunpack.c.h.b16 %v384
    %v1398 = vunpack.c.l.b16 %v385
    %v1399 = vunpack.c.h.b16 %v385
    %v1400 = vunpack.c.l.b16 %v386
    %v1401 = vunpack.c.h.b16 %v386
    %v1402 = vunpack.c.l.b16 %v387
    %v1403 = vunpack.c.h.b16 %v387
    %v1404 = vunpack.c.l.b16 %v388
    %v1405 = vunpack.c.h.b16 %v388
    %v1406 = vunpack.c.l.b16 %v389
    %v1407 = vunpack.c.h.b16 %v389
    %v1408 = vunpack.c.l.b16 %v390
    %v1409 = vunpack.c.h.b16 %v390
    %v1410 = vunpack.c.l.b16 %v391
    %v1411 = vunpack.c.h.b16 %v391
    %v1412 = vunpack.c.l.b16 %v392
    %v1413 = vunpack.c.h.b16 %v392
    %v1414 = vunpack.c.l.b16 %v393
    %v1415 = vunpack.c.h.b16 %v393
    %v1416 = vunpack.c.l.b16 %v394
    %v1417 = vunpack.c.h.b16 %v394
    %v1418 = vunpack.c.l.b16 %v395
    %v1419 = vunpack.c.h.b16 %v395
    %v1420 = vunpack.c.l.b16 %v396
    %v1421 = vunpack.c.h.b16 %v396
    %v1422 = vunpack.c.l.b16 %v397
    %v1423 = vunpack.c.h.b16 %v397
    %v1424 = vunpack.c.l.b16 %v398
    %v1425 = vunpack.c.h.b16 %v398
    %v1426 = vunpack.c.l.b16 %v399
    %v1427 = vunpack.c.h.b16 %v399
    %v1428 = vunpack.c.l.b16 %v400
    %v1429 = vunpack.c.h.b16 %v400
    %v1430 = vunpack.c.l.b16 %v401
    %v1431 = vunpack.c.h.b16 %v401
    %v1432 = vunpack.c.l.b16 %v402
    %v1433 = vunpack.c.h.b16 %v402
    %v1434 = vunpack.c.l.b16 %v403
    %v1435 = vunpack.c.h.b16 %v403
    %v1436 = vunpack.c.l.b16 %v404
    %v1437 = vunpack.c.h.b16 %v404
    %v1438 = vunpack.c.l.b16 %v405
    %v1439 = vunpack.c.h.b16 %v405
    %v1440 = vunpack.c.l.b16 %v406
    %v1441 = vunpack.c.h.b16 %v406
    %v1442 = vunpack.c.l.b16 %v407
    %v1443 = vunpack.c.h.b16 %v407
    %v1444 = vunpack.c.l.b16 %v408
    %v1445 = vunpack.c.h.b16 %v408
    %v1446 = vunpack.c.l.b16 %v409
    %v1447 = vunpack.c.h.b16 %v409
    %v1448 = vunpack.c.l.b16 %v410
    %v1449 = vunpack.c.h.b16 %v410
    %v1450 = vunpack.c.l.b16 %v411
    %v1451 = vunpack.c.h.b16 %v411
    %v1452 = vunpack.c.l.b16 %v412
    %v1453 = vunpack.c.h.b16 %v412
    %v1454 = vunpack.c.l.b16 %v413
    %v1455 = vunpack.c.h.b16 %v413
    %v1456 = vunpack.c.l.b16 %v414
    %v1457 = vunpack.c.h.b16 %v414
    %v1458 = vunpack.c.l.b16 %v415
    %v1459 = vunpack.c.h.b16 %v415
    %v1460 = vunpack.c.l.b16 %v416
    %v1461 = vunpack.c.h.b16 %v416
    %v1462 = vunpack.c.l.b16 %v417
    %v1463 = vunpack.c.h.b16 %v417
    %v1464 = vunpack.c.l.b16 %v418
    %v1465 = vunpack.c.h.b16 %v418
    %v1466 = vunpack.c.l.b16 %v419
    %v1467 = vunpack.c.h.b16 %v419
    %v1468 = vunpack.c.l.b16 %v420
    %v1469 = vunpack.c.h.b16 %v420
    %v1470 = vunpack.c.l.b16 %v421
    %v1471 = vunpack.c.h.b16 %v421
    %v1472 = vunpack.c.l.b16 %v422
    %v1473 = vunpack.c.h.b16 %v422
    %v1474 = vunpack.c.l.b16 %v423
    %v1475 = vunpack.c.h.b16 %v423
    %v1476 = vunpack.c.l.b16 %v424
    %v1477 = vunpack.c.h.b16 %v424
    %v1478 = vunpack.c.l.b16 %v425
    %v1479 = vunpack.c.h.b16 %v425
    %v1480 = vunpack.c.l.b16 %v426
    %v1481 = vunpack.c.h.b16 %v426
    %v1482 = vunpack.c.l.b16 %v427
    %v1483 = vunpack.c.h.b16 %v427
    %v1484 = vunpack.c.l.b16 %v428
    %v1485 = vunpack.c.h.b16 %v428
    %v1486 = vunpack.c.l.b16 %v429
    %v1487 = vunpack.c.h.b16 %v429
    %v1488 = vunpack.c.l.b16 %v430
    %v1489 = vunpack.c.h.b16 %v430
    %v1490 = vunpack.c.l.b16 %v431
    %v1491 = vunpack.c.h.b16 %v431
    %v1492 = vunpack.c.l.b16 %v432
    %v1493 = vunpack.c.h.b16 %v432
    %v1494 = vunpack.c.l.b16 %v433
    %v1495 = vunpack.c.h.b16 %v433
    %v1496 = vunpack.c.l.b16 %v434
    %v1497 = vunpack.c.h.b16 %v434
    %v1498 = vunpack.c.l.b16 %v435
    %v1499 = vunpack.c.h.b16 %v435
    %v1500 = vunpack.c.l.b16 %v436
    %v1501 = vunpack.c.h.b16 %v436
    %v1502 = vunpack.c.l.b16 %v437
    %v1503 = vunpack.c.h.b16 %v437
    %v1504 = vunpack.c.l.b16 %v438
    %v1505 = vunpack.c.h.b16 %v438
    %v1506 = vunpack.c.l.b16 %v439
    %v1507 = vunpack.c.h.b16 %v439
    %v1508 = vunpack.c.l.b16 %v440
    %v1509 = vunpack.c.h.b16 %v440
    %v1510 = vunpack.c.l.b16 %v441
    %v1511 = vunpack.c.h.b16 %v441
    %v1512 = vunpack.c.l.b16 %v442
    %v1513 = vunpack.c.h.b16 %v442
    %v1514 = vunpack.c.l.b16 %v443
    %v1515 = vunpack.c.h.b16 %v443
    %v1516 = vunpack.c.l.b16 %v444
    %v1517 = vunpack.c.h.b16 %v444
    %v1518 = vunpack.c.l.b16 %v445
    %v1519 = vunpack.c.h.b16 %v445
    %v1520 = vunpack.c.l.b16 %v446
    %v1521 = vunpack.c.h.b16 %v446
    %v1522 = vunpack.c.l.b16 %v447
    %v1523 = vunpack.c.h.b16 %v447
    %v1524 = vunpack.c.l.b16 %v448
    %v1525 = vunpack.c.h.b16 %v448
    %v1526 = vunpack.c.l.b16 %v449
    %v1527 = vunpack.c.h.b16 %v449
    %v1528 = vunpack.c.l.b16 %v450
    %v1529 = vunpack.c.h.b16 %v450
    %v1530 = vunpack.c.l.b16 %v451
    %v1531 = vunpack.c.h.b16 %v451
    %v1532 = vunpack.c.l.b16 %v452
    %v1533 = vunpack.c.h.b16 %v452
    %v1534 = vunpack.c.l.b16 %v453
    %v1535 = vunpack.c.h.b16 %v453
    %v1536 = vunpack.c.l.b16 %v454
    %v1537 = vunpack.c.h.b16 %v454
    %v1538 = vunpack.c.l.b16 %v455
    %v1539 = vunpack.c.h.b16 %v455
    %v1540 = vunpack.c.l.b16 %v456
    %v1541 = vunpack.c.h.b16 %v456
    %v1542 = vunpack.c.l.b16 %v457
    %v1543 = vunpack.c.h.b16 %v457
    %v1544 = vunpack.c.l.b16 %v458
    %v1545 = vunpack.c.h.b16 %v458
    %v1546 = vunpack.c.l.b16 %v459
    %v1547 = vunpack.c.h.b16 %v459
    %v1548 = vunpack.c.l.b16 %v460
    %v1549 = vunpack.c.h.b16 %v460
    %v1550 = vunpack.c.l.b16 %v461
    %v1551 = vunpack.c.h.b16 %v461
    %v1552 = vunpack.c.l.b16 %v462
    %v1553 = vunpack.c.h.b16 %v462
    %v1554 = vunpack.c.l.b16 %v463
    %v1555 = vunpack.c.h.b16 %v463
    %v1556 = vunpack.c.l.b16 %v464
    %v1557 = vunpack.c.h.b16 %v464
    %v1558 = vunpack.c.l.b16 %v465
    %v1559 = vunpack.c.h.b16 %v465
    %v1560 = vunpack.c.l.b16 %v466
    %v1561 = vunpack.c.h.b16 %v466
    %v1562 = vunpack.c.l.b16 %v467
    %v1563 = vunpack.c.h.b16 %v467
    %v1564 = vunpack.c.l.b16 %v468
    %v1565 = vunpack.c.h.b16 %v468
    %v1566 = vunpack.c.l.b16 %v469
    %v1567 = vunpack.c.h.b16 %v469
    %v1568 = vunpack.c.l.b16 %v470
    %v1569 = vunpack.c.h.b16 %v470
    %v1570 = vunpack.c.l.b16 %v471
    %v1571 = vunpack.c.h.b16 %v471
    %v1572 = vunpack.c.l.b16 %v472
    %v1573 = vunpack.c.h.b16 %v472
    %v1574 = vunpack.c.l.b16 %v473
    %v1575 = vunpack.c.h.b16 %v473
    %v1576 = vunpack.c.l.b16 %v474
    %v1577 = vunpack.c.h.b16 %v474
    %v1578 = vunpack.c.l.b16 %v475
    %v1579 = vunpack.c.h.b16 %v475
    %v1580 = vunpack.c.l.b16 %v476
    %v1581 = vunpack.c.h.b16 %v476
    %v1582 = vunpack.c.l.b16 %v477
    %v1583 = vunpack.c.h.b16 %v477
    %v1584 = vunpack.c.l.b16 %v478
    %v1585 = vunpack.c.h.b16 %v478
    %v1586 = vunpack.c.l.b16 %v479
    %v1587 = vunpack.c.h.b16 %v479
    %v1588 = vunpack.c.l.b16 %v480
    %v1589 = vunpack.c.h.b16 %v480
    %v1590 = vunpack.c.l.b16 %v481
    %v1591 = vunpack.c.h.b16 %v481
    %v1592 = vunpack.c.l.b16 %v482
    %v1593 = vunpack.c.h.b16 %v482
    %v1594 = vunpack.c.l.b16 %v483
    %v1595 = vunpack.c.h.b16 %v483
    %v1596 = vunpack.c.l.b16 %v484
    %v1597 = vunpack.c.h.b16 %v484
    %v1598 = vunpack.c.l.b16 %v485
    %v1599 = vunpack.c.h.b16 %v485
    %v1600 = vunpack.c.l.b16 %v486
    %v1601 = vunpack.c.h.b16 %v486
    %v1602 = vunpack.c.l.b16 %v487
    %v1603 = vunpack.c.h.b16 %v487
    %v1604 = vunpack.c.l.b16 %v488
    %v1605 = vunpack.c.h.b16 %v488
    %v1606 = vunpack.c.l.b16 %v489
    %v1607 = vunpack.c.h.b16 %v489
    %v1608 = vunpack.c.l.b16 %v490
    %v1609 = vunpack.c.h.b16 %v490
    %v1610 = vunpack.c.l.b16 %v491
    %v1611 = vunpack.c.h.b16 %v491
    %v1612 = vunpack.c.l.b16 %v492
    %v1613 = vunpack.c.h.b16 %v492
    %v1614 = vunpack.c.l.b16 %v493
    %v1615 = vunpack.c.h.b16 %v493
    %v1616 = vunpack.c.l.b16 %v494
    %v1617 = vunpack.c.h.b16 %v494
    %v1618 = vunpack.c.l.b16 %v495
    %v1619 = vunpack.c.h.b16 %v495
    %v1620 = vunpack.c.l.b16 %v496
    %v1621 = vunpack.c.h.b16 %v496
    %v1622 = vunpack.c.l.b16 %v497
    %v1623 = vunpack.c.h.b16 %v497
    %v1624 = vunpack.c.l.b16 %v498
    %v1625 = vunpack.c.h.b16 %v498
    %v1626 = vunpack.c.l.b16 %v499
    %v1627 = vunpack.c.h.b16 %v499
    %v1628 = vunpack.c.l.b16 %v500
    %v1629 = vunpack.c.h.b16 %v500
    %v1630 = vunpack.c.l.b16 %v501
    %v1631 = vunpack.c.h.b16 %v501
    %v1632 = vunpack.c.l.b16 %v502
    %v1633 = vunpack.c.h.b16 %v502
    %v1634 = vunpack.c.l.b16 %v503
    %v1635 = vunpack.c.h.b16 %v503
    %v1636 = vunpack.c.l.b16 %v504
    %v1637 = vunpack.c.h.b16 %v504
    %v1638 = vunpack.c.l.b16 %v505
    %v1639 = vunpack.c.h.b16 %v505
    %v1640 = vunpack.c.l.b16 %v506
    %v1641 = vunpack.c.h.b16 %v506
    %v1642 = vunpack.c.l.b16 %v507
    %v1643 = vunpack.c.h.b16 %v507
    %v1644 = vunpack.c.l.b16 %v508
    %v1645 = vunpack.c.h.b16 %v508
    %v1646 = vunpack.c.l.b16 %v509
    %v1647 = vunpack.c.h.b16 %v509
    %v1648 = vunpack.c.l.b16 %v510
    %v1649 = vunpack.c.h.b16 %v510
    %v1650 = vunpack.c.l.b16 %v511
    %v1651 = vunpack.c.h.b16 %v511
    %v1652 = vunpack.c.l.b16 %v512
    %v1653 = vunpack.c.h.b16 %v512
    %v1654 = vunpack.c.l.b16 %v513
    %v1655 = vunpack.c.h.b16 %v513
    %v1656 = vunpack.c.l.b16 %v514
    %v1657 = vunpack.c.h.b16 %v514
    %v1658 = vunpack.c.l.b16 %v515
    %v1659 = vunpack.c.h.b16 %v515
    %v1660 = vunpack.c.l.b16 %v516
    %v1661 = vunpack.c.h.b16 %v516
    %v1662 = vunpack.c.l.b16 %v517
    %v1663 = vunpack.c.h.b16 %v517
    %v1664 = vunpack.c.l.b16 %v518
    %v1665 = vunpack.c.h.b16 %v518
    %v1666 = vunpack.c.l.b16 %v519
    %v1667 = vunpack.c.h.b16 %v519
    %v1668 = vunpack.c.l.b16 %v520
    %v1669 = vunpack.c.h.b16 %v520
    %v1670 = vunpack.c.l.b16 %v521
    %v1671 = vunpack.c.h.b16 %v521
    %v1672 = vunpack.c.l.b16 %v522
    %v1673 = vunpack.c.h.b16 %v522
    %v1674 = vunpack.c.l.b16 %v523
    %v1675 = vunpack.c.h.b16 %v523
    %v1676 = vunpack.c.l.b16 %v524
    %v1677 = vunpack.c.h.b16 %v524
    %v1678 = vunpack.c.l.b16 %v525
    %v1679 = vunpack.c.h.b16 %v525
    %v1680 = vunpack.c.l.b16 %v526
    %v1681 = vunpack.c.h.b16 %v526
    %v1682 = vunpack.c.l.b16 %v527
    %v1683 = vunpack.c.h.b16 %v527
    %v1684 = vunpack.c.l.b16 %v528
    %v1685 = vunpack.c.h.b16 %v528
    %v1686 = vunpack.c.l.b16 %v529
    %v1687 = vunpack.c.h.b16 %v529
    %v1688 = vunpack.c.l.b16 %v530
    %v1689 = vunpack.c.h.b16 %v530
    %v1690 = vunpack.c.l.b16 %v531
    %v1691 = vunpack.c.h.b16 %v531
    %v1692 = vunpack.c.l.b16 %v532
    %v1693 = vunpack.c.h.b16 %v532
    %v1694 = vunpack.c.l.b16 %v533
    %v1695 = vunpack.c.h.b16 %v533
    %v1696 = vunpack.c.l.b16 %v534
    %v1697 = vunpack.c.h.b16 %v534
    %v1698 = vunpack.c.l.b16 %v535
    %v1699 = vunpack.c.h.b16 %v535
    %v1700 = vunpack.c.l.b16 %v536
    %v1701 = vunpack.c.h.b16 %v536
    %v1702 = vunpack.c.l.b16 %v537
    %v1703 = vunpack.c.h.b16 %v537
    %v1704 = vunpack.c.l.b16 %v538
    %v1705 = vunpack.c.h.b16 %v538
    %v1706 = vunpack.c.l.b16 %v539
    %v1707 = vunpack.c.h.b16 %v539
    %v1708 = vunpack.c.l.b16 %v540
    %v1709 = vunpack.c.h.b16 %v540
    %v1710 = vunpack.c.l.b16 %v541
    %v1711 = vunpack.c.h.b16 %v541
    %v1712 = vunpack.c.l.b16 %v542
    %v1713 = vunpack.c.h.b16 %v542
    %v1714 = vunpack.c.l.b16 %v543
    %v1715 = vunpack.c.h.b16 %v543
    %v1716 = vunpack.c.l.b16 %v544
    %v1717 = vunpack.c.h.b16 %v544
    %v1718 = vunpack.c.l.b16 %v545
    %v1719 = vunpack.c.h.b16 %v545
    %v1720 = vunpack.c.l.b16 %v546
    %v1721 = vunpack.c.h.b16 %v546
    %v1722 = vunpack.c.l.b16 %v547
    %v1723 = vunpack.c.h.b16 %v547
    %v1724 = vunpack.c.l.b16 %v548
    %v1725 = vunpack.c.h.b16 %v548
    %v1726 = vunpack.c.l.b16 %v549
    %v1727 = vunpack.c.h.b16 %v549
    %v1728 = vunpack.c.l.b16 %v550
    %v1729 = vunpack.c.h.b16 %v550
    %v1730 = vunpack.c.l.b16 %v551
    %v1731 = vunpack.c.h.b16 %v551
    %v1732 = vunpack.c.l.b16 %v552
    %v1733 = vunpack.c.h.b16 %v552
    %v1734 = vunpack.c.l.b16 %v553
    %v1735 = vunpack.c.h.b16 %v553
    %v1736 = vunpack.c.l.b16 %v554
    %v1737 = vunpack.c.h.b16 %v554
    %v1738 = vunpack.c.l.b16 %v555
    %v1739 = vunpack.c.h.b16 %v555
    %v1740 = vunpack.c.l.b16 %v556
    %v1741 = vunpack.c.h.b16 %v556
    %v1742 = vunpack.c.l.b16 %v557
    %v1743 = vunpack.c.h.b16 %v557
    %v1744 = vunpack.c.l.b16 %v558
    %v1745 = vunpack.c.h.b16 %v558
    %v1746 = vunpack.c.l.b16 %v559
    %v1747 = vunpack.c.h.b16 %v559
    %v1748 = vunpack.c.l.b16 %v560
    %v1749 = vunpack.c.h.b16 %v560
    %v1750 = vunpack.c.l.b16 %v561
    %v1751 = vunpack.c.h.b16 %v561
    %v1752 = vunpack.c.l.b16 %v562
    %v1753 = vunpack.c.h.b16 %v562
    %v1754 = vunpack.c.l.b16 %v563
    %v1755 = vunpack.c.h.b16 %v563
    %v1756 = vunpack.c.l.b16 %v564
    %v1757 = vunpack.c.h.b16 %v564
    %v1758 = vunpack.c.l.b16 %v565
    %v1759 = vunpack.c.h.b16 %v565
    %v1760 = vunpack.c.l.b16 %v566
    %v1761 = vunpack.c.h.b16 %v566
    %v1762 = vunpack.c.l.b16 %v567
    %v1763 = vunpack.c.h.b16 %v567
    %v1764 = vunpack.c.l.b16 %v568
    %v1765 = vunpack.c.h.b16 %v568
    %v1766 = vunpack.c.l.b16 %v569
    %v1767 = vunpack.c.h.b16 %v569
    %v1768 = vunpack.c.l.b16 %v570
    %v1769 = vunpack.c.h.b16 %v570
    %v1770 = vunpack.c.l.b16 %v571
    %v1771 = vunpack.c.h.b16 %v571
    %v1772 = vunpack.c.l.b16 %v572
    %v1773 = vunpack.c.h.b16 %v572
    %v1774 = vunpack.c.l.b16 %v573
    %v1775 = vunpack.c.h.b16 %v573
    %v1776 = vunpack.c.l.b16 %v574
    %v1777 = vunpack.c.h.b16 %v574
    %v1778 = vunpack.c.l.b16 %v575
    %v1779 = vunpack.c.h.b16 %v575
    %v1780 = vunpack.c.l.b16 %v576
    %v1781 = vunpack.c.h.b16 %v576
    %v1782 = vunpack.c.l.b16 %v577
    %v1783 = vunpack.c.h.b16 %v577
    %v1784 = vunpack.c.l.b16 %v578
    %v1785 = vunpack.c.h.b16 %v578
    %v1786 = vunpack.c.l.b16 %v579
    %v1787 = vunpack.c.h.b16 %v579
    %v1788 = vunpack.c.l.b16 %v580
    %v1789 = vunpack.c.h.b16 %v580
    %v1790 = vunpack.c.l.b16 %v581
    %v1791 = vunpack.c.h.b16 %v581
    %v1792 = vunpack.c.l.b16 %v582
    %v1793 = vunpack.c.h.b16 %v582
    %v1794 = vunpack.c.l.b16 %v583
    %v1795 = vunpack.c.h.b16 %v583
    %v1796 = vunpack.c.l.b16 %v584
    %v1797 = vunpack.c.h.b16 %v584
    %v1798 = vunpack.c.l.b16 %v585
    %v1799 = vunpack.c.h.b16 %v585
    %v1800 = vunpack.c.l.b16 %v586
    %v1801 = vunpack.c.h.b16 %v586
    %v1802 = vunpack.c.l.b16 %v587
    %v1803 = vunpack.c.h.b16 %v587
    %v1804 = vunpack.c.l.b16 %v588
    %v1805 = vunpack.c.h.b16 %v588
    %v1806 = vunpack.c.l.b16 %v589
    %v1807 = vunpack.c.h.b16 %v589
    %v1808 = vunpack.c.l.b16 %v590
    %v1809 = vunpack.c.h.b16 %v590
    %v1810 = vunpack.c.l.b16 %v591
    %v1811 = vunpack.c.h.b16 %v591
    %v1812 = vunpack.c.l.b16 %v592
    %v1813 = vunpack.c.h.b16 %v592
    %v1814 = vunpack.c.l.b16 %v593
    %v1815 = vunpack.c.h.b16 %v593
    %v1816 = vpack.c.b16 %v1020, %v1016
    %v1817 = vpack.c.b16 %v1021, %v1017
    %v1818 = vpack.c.b16 %v1022, %v1018
    %v1819 = vpack.c.b16 %v1023, %v1019
    %v1820 = vpack.c.b16 %v1028, %v1024
    %v1821 = vpack.c.b16 %v1029, %v1025
    %v1822 = vpack.c.b16 %v1030, %v1026
    %v1823 = vpack.c.b16 %v1031, %v1027
    %v1824 = vpack.c.b16 %v1036, %v1032
    %v1825 = vpack.c.b16 %v1037, %v1033
    %v1826 = vpack.c.b16 %v1038, %v1034
    %v1827 = vpack.c.b16 %v1039, %v1035
    %v1828 = vpack.c.b16 %v1044, %v1040
    %v1829 = vpack.c.b16 %v1045, %v1041
    %v1830 = vpack.c.b16 %v1046, %v1042
    %v1831 = vpack.c.b16 %v1047, %v1043
    %v1832 = vpack.c.b16 %v1052, %v1048
    %v1833 = vpack.c.b16 %v1053, %v1049
    %v1834 = vpack.c.b16 %v1054, %v1050
    %v1835 = vpack.c.b16 %v1055, %v1051
    %v1836 = vpack.c.b16 %v1060, %v1056
    %v1837 = vpack.c.b16 %v1061, %v1057
    %v1838 = vpack.c.b16 %v1062, %v1058
    %v1839 = vpack.c.b16 %v1063, %v1059
    %v1840 = vpack.c.b16 %v1068, %v1064
    %v1841 = vpack.c.b16 %v1069, %v1065
    %v1842 = vpack.c.b16 %v1070, %v1066
    %v1843 = vpack.c.b16 %v1071, %v1067
    %v1844 = vpack.c.b16 %v1076, %v1072
    %v1845 = vpack.c.b16 %v1077, %v1073
    %v1846 = vpack.c.b16 %v1078, %v1074
    %v1847 = vpack.c.b16 %v1079, %v1075
    %v1848 = vpack.c.b16 %v1084, %v1080
    %v1849 = vpack.c.b16 %v1085, %v1081
    %v1850 = vpack.c.b16 %v1086, %v1082
    %v1851 = vpack.c.b16 %v1087, %v1083
    %v1852 = vpack.c.b16 %v1092, %v1088
    %v1853 = vpack.c.b16 %v1093, %v1089
    %v1854 = vpack.c.b16 %v1094, %v1090
    %v1855 = vpack.c.b16 %v1095, %v1091
    %v1856 = vpack.c.b16 %v1100, %v1096
    %v1857 = vpack.c.b16 %v1101, %v1097
    %v1858 = vpack.c.b16 %v1102, %v1098
    %v1859 = vpack.c.b16 %v1103, %v1099
    %v1860 = vpack.c.b16 %v1108, %v1104
    %v1861 = vpack.c.b16 %v1109, %v1105
    %v1862 = vpack.c.b16 %v1110, %v1106
    %v1863 = vpack.c.b16 %v1111, %v1107
    %v1864 = vpack.c.b16 %v1116, %v1112
    %v1865 = vpack.c.b16 %v1117, %v1113
    %v1866 = vpack.c.b16 %v1118, %v1114
    %v1867 = vpack.c.b16 %v1119, %v1115
    %v1868 = vpack.c.b16 %v1124, %v1120
    %v1869 = vpack.c.b16 %v1125, %v1121
    %v1870 = vpack.c.b16 %v1126, %v1122
    %v1871 = vpack.c.b16 %v1127, %v1123
    %v1872 = vpack.c.b16 %v1132, %v1128
    %v1873 = vpack.c.b16 %v1133, %v1129
    %v1874 = vpack.c.b16 %v1134, %v1130
    %v1875 = vpack.c.b16 %v1135, %v1131
    %v1876 = vpack.c.b16 %v1140, %v1136
    %v1877 = vpack.c.b16 %v1141, %v1137
    %v1878 = vpack.c.b16 %v1142, %v1138
    %v1879 = vpack.c.b16 %v1143, %v1139
    %v1880 = vpack.c.b16 %v1148, %v1144
    %v1881 = vpack.c.b16 %v1149, %v1145
    %v1882 = vpack.c.b16 %v1150, %v1146
    %v1883 = vpack.c.b16 %v1151, %v1147
    %v1884 = vpack.c.b16 %v1156, %v1152
    %v1885 = vpack.c.b16 %v1157, %v1153
    %v1886 = vpack.c.b16 %v1158, %v1154
    %v1887 = vpack.c.b16 %v1159, %v1155
    %v1888 = vpack.c.b16 %v1164, %v1160
    %v1889 = vpack.c.b16 %v1165, %v1161
    %v1890 = vpack.c.b16 %v1166, %v1162
    %v1891 = vpack.c.b16 %v1167, %v1163
    %v1892 = vpack.c.b16 %v1172, %v1168
    %v1893 = vpack.c.b16 %v1173, %v1169
    %v1894 = vpack.c.b16 %v1174, %v1170
    %v1895 = vpack.c.b16 %v1175, %v1171
    %v1896 = vpack.c.b16 %v1180, %v1176
    %v1897 = vpack.c.b16 %v1181, %v1177
    %v1898 = vpack.c.b16 %v1182, %v1178
    %v1899 = vpack.c.b16 %v1183, %v1179
    %v1900 = vpack.c.b16 %v1188, %v1184
    %v1901 = vpack.c.b16 %v1189, %v1185
    %v1902 = vpack.c.b16 %v1190, %v1186
    %v1903 = vpack.c.b16 %v1191, %v1187
    %v1904 = vpack.c.b16 %v1196, %v1192
    %v1905 = vpack.c.b16 %v1197, %v1193
    %v1906 = vpack.c.b16 %v1198, %v1194
    %v1907 = vpack.c.b16 %v1199, %v1195
    %v1908 = vpack.c.b16 %v1204, %v1200
    %v1909 = vpack.c.b16 %v1205, %v1201
    %v1910 = vpack.c.b16 %v1206, %v1202
    %v1911 = vpack.c.b16 %v1207, %v1203
    %v1912 = vpack.c.b16 %v1212, %v1208
    %v1913 = vpack.c.b16 %v1213, %v1209
    %v1914 = vpack.c.b16 %v1214, %v1210
    %v1915 = vpack.c.b16 %v1215, %v1211
    %v1916 = vpack.c.b16 %v1220, %v1216
    %v1917 = vpack.c.b16 %v1221, %v1217
    %v1918 = vpack.c.b16 %v1222, %v1218
    %v1919 = vpack.c.b16 %v1223, %v1219
    %v1920 = vpack.c.b16 %v1228, %v1224
    %v1921 = vpack.c.b16 %v1229, %v1225
    %v1922 = vpack.c.b16 %v1230, %v1226
    %v1923 = vpack.c.b16 %v1231, %v1227
    %v1924 = vpack.c.b16 %v1236, %v1232
    %v1925 = vpack.c.b16 %v1237, %v1233
    %v1926 = vpack.c.b16 %v1238, %v1234
    %v1927 = vpack.c.b16 %v1239, %v1235
    %v1928 = vpack.c.b16 %v1244, %v1240
    %v1929 = vpack.c.b16 %v1245, %v1241
    %v1930 = vpack.c.b16 %v1246, %v1242
    %v1931 = vpack.c.b16 %v1247, %v1243
    %v1932 = vpack.c.b16 %v1252, %v1248
    %v1933 = vpack.c.b16 %v1253, %v1249
    %v1934 = vpack.c.b16 %v1254, %v1250
    %v1935 = vpack.c.b16 %v1255, %v1251
    %v1936 = vpack.c.b16 %v1260, %v1256
    %v1937 = vpack.c.b16 %v1261, %v1257
    %v1938 = vpack.c.b16 %v1262, %v1258
    %v1939 = vpack.c.b16 %v1263, %v1259
    %v1940 = vpack.c.b16 %v1268, %v1264
    %v1941 = vpack.c.b16 %v1269, %v1265
    %v1942 = vpack.c.b16 %v1270, %v1266
    %v1943 = vpack.c.b16 %v1271, %v1267
    %v1944 = vpack.c.b16 %v1276, %v1272
    %v1945 = vpack.c.b16 %v1277, %v1273
    %v1946 = vpack.c.b16 %v1278, %v1274
    %v1947 = vpack.c.b16 %v1279, %v1275
    %v1948 = vpack.c.b16 %v1284, %v1280
    %v1949 = vpack.c.b16 %v1285, %v1281
    %v1950 = vpack.c.b16 %v1286, %v1282
    %v1951 = vpack.c.b16 %v1287, %v1283
    %v1952 = vpack.c.b16 %v1292, %v1288
    %v1953 = vpack.c.b16 %v1293, %v1289
    %v1954 = vpack.c.b16 %v1294, %v1290
    %v1955 = vpack.c.b16 %v1295, %v1291
    %v1956 = vpack.c.b16 %v1300, %v1296
    %v1957 = vpack.c.b16 %v1301, %v1297
    %v1958 = vpack.c.b16 %v1302, %v1298
    %v1959 = vpack.c.b16 %v1303, %v1299
    %v1960 = vpack.c.b16 %v1308, %v1304
    %v1961 = vpack.c.b16 %v1309, %v1305
    %v1962 = vpack.c.b16 %v1310, %v1306
    %v1963 = vpack.c.b16 %v1311, %v1307
    %v1964 = vpack.c.b16 %v1316, %v1312
    %v1965 = vpack.c.b16 %v1317, %v1313
    %v1966 = vpack.c.b16 %v1318, %v1314
    %v1967 = vpack.c.b16 %v1319, %v1315
    %v1968 = vpack.c.b16 %v1324, %v1320
    %v1969 = vpack.c.b16 %v1325, %v1321
    %v1970 = vpack.c.b16 %v1326, %v1322
    %v1971 = vpack.c.b16 %v1327, %v1323
    %v1972 = vpack.c.b16 %v1332, %v1328
    %v1973 = vpack.c.b16 %v1333, %v1329
    %v1974 = vpack.c.b16 %v1334, %v1330
    %v1975 = vpack.c.b16 %v1335, %v1331
    %v1976 = vpack.c.b16 %v1340, %v1336
    %v1977 = vpack.c.b16 %v1341, %v1337
    %v1978 = vpack.c.b16 %v1342, %v1338
    %v1979 = vpack.c.b16 %v1343, %v1339
    %v1980 = vpack.c.b16 %v1348, %v1344
    %v1981 = vpack.c.b16 %v1349, %v1345
    %v1982 = vpack.c.b16 %v1350, %v1346
    %v1983 = vpack.c.b16 %v1351, %v1347
    %v1984 = vpack.c.b16 %v1356, %v1352
    %v1985 = vpack.c.b16 %v1357, %v1353
    %v1986 = vpack.c.b16 %v1358, %v1354
    %v1987 = vpack.c.b16 %v1359, %v1355
    %v1988 = vpack.c.b16 %v1364, %v1360
    %v1989 = vpack.c.b16 %v1365, %v1361
    %v1990 = vpack.c.b16 %v1366, %v1362
    %v1991 = vpack.c.b16 %v1367, %v1363
    %v1992 = vpack.c.b16 %v1372, %v1368
    %v1993 = vpack.c.b16 %v1373, %v1369
    %v1994 = vpack.c.b16 %v1374, %v1370
    %v1995 = vpack.c.b16 %v1375, %v1371
    %v1996 = vpack.c.b16 %v1380, %v1376
    %v1997 = vpack.c.b16 %v1381, %v1377
    %v1998 = vpack.c.b16 %v1382, %v1378
    %v1999 = vpack.c.b16 %v1383, %v1379
    %v2000 = vpack.c.b16 %v1388, %v1384
    %v2001 = vpack.c.b16 %v1389, %v1385
    %v2002 = vpack.c.b16 %v1390, %v1386
    %v2003 = vpack.c.b16 %v1391, %v1387
    %v2004 = vpack.c.b16 %v1396, %v1392
    %v2005 = vpack.c.b16 %v1397, %v1393
    %v2006 = vpack.c.b16 %v1398, %v1394
    %v2007 = vpack.c.b16 %v1399, %v1395
    %v2008 = vpack.c.b16 %v1404, %v1400
    %v2009 = vpack.c.b16 %v1405, %v1401
    %v2010 = vpack.c.b16 %v1406, %v1402
    %v2011 = vpack.c.b16 %v1407, %v1403
    %v2012 = vpack.c.b16 %v1412, %v1408
    %v2013 = vpack.c.b16 %v1413, %v1409
    %v2014 = vpack.c.b16 %v1414, %v1410
    %v2015 = vpack.c.b16 %v1415, %v1411
    %v2016 = vpack.c.b16 %v1420, %v1416
    %v2017 = vpack.c.b16 %v1421, %v1417
    %v2018 = vpack.c.b16 %v1422, %v1418
    %v2019 = vpack.c.b16 %v1423, %v1419
    %v2020 = vpack.c.b16 %v1428, %v1424
    %v2021 = vpack.c.b16 %v1429, %v1425
    %v2022 = vpack.c.b16 %v1430, %v1426
    %v2023 = vpack.c.b16 %v1431, %v1427
    %v2024 = vpack.c.b16 %v1436, %v1432
    %v2025 = vpack.c.b16 %v1437, %v1433
    %v2026 = vpack.c.b16 %v1438, %v1434
    %v2027 = vpack.c.b16 %v1439, %v1435
    %v2028 = vpack.c.b16 %v1444, %v1440
    %v2029 = vpack.c.b16 %v1445, %v1441
    %v2030 = vpack.c.b16 %v1446, %v1442
    %v2031 = vpack.c.b16 %v1447, %v1443
    %v2032 = vpack.c.b16 %v1452, %v1448
    %v2033 = vpack.c.b16 %v1453, %v1449
    %v2034 = vpack.c.b16 %v1454, %v1450
    %v2035 = vpack.c.b16 %v1455, %v1451
    %v2036 = vpack.c.b16 %v1460, %v1456
    %v2037 = vpack.c.b16 %v1461, %v1457
    %v2038 = vpack.c.b16 %v1462, %v1458
    %v2039 = vpack.c.b16 %v1463, %v1459
    %v2040 = vpack.c.b16 %v1468, %v1464
    %v2041 = vpack.c.b16 %v1469, %v1465
    %v2042 = vpack.c.b16 %v1470, %v1466
    %v2043 = vpack.c.b16 %v1471, %v1467
    %v2044 = vpack.c.b16 %v1476, %v1472
    %v2045 = vpack.c.b16 %v1477, %v1473
    %v2046 = vpack.c.b16 %v1478, %v1474
    %v2047 = vpack.c.b16 %v1479, %v1475
    %v2048 = vpack.c.b16 %v1484, %v1480
    %v2049 = vpack.c.b16 %v1485, %v1481
    %v2050 = vpack.c.b16 %v1486, %v1482
    %v2051 = vpack.c.b16 %v1487, %v1483
    %v2052 = vpack.c.b16 %v1492, %v1488
    %v2053 = vpack.c.b16 %v1493, %v1489
    %v2054 = vpack.c.b16 %v1494, %v1490
    %v2055 = vpack.c.b16 %v1495, %v1491
    %v2056 = vpack.c.b16 %v1500, %v1496
    %v2057 = vpack.c.b16 %v1501, %v1497
    %v2058 = vpack.c.b16 %v1502, %v1498
    %v2059 = vpack.c.b16 %v1503, %v1499
    %v2060 = vpack.c.b16 %v1508, %v1504
    %v2061 = vpack.c.b16 %v1509, %v1505
    %v2062 = vpack.c.b16 %v1510, %v1506
    %v2063 = vpack.c.b16 %v1511, %v1507
    %v2064 = vpack.c.b16 %v1516, %v1512
    %v2065 = vpack.c.b16 %v1517, %v1513
    %v2066 = vpack.c.b16 %v1518, %v1514
    %v2067 = vpack.c.b16 %v1519, %v1515
    %v2068 = vpack.c.b16 %v1524, %v1520
    %v2069 = vpack.c.b16 %v1525, %v1521
    %v2070 = vpack.c.b16 %v1526, %v1522
    %v2071 = vpack.c.b16 %v1527, %v1523
    %v2072 = vpack.c.b16 %v1532, %v1528
    %v2073 = vpack.c.b16 %v1533, %v1529
    %v2074 = vpack.c.b16 %v1534, %v1530
    %v2075 = vpack.c.b16 %v1535, %v1531
    %v2076 = vpack.c.b16 %v1540, %v1536
    %v2077 = vpack.c.b16 %v1541, %v1537
    %v2078 = vpack.c.b16 %v1542, %v1538
    %v2079 = vpack.c.b16 %v1543, %v1539
    %v2080 = vpack.c.b16 %v1548, %v1544
    %v2081 = vpack.c.b16 %v1549, %v1545
    %v2082 = vpack.c.b16 %v1550, %v1546
    %v2083 = vpack.c.b16 %v1551, %v1547
    %v2084 = vpack.c.b16 %v1556, %v1552
    %v2085 = vpack.c.b16 %v1557, %v1553
    %v2086 = vpack.c.b16 %v1558, %v1554
    %v2087 = vpack.c.b16 %v1559, %v1555
    %v2088 = vpack.c.b16 %v1564, %v1560
    %v2089 = vpack.c.b16 %v1565, %v1561
    %v2090 = vpack.c.b16 %v1566, %v1562
    %v2091 = vpack.c.b16 %v1567, %v1563
    %v2092 = vpack.c.b16 %v1572, %v1568
    %v2093 = vpack.c.b16 %v1573, %v1569
    %v2094 = vpack.c.b16 %v1574, %v1570
    %v2095 = vpack.c.b16 %v1575, %v1571
    %v2096 = vpack.c.b16 %v1580, %v1576
    %v2097 = vpack.c.b16 %v1581, %v1577
    %v2098 = vpack.c.b16 %v1582, %v1578
    %v2099 = vpack.c.b16 %v1583, %v1579
    %v2100 = vpack.c.b16 %v1588, %v1584
    %v2101 = vpack.c.b16 %v1589, %v1585
    %v2102 = vpack.c.b16 %v1590, %v1586
    %v2103 = vpack.c.b16 %v1591, %v1587
    %v2104 = vpack.c.b16 %v1596, %v1592
    %v2105 = vpack.c.b16 %v1597, %v1593
    %v2106 = vpack.c.b16 %v1598, %v1594
    %v2107 = vpack.c.b16 %v1599, %v1595
    %v2108 = vpack.c.b16 %v1604, %v1600
    %v2109 = vpack.c.b16 %v1605, %v1601
    %v2110 = vpack.c.b16 %v1606, %v1602
    %v2111 = vpack.c.b16 %v1607, %v1603
    %v2112 = vpack.c.b16 %v1612, %v1608
    %v2113 = vpack.c.b16 %v1613, %v1609
    %v2114 = vpack.c.b16 %v1614, %v1610
    %v2115 = vpack.c.b16 %v1615, %v1611
    %v2116 = vpack.c.b16 %v1620, %v1616
    %v2117 = vpack.c.b16 %v1621, %v1617
    %v2118 = vpack.c.b16 %v1622, %v1618
    %v2119 = vpack.c.b16 %v1623, %v1619
    %v2120 = vpack.c.b16 %v1628, %v1624
    %v2121 = vpack.c.b16 %v1629, %v1625
    %v2122 = vpack.c.b16 %v1630, %v1626
    %v2123 = vpack.c.b16 %v1631, %v1627
    %v2124 = vpack.c.b16 %v1636, %v1632
    %v2125 = vpack.c.b16 %v1637, %v1633
    %v2126 = vpack.c.b16 %v1638, %v1634
    %v2127 = vpack.c.b16 %v1639, %v1635
    %v2128 = vpack.c.b16 %v1644, %v1640
    %v2129 = vpack.c.b16 %v1645, %v1641
    %v2130 = vpack.c.b16 %v1646, %v1642
    %v2131 = vpack.c.b16 %v1647, %v1643
    %v2132 = vpack.c.b16 %v1652, %v1648
    %v2133 = vpack.c.b16 %v1653, %v1649
    %v2134 = vpack.c.b16 %v1654, %v1650
    %v2135 = vpack.c.b16 %v1655, %v1651
    %v2136 = vpack.c.b16 %v1660, %v1656
    %v2137 = vpack.c.b16 %v1661, %v1657
    %v2138 = vpack.c.b16 %v1662, %v1658
    %v2139 = vpack.c.b16 %v1663, %v1659
    %v2140 = vpack.c.b16 %v1668, %v1664
    %v2141 = vpack.c.b16 %v1669, %v1665
    %v2142 = vpack.c.b16 %v1670, %v1666
    %v2143 = vpack.c.b16 %v1671, %v1667
    %v2144 = vpack.c.b16 %v1676, %v1672
    %v2145 = vpack.c.b16 %v1677, %v1673
    %v2146 = vpack.c.b16 %v1678, %v1674
    %v2147 = vpack.c.b16 %v1679, %v1675
    %v2148 = vpack.c.b16 %v1684, %v1680
    %v2149 = vpack.c.b16 %v1685, %v1681
    %v2150 = vpack.c.b16 %v1686, %v1682
    %v2151 = vpack.c.b16 %v1687, %v1683
    %v2152 = vpack.c.b16 %v1692, %v1688
    %v2153 = vpack.c.b16 %v1693, %v1689
    %v2154 = vpack.c.b16 %v1694, %v1690
    %v2155 = vpack.c.b16 %v1695, %v1691
    %v2156 = vpack.c.b16 %v1700, %v1696
    %v2157 = vpack.c.b16 %v1701, %v1697
    %v2158 = vpack.c.b16 %v1702, %v1698
    %v2159 = vpack.c.b16 %v1703, %v1699
    %v2160 = vpack.c.b16 %v1708, %v1704
    %v2161 = vpack.c.b16 %v1709, %v1705
    %v2162 = vpack.c.b16 %v1710, %v1706
    %v2163 = vpack.c.b16 %v1711, %v1707
    %v2164 = vpack.c.b16 %v1716, %v1712
    %v2165 = vpack.c.b16 %v1717, %v1713
    %v2166 = vpack.c.b16 %v1718, %v1714
    %v2167 = vpack.c.b16 %v1719, %v1715
    %v2168 = vpack.c.b16 %v1724, %v1720
    %v2169 = vpack.c.b16 %v1725, %v1721
    %v2170 = vpack.c.b16 %v1726, %v1722
    %v2171 = vpack.c.b16 %v1727, %v1723
    %v2172 = vpack.c.b16 %v1732, %v1728
    %v2173 = vpack.c.b16 %v1733, %v1729
    %v2174 = vpack.c.b16 %v1734, %v1730
    %v2175 = vpack.c.b16 %v1735, %v1731
    %v2176 = vpack.c.b16 %v1740, %v1736
    %v2177 = vpack.c.b16 %v1741, %v1737
    %v2178 = vpack.c.b16 %v1742, %v1738
    %v2179 = vpack.c.b16 %v1743, %v1739
    %v2180 = vpack.c.b16 %v1748, %v1744
    %v2181 = vpack.c.b16 %v1749, %v1745
    %v2182 = vpack.c.b16 %v1750, %v1746
    %v2183 = vpack.c.b16 %v1751, %v1747
    %v2184 = vpack.c.b16 %v1756, %v1752
    %v2185 = vpack.c.b16 %v1757, %v1753
    %v2186 = vpack.c.b16 %v1758, %v1754
    %v2187 = vpack.c.b16 %v1759, %v1755
    %v2188 = vpack.c.b16 %v1764, %v1760
    %v2189 = vpack.c.b16 %v1765, %v1761
    %v2190 = vpack.c.b16 %v1766, %v1762
    %v2191 = vpack.c.b16 %v1767, %v1763
    %v2192 = vpack.c.b16 %v1772, %v1768
    %v2193 = vpack.c.b16 %v1773, %v1769
    %v2194 = vpack.c.b16 %v1774, %v1770
    %v2195 = vpack.c.b16 %v1775, %v1771
    %v2196 = vpack.c.b16 %v1780, %v1776
    %v2197 = vpack.c.b16 %v1781, %v1777
    %v2198 = vpack.c.b16 %v1782, %v1778
    %v2199 = vpack.c.b16 %v1783, %v1779
    %v2200 = vpack.c.b16 %v1788, %v1784
    %v2201 = vpack.c.b16 %v1789, %v1785
    %v2202 = vpack.c.b16 %v1790, %v1786
    %v2203 = vpack.c.b16 %v1791, %v1787
    %v2204 = vpack.c.b16 %v1796, %v1792
    %v2205 = vpack.c.b16 %v1797, %v1793
    %v2206 = vpack.c.b16 %v1798, %v1794
    %v2207 = vpack.c.b16 %v1799, %v1795
    %v2208 = vpack.c.b16 %v1804, %v1800
    %v2209 = vpack.c.b16 %v1805, %v1801
    %v2210 = vpack.c.b16 %v1806, %v1802
    %v2211 = vpack.c.b16 %v1807, %v1803
    %v2212 = vpack.c.b16 %v1812, %v1808
    %v2213 = vpack.c.b16 %v1813, %v1809
    %v2214 = vpack.c.b16 %v1814, %v1810
    %v2215 = vpack.c.b16 %v1815, %v1811
    %vm2616 = vcmask 523264
    %v2618 = vsel %vm2616, %v193, 0
    %2620 = vmatprep.subr.bf16.mxu0 %v1845
    %2621 = vmatpush1.bf16.msra.mxu0 %v1844
    %2622 = vmatprep.subr.bf16.mxu0 %v1841
    %2623 = vmatpush1.bf16.msra.mxu0 %v1840
    %2624 = vmatprep.subr.bf16.mxu0 %v1837
    %2625 = vmatpush1.bf16.msra.mxu0 %v1836
    %2626 = vmatprep.subr.bf16.mxu0 %v1833
    %2627 = vmatpush1.bf16.msra.mxu0 %v1832
    %2628 = vmatprep.subr.bf16.mxu0 %v1829
    %2629 = vmatpush1.bf16.msra.mxu0 %v1828
    %2630 = vmatprep.subr.bf16.mxu0 %v1825
    %2631 = vmatpush1.bf16.msra.mxu0 %v1824
    %2632 = vmatprep.subr.bf16.mxu0 %v1821
    %2633 = vmatpush1.bf16.msra.mxu0 %v1820
    %2634 = vmatprep.subr.bf16.mxu0 %v1817
    %2635 = vmatpush1.bf16.msra.mxu0 %v1816
    %2636 = vmatprep.subr.bf16.mxu0 %v1877
    %2637 = vmatpush2.bf16.msra.mxu0 %v1876
    %2638 = vmatprep.subr.bf16.mxu0 %v1873
    %2639 = vmatpush2.bf16.msra.mxu0 %v1872
    %2640 = vmatprep.subr.bf16.mxu0 %v1869
    %2641 = vmatpush2.bf16.msra.mxu0 %v1868
    %2642 = vmatprep.subr.bf16.mxu0 %v1865
    %2643 = vmatpush2.bf16.msra.mxu0 %v1864
    %2644 = vmatprep.subr.bf16.mxu0 %v1861
    %2645 = vmatpush2.bf16.msra.mxu0 %v1860
    %2646 = vmatprep.subr.bf16.mxu0 %v1857
    %2647 = vmatpush2.bf16.msra.mxu0 %v1856
    %2648 = vmatprep.subr.bf16.mxu0 %v1853
    %2649 = vmatpush2.bf16.msra.mxu0 %v1852
    %2650 = vmatprep.subr.bf16.mxu0 %v1849
    %2651 = vmatpush2.bf16.msra.mxu0 %v1848
    %2652 = vmatprep.mubr.bf16.mxu0 %v182
    %2653 = vmatmul.mubr.bf16.gmra.mxu0 %v181
    %v2654 = vpop.f32.mrf.mxu0
    %v2655 = vadd.f32 %v599, %v2654
    %v2656 = vpop.f32.mrf.mxu0
    %v2657 = vadd.f32 %v603, %v2656
    %v2658 = vpop.f32.mrf.mxu0
    %v2659 = vpop.f32.mrf.mxu0
    %2660 = vdwg.mxu0
    %2661 = vmatprep.subr.bf16.mxu0 %v1909
    %2662 = vmatpush1.bf16.msra.mxu0 %v1908
    %2663 = vmatprep.subr.bf16.mxu0 %v1905
    %2664 = vmatpush1.bf16.msra.mxu0 %v1904
    %2665 = vmatprep.subr.bf16.mxu0 %v1901
    %2666 = vmatpush1.bf16.msra.mxu0 %v1900
    %2667 = vmatprep.subr.bf16.mxu0 %v1897
    %2668 = vmatpush1.bf16.msra.mxu0 %v1896
    %2669 = vmatprep.subr.bf16.mxu0 %v1893
    %2670 = vmatpush1.bf16.msra.mxu0 %v1892
    %2671 = vmatprep.subr.bf16.mxu0 %v1889
    %2672 = vmatpush1.bf16.msra.mxu0 %v1888
    %2673 = vmatprep.subr.bf16.mxu0 %v1885
    %2674 = vmatpush1.bf16.msra.mxu0 %v1884
    %2675 = vmatprep.subr.bf16.mxu0 %v1881
    %2676 = vmatpush1.bf16.msra.mxu0 %v1880
    %2677 = vmatprep.subr.bf16.mxu0 %v1941
    %2678 = vmatpush2.bf16.msra.mxu0 %v1940
    %2679 = vmatprep.subr.bf16.mxu0 %v1937
    %2680 = vmatpush2.bf16.msra.mxu0 %v1936
    %2681 = vmatprep.subr.bf16.mxu0 %v1933
    %2682 = vmatpush2.bf16.msra.mxu0 %v1932
    %2683 = vmatprep.subr.bf16.mxu0 %v1929
    %2684 = vmatpush2.bf16.msra.mxu0 %v1928
    %2685 = vmatprep.subr.bf16.mxu0 %v1925
    %2686 = vmatpush2.bf16.msra.mxu0 %v1924
    %2687 = vmatprep.subr.bf16.mxu0 %v1921
    %2688 = vmatpush2.bf16.msra.mxu0 %v1920
    %2689 = vmatprep.subr.bf16.mxu0 %v1917
    %2690 = vmatpush2.bf16.msra.mxu0 %v1916
    %2691 = vmatprep.subr.bf16.mxu0 %v1913
    %2692 = vmatpush2.bf16.msra.mxu0 %v1912
    %2693 = vmatprep.mubr.bf16.mxu0 %v184
    %2694 = vmatmul.mubr.bf16.gmra.mxu0 %v183
    %v2695 = vpop.f32.mrf.mxu0
    %v2696 = vadd.f32 %v2655, %v2695
    %v2697 = vpop.f32.mrf.mxu0
    %v2698 = vadd.f32 %v2657, %v2697
    %v2699 = vpop.f32.mrf.mxu0
    %v2700 = vpop.f32.mrf.mxu0
    %2701 = vdwg.mxu0
    %2702 = vmatprep.subr.bf16.mxu0 %v1973
    %2703 = vmatpush1.bf16.msra.mxu0 %v1972
    %2704 = vmatprep.subr.bf16.mxu0 %v1969
    %2705 = vmatpush1.bf16.msra.mxu0 %v1968
    %2706 = vmatprep.subr.bf16.mxu0 %v1965
    %2707 = vmatpush1.bf16.msra.mxu0 %v1964
    %2708 = vmatprep.subr.bf16.mxu0 %v1961
    %2709 = vmatpush1.bf16.msra.mxu0 %v1960
    %2710 = vmatprep.subr.bf16.mxu0 %v1957
    %2711 = vmatpush1.bf16.msra.mxu0 %v1956
    %2712 = vmatprep.subr.bf16.mxu0 %v1953
    %2713 = vmatpush1.bf16.msra.mxu0 %v1952
    %2714 = vmatprep.subr.bf16.mxu0 %v1949
    %2715 = vmatpush1.bf16.msra.mxu0 %v1948
    %2716 = vmatprep.subr.bf16.mxu0 %v1945
    %2717 = vmatpush1.bf16.msra.mxu0 %v1944
    %2718 = vmatprep.subr.bf16.mxu0 %v2005
    %2719 = vmatpush2.bf16.msra.mxu0 %v2004
    %2720 = vmatprep.subr.bf16.mxu0 %v2001
    %2721 = vmatpush2.bf16.msra.mxu0 %v2000
    %2722 = vmatprep.subr.bf16.mxu0 %v1997
    %2723 = vmatpush2.bf16.msra.mxu0 %v1996
    %2724 = vmatprep.subr.bf16.mxu0 %v1993
    %2725 = vmatpush2.bf16.msra.mxu0 %v1992
    %2726 = vmatprep.subr.bf16.mxu0 %v1989
    %2727 = vmatpush2.bf16.msra.mxu0 %v1988
    %2728 = vmatprep.subr.bf16.mxu0 %v1985
    %2729 = vmatpush2.bf16.msra.mxu0 %v1984
    %2730 = vmatprep.subr.bf16.mxu0 %v1981
    %2731 = vmatpush2.bf16.msra.mxu0 %v1980
    %2732 = vmatprep.subr.bf16.mxu0 %v1977
    %2733 = vmatpush2.bf16.msra.mxu0 %v1976
    %2734 = vmatprep.mubr.bf16.mxu0 %v186
    %2735 = vmatmul.mubr.bf16.gmra.mxu0 %v185
    %v2736 = vpop.f32.mrf.mxu0
    %v2737 = vadd.f32 %v2696, %v2736
    %v2738 = vpop.f32.mrf.mxu0
    %v2739 = vadd.f32 %v2698, %v2738
    %v2740 = vpop.f32.mrf.mxu0
    %v2741 = vpop.f32.mrf.mxu0
    %2742 = vdwg.mxu0
    %2743 = vmatprep.subr.bf16.mxu0 %v2037
    %2744 = vmatpush1.bf16.msra.mxu0 %v2036
    %2745 = vmatprep.subr.bf16.mxu0 %v2033
    %2746 = vmatpush1.bf16.msra.mxu0 %v2032
    %2747 = vmatprep.subr.bf16.mxu0 %v2029
    %2748 = vmatpush1.bf16.msra.mxu0 %v2028
    %2749 = vmatprep.subr.bf16.mxu0 %v2025
    %2750 = vmatpush1.bf16.msra.mxu0 %v2024
    %2751 = vmatprep.subr.bf16.mxu0 %v2021
    %2752 = vmatpush1.bf16.msra.mxu0 %v2020
    %2753 = vmatprep.subr.bf16.mxu0 %v2017
    %2754 = vmatpush1.bf16.msra.mxu0 %v2016
    %2755 = vmatprep.subr.bf16.mxu0 %v2013
    %2756 = vmatpush1.bf16.msra.mxu0 %v2012
    %2757 = vmatprep.subr.bf16.mxu0 %v2009
    %2758 = vmatpush1.bf16.msra.mxu0 %v2008
    %2759 = vmatprep.subr.bf16.mxu0 %v2069
    %2760 = vmatpush2.bf16.msra.mxu0 %v2068
    %2761 = vmatprep.subr.bf16.mxu0 %v2065
    %2762 = vmatpush2.bf16.msra.mxu0 %v2064
    %2763 = vmatprep.subr.bf16.mxu0 %v2061
    %2764 = vmatpush2.bf16.msra.mxu0 %v2060
    %2765 = vmatprep.subr.bf16.mxu0 %v2057
    %2766 = vmatpush2.bf16.msra.mxu0 %v2056
    %2767 = vmatprep.subr.bf16.mxu0 %v2053
    %2768 = vmatpush2.bf16.msra.mxu0 %v2052
    %2769 = vmatprep.subr.bf16.mxu0 %v2049
    %2770 = vmatpush2.bf16.msra.mxu0 %v2048
    %2771 = vmatprep.subr.bf16.mxu0 %v2045
    %2772 = vmatpush2.bf16.msra.mxu0 %v2044
    %2773 = vmatprep.subr.bf16.mxu0 %v2041
    %2774 = vmatpush2.bf16.msra.mxu0 %v2040
    %2775 = vmatprep.mubr.bf16.mxu0 %v188
    %2776 = vmatmul.mubr.bf16.gmra.mxu0 %v187
    %v2777 = vpop.f32.mrf.mxu0
    %v2778 = vadd.f32 %v2737, %v2777
    %v2779 = vpop.f32.mrf.mxu0
    %v2780 = vadd.f32 %v2739, %v2779
    %v2781 = vpop.f32.mrf.mxu0
    %v2782 = vpop.f32.mrf.mxu0
    %2783 = vdwg.mxu0
    %2784 = vmatprep.subr.bf16.mxu0 %v2101
    %2785 = vmatpush1.bf16.msra.mxu0 %v2100
    %2786 = vmatprep.subr.bf16.mxu0 %v2097
    %2787 = vmatpush1.bf16.msra.mxu0 %v2096
    %2788 = vmatprep.subr.bf16.mxu0 %v2093
    %2789 = vmatpush1.bf16.msra.mxu0 %v2092
    %2790 = vmatprep.subr.bf16.mxu0 %v2089
    %2791 = vmatpush1.bf16.msra.mxu0 %v2088
    %2792 = vmatprep.subr.bf16.mxu0 %v2085
    %2793 = vmatpush1.bf16.msra.mxu0 %v2084
    %2794 = vmatprep.subr.bf16.mxu0 %v2081
    %2795 = vmatpush1.bf16.msra.mxu0 %v2080
    %2796 = vmatprep.subr.bf16.mxu0 %v2077
    %2797 = vmatpush1.bf16.msra.mxu0 %v2076
    %2798 = vmatprep.subr.bf16.mxu0 %v2073
    %2799 = vmatpush1.bf16.msra.mxu0 %v2072
    %2800 = vmatprep.subr.bf16.mxu0 %v2133
    %2801 = vmatpush2.bf16.msra.mxu0 %v2132
    %2802 = vmatprep.subr.bf16.mxu0 %v2129
    %2803 = vmatpush2.bf16.msra.mxu0 %v2128
    %2804 = vmatprep.subr.bf16.mxu0 %v2125
    %2805 = vmatpush2.bf16.msra.mxu0 %v2124
    %2806 = vmatprep.subr.bf16.mxu0 %v2121
    %2807 = vmatpush2.bf16.msra.mxu0 %v2120
    %2808 = vmatprep.subr.bf16.mxu0 %v2117
    %2809 = vmatpush2.bf16.msra.mxu0 %v2116
    %2810 = vmatprep.subr.bf16.mxu0 %v2113
    %2811 = vmatpush2.bf16.msra.mxu0 %v2112
    %2812 = vmatprep.subr.bf16.mxu0 %v2109
    %2813 = vmatpush2.bf16.msra.mxu0 %v2108
    %2814 = vmatprep.subr.bf16.mxu0 %v2105
    %2815 = vmatpush2.bf16.msra.mxu0 %v2104
    %2816 = vmatprep.mubr.bf16.mxu0 %v190
    %2817 = vmatmul.mubr.bf16.gmra.mxu0 %v189
    %v2818 = vpop.f32.mrf.mxu0
    %v2819 = vadd.f32 %v2778, %v2818
    %v2820 = vpop.f32.mrf.mxu0
    %v2821 = vadd.f32 %v2780, %v2820
    %v2822 = vpop.f32.mrf.mxu0
    %v2823 = vpop.f32.mrf.mxu0
    %2824 = vdwg.mxu0
    %2825 = vmatprep.subr.bf16.mxu0 %v2165
    %2826 = vmatpush1.bf16.msra.mxu0 %v2164
    %2827 = vmatprep.subr.bf16.mxu0 %v2161
    %2828 = vmatpush1.bf16.msra.mxu0 %v2160
    %2829 = vmatprep.subr.bf16.mxu0 %v2157
    %2830 = vmatpush1.bf16.msra.mxu0 %v2156
    %2831 = vmatprep.subr.bf16.mxu0 %v2153
    %2832 = vmatpush1.bf16.msra.mxu0 %v2152
    %2833 = vmatprep.subr.bf16.mxu0 %v2149
    %2834 = vmatpush1.bf16.msra.mxu0 %v2148
    %2835 = vmatprep.subr.bf16.mxu0 %v2145
    %2836 = vmatpush1.bf16.msra.mxu0 %v2144
    %2837 = vmatprep.subr.bf16.mxu0 %v2141
    %2838 = vmatpush1.bf16.msra.mxu0 %v2140
    %2839 = vmatprep.subr.bf16.mxu0 %v2137
    %2840 = vmatpush1.bf16.msra.mxu0 %v2136
    %2841 = vmatprep.subr.bf16.mxu0 %v2197
    %2842 = vmatpush2.bf16.msra.mxu0 %v2196
    %2843 = vmatprep.subr.bf16.mxu0 %v2193
    %2844 = vmatpush2.bf16.msra.mxu0 %v2192
    %2845 = vmatprep.subr.bf16.mxu0 %v2189
    %2846 = vmatpush2.bf16.msra.mxu0 %v2188
    %2847 = vmatprep.subr.bf16.mxu0 %v2185
    %2848 = vmatpush2.bf16.msra.mxu0 %v2184
    %2849 = vmatprep.subr.bf16.mxu0 %v2181
    %2850 = vmatpush2.bf16.msra.mxu0 %v2180
    %2851 = vmatprep.subr.bf16.mxu0 %v2177
    %2852 = vmatpush2.bf16.msra.mxu0 %v2176
    %2853 = vmatprep.subr.bf16.mxu0 %v2173
    %2854 = vmatpush2.bf16.msra.mxu0 %v2172
    %2855 = vmatprep.subr.bf16.mxu0 %v2169
    %2856 = vmatpush2.bf16.msra.mxu0 %v2168
    %2857 = vmatprep.mubr.bf16.mxu0 %v192
    %2858 = vmatmul.mubr.bf16.gmra.mxu0 %v191
    %v2859 = vpop.f32.mrf.mxu0
    %v2860 = vadd.f32 %v2819, %v2859
    %v2861 = vpop.f32.mrf.mxu0
    %v2862 = vadd.f32 %v2821, %v2861
    %v2863 = vpop.f32.mrf.mxu0
    %v2864 = vpop.f32.mrf.mxu0
    %2865 = vdwg.mxu0
    %2866 = vmatprep.subr.bf16.mxu0 0
    %2867 = vmatpush1.bf16.msra.mxu0 0
    %2868 = vmatprep.subr.bf16.mxu0 0
    %2869 = vmatpush1.bf16.msra.mxu0 0
    %2870 = vmatprep.subr.bf16.mxu0 0
    %2871 = vmatpush1.bf16.msra.mxu0 0
    %2872 = vmatprep.subr.bf16.mxu0 0
    %2873 = vmatpush1.bf16.msra.mxu0 0
    %2874 = vmatprep.subr.bf16.mxu0 %v2213
    %2875 = vmatpush1.bf16.msra.mxu0 %v2212
    %2876 = vmatprep.subr.bf16.mxu0 %v2209
    %2877 = vmatpush1.bf16.msra.mxu0 %v2208
    %2878 = vmatprep.subr.bf16.mxu0 %v2205
    %2879 = vmatpush1.bf16.msra.mxu0 %v2204
    %2880 = vmatprep.subr.bf16.mxu0 %v2201
    %2881 = vmatpush1.bf16.msra.mxu0 %v2200
    %2882 = vmatprep.subr.bf16.mxu0 0
    %2883 = vmatpush2.bf16.msra.mxu0 0
    %2884 = vmatprep.subr.bf16.mxu0 0
    %2885 = vmatpush2.bf16.msra.mxu0 0
    %2886 = vmatprep.subr.bf16.mxu0 0
    %2887 = vmatpush2.bf16.msra.mxu0 0
    %2888 = vmatprep.subr.bf16.mxu0 0
    %2889 = vmatpush2.bf16.msra.mxu0 0
    %2890 = vmatprep.subr.bf16.mxu0 0
    %2891 = vmatpush2.bf16.msra.mxu0 0
    %2892 = vmatprep.subr.bf16.mxu0 0
    %2893 = vmatpush2.bf16.msra.mxu0 0
    %2894 = vmatprep.subr.bf16.mxu0 0
    %2895 = vmatpush2.bf16.msra.mxu0 0
    %2896 = vmatprep.subr.bf16.mxu0 0
    %2897 = vmatpush2.bf16.msra.mxu0 0
    %2898 = vmatprep.mubr.bf16.mxu0 0
    %2899 = vmatmul.mubr.bf16.gmra.mxu0 %v2618
    %v2900 = vpop.f32.mrf.mxu0
    %v2901 = vadd.f32 %v2860, %v2900
    %v2902 = vpop.f32.mrf.mxu0
    %v2903 = vadd.f32 %v2862, %v2902
    %v2904 = vpop.f32.mrf.mxu0
    %v2905 = vpop.f32.mrf.mxu0
    %2906 = vdwg.mxu0
    %2907 = vmatprep.subr.bf16.mxu0 %v1847
    %2908 = vmatpush1.bf16.msra.mxu0 %v1846
    %2909 = vmatprep.subr.bf16.mxu0 %v1843
    %2910 = vmatpush1.bf16.msra.mxu0 %v1842
    %2911 = vmatprep.subr.bf16.mxu0 %v1839
    %2912 = vmatpush1.bf16.msra.mxu0 %v1838
    %2913 = vmatprep.subr.bf16.mxu0 %v1835
    %2914 = vmatpush1.bf16.msra.mxu0 %v1834
    %2915 = vmatprep.subr.bf16.mxu0 %v1831
    %2916 = vmatpush1.bf16.msra.mxu0 %v1830
    %2917 = vmatprep.subr.bf16.mxu0 %v1827
    %2918 = vmatpush1.bf16.msra.mxu0 %v1826
    %2919 = vmatprep.subr.bf16.mxu0 %v1823
    %2920 = vmatpush1.bf16.msra.mxu0 %v1822
    %2921 = vmatprep.subr.bf16.mxu0 %v1819
    %2922 = vmatpush1.bf16.msra.mxu0 %v1818
    %2923 = vmatprep.subr.bf16.mxu0 %v1879
    %2924 = vmatpush2.bf16.msra.mxu0 %v1878
    %2925 = vmatprep.subr.bf16.mxu0 %v1875
    %2926 = vmatpush2.bf16.msra.mxu0 %v1874
    %2927 = vmatprep.subr.bf16.mxu0 %v1871
    %2928 = vmatpush2.bf16.msra.mxu0 %v1870
    %2929 = vmatprep.subr.bf16.mxu0 %v1867
    %2930 = vmatpush2.bf16.msra.mxu0 %v1866
    %2931 = vmatprep.subr.bf16.mxu0 %v1863
    %2932 = vmatpush2.bf16.msra.mxu0 %v1862
    %2933 = vmatprep.subr.bf16.mxu0 %v1859
    %2934 = vmatpush2.bf16.msra.mxu0 %v1858
    %2935 = vmatprep.subr.bf16.mxu0 %v1855
    %2936 = vmatpush2.bf16.msra.mxu0 %v1854
    %2937 = vmatprep.subr.bf16.mxu0 %v1851
    %2938 = vmatpush2.bf16.msra.mxu0 %v1850
    %2939 = vmatprep.mubr.bf16.mxu0 %v182
    %2940 = vmatmul.mubr.bf16.gmra.mxu0 %v181
    %v2941 = vpop.f32.mrf.mxu0
    %v2942 = vadd.f32 %v607, %v2941
    %v2943 = vpop.f32.mrf.mxu0
    %v2944 = vadd.f32 %v611, %v2943
    %v2945 = vpop.f32.mrf.mxu0
    %v2946 = vpop.f32.mrf.mxu0
    %2947 = vdwg.mxu0
    %2948 = vmatprep.subr.bf16.mxu0 %v1911
    %2949 = vmatpush1.bf16.msra.mxu0 %v1910
    %2950 = vmatprep.subr.bf16.mxu0 %v1907
    %2951 = vmatpush1.bf16.msra.mxu0 %v1906
    %2952 = vmatprep.subr.bf16.mxu0 %v1903
    %2953 = vmatpush1.bf16.msra.mxu0 %v1902
    %2954 = vmatprep.subr.bf16.mxu0 %v1899
    %2955 = vmatpush1.bf16.msra.mxu0 %v1898
    %2956 = vmatprep.subr.bf16.mxu0 %v1895
    %2957 = vmatpush1.bf16.msra.mxu0 %v1894
    %2958 = vmatprep.subr.bf16.mxu0 %v1891
    %2959 = vmatpush1.bf16.msra.mxu0 %v1890
    %2960 = vmatprep.subr.bf16.mxu0 %v1887
    %2961 = vmatpush1.bf16.msra.mxu0 %v1886
    %2962 = vmatprep.subr.bf16.mxu0 %v1883
    %2963 = vmatpush1.bf16.msra.mxu0 %v1882
    %2964 = vmatprep.subr.bf16.mxu0 %v1943
    %2965 = vmatpush2.bf16.msra.mxu0 %v1942
    %2966 = vmatprep.subr.bf16.mxu0 %v1939
    %2967 = vmatpush2.bf16.msra.mxu0 %v1938
    %2968 = vmatprep.subr.bf16.mxu0 %v1935
    %2969 = vmatpush2.bf16.msra.mxu0 %v1934
    %2970 = vmatprep.subr.bf16.mxu0 %v1931
    %2971 = vmatpush2.bf16.msra.mxu0 %v1930
    %2972 = vmatprep.subr.bf16.mxu0 %v1927
    %2973 = vmatpush2.bf16.msra.mxu0 %v1926
    %2974 = vmatprep.subr.bf16.mxu0 %v1923
    %2975 = vmatpush2.bf16.msra.mxu0 %v1922
    %2976 = vmatprep.subr.bf16.mxu0 %v1919
    %2977 = vmatpush2.bf16.msra.mxu0 %v1918
    %2978 = vmatprep.subr.bf16.mxu0 %v1915
    %2979 = vmatpush2.bf16.msra.mxu0 %v1914
    %2980 = vmatprep.mubr.bf16.mxu0 %v184
    %2981 = vmatmul.mubr.bf16.gmra.mxu0 %v183
    %v2982 = vpop.f32.mrf.mxu0
    %v2983 = vadd.f32 %v2942, %v2982
    %v2984 = vpop.f32.mrf.mxu0
    %v2985 = vadd.f32 %v2944, %v2984
    %v2986 = vpop.f32.mrf.mxu0
    %v2987 = vpop.f32.mrf.mxu0
    %2988 = vdwg.mxu0
    %2989 = vmatprep.subr.bf16.mxu0 %v1975
    %2990 = vmatpush1.bf16.msra.mxu0 %v1974
    %2991 = vmatprep.subr.bf16.mxu0 %v1971
    %2992 = vmatpush1.bf16.msra.mxu0 %v1970
    %2993 = vmatprep.subr.bf16.mxu0 %v1967
    %2994 = vmatpush1.bf16.msra.mxu0 %v1966
    %2995 = vmatprep.subr.bf16.mxu0 %v1963
    %2996 = vmatpush1.bf16.msra.mxu0 %v1962
    %2997 = vmatprep.subr.bf16.mxu0 %v1959
    %2998 = vmatpush1.bf16.msra.mxu0 %v1958
    %2999 = vmatprep.subr.bf16.mxu0 %v1955
    %3000 = vmatpush1.bf16.msra.mxu0 %v1954
    %3001 = vmatprep.subr.bf16.mxu0 %v1951
    %3002 = vmatpush1.bf16.msra.mxu0 %v1950
    %3003 = vmatprep.subr.bf16.mxu0 %v1947
    %3004 = vmatpush1.bf16.msra.mxu0 %v1946
    %3005 = vmatprep.subr.bf16.mxu0 %v2007
    %3006 = vmatpush2.bf16.msra.mxu0 %v2006
    %3007 = vmatprep.subr.bf16.mxu0 %v2003
    %3008 = vmatpush2.bf16.msra.mxu0 %v2002
    %3009 = vmatprep.subr.bf16.mxu0 %v1999
    %3010 = vmatpush2.bf16.msra.mxu0 %v1998
    %3011 = vmatprep.subr.bf16.mxu0 %v1995
    %3012 = vmatpush2.bf16.msra.mxu0 %v1994
    %3013 = vmatprep.subr.bf16.mxu0 %v1991
    %3014 = vmatpush2.bf16.msra.mxu0 %v1990
    %3015 = vmatprep.subr.bf16.mxu0 %v1987
    %3016 = vmatpush2.bf16.msra.mxu0 %v1986
    %3017 = vmatprep.subr.bf16.mxu0 %v1983
    %3018 = vmatpush2.bf16.msra.mxu0 %v1982
    %3019 = vmatprep.subr.bf16.mxu0 %v1979
    %3020 = vmatpush2.bf16.msra.mxu0 %v1978
    %3021 = vmatprep.mubr.bf16.mxu0 %v186
    %3022 = vmatmul.mubr.bf16.gmra.mxu0 %v185
    %v3023 = vpop.f32.mrf.mxu0
    %v3024 = vadd.f32 %v2983, %v3023
    %v3025 = vpop.f32.mrf.mxu0
    %v3026 = vadd.f32 %v2985, %v3025
    %v3027 = vpop.f32.mrf.mxu0
    %v3028 = vpop.f32.mrf.mxu0
    %3029 = vdwg.mxu0
    %3030 = vmatprep.subr.bf16.mxu0 %v2039
    %3031 = vmatpush1.bf16.msra.mxu0 %v2038
    %3032 = vmatprep.subr.bf16.mxu0 %v2035
    %3033 = vmatpush1.bf16.msra.mxu0 %v2034
    %3034 = vmatprep.subr.bf16.mxu0 %v2031
    %3035 = vmatpush1.bf16.msra.mxu0 %v2030
    %3036 = vmatprep.subr.bf16.mxu0 %v2027
    %3037 = vmatpush1.bf16.msra.mxu0 %v2026
    %3038 = vmatprep.subr.bf16.mxu0 %v2023
    %3039 = vmatpush1.bf16.msra.mxu0 %v2022
    %3040 = vmatprep.subr.bf16.mxu0 %v2019
    %3041 = vmatpush1.bf16.msra.mxu0 %v2018
    %3042 = vmatprep.subr.bf16.mxu0 %v2015
    %3043 = vmatpush1.bf16.msra.mxu0 %v2014
    %3044 = vmatprep.subr.bf16.mxu0 %v2011
    %3045 = vmatpush1.bf16.msra.mxu0 %v2010
    %3046 = vmatprep.subr.bf16.mxu0 %v2071
    %3047 = vmatpush2.bf16.msra.mxu0 %v2070
    %3048 = vmatprep.subr.bf16.mxu0 %v2067
    %3049 = vmatpush2.bf16.msra.mxu0 %v2066
    %3050 = vmatprep.subr.bf16.mxu0 %v2063
    %3051 = vmatpush2.bf16.msra.mxu0 %v2062
    %3052 = vmatprep.subr.bf16.mxu0 %v2059
    %3053 = vmatpush2.bf16.msra.mxu0 %v2058
    %3054 = vmatprep.subr.bf16.mxu0 %v2055
    %3055 = vmatpush2.bf16.msra.mxu0 %v2054
    %3056 = vmatprep.subr.bf16.mxu0 %v2051
    %3057 = vmatpush2.bf16.msra.mxu0 %v2050
    %3058 = vmatprep.subr.bf16.mxu0 %v2047
    %3059 = vmatpush2.bf16.msra.mxu0 %v2046
    %3060 = vmatprep.subr.bf16.mxu0 %v2043
    %3061 = vmatpush2.bf16.msra.mxu0 %v2042
    %3062 = vmatprep.mubr.bf16.mxu0 %v188
    %3063 = vmatmul.mubr.bf16.gmra.mxu0 %v187
    %v3064 = vpop.f32.mrf.mxu0
    %v3065 = vadd.f32 %v3024, %v3064
    %v3066 = vpop.f32.mrf.mxu0
    %v3067 = vadd.f32 %v3026, %v3066
    %v3068 = vpop.f32.mrf.mxu0
    %v3069 = vpop.f32.mrf.mxu0
    %3070 = vdwg.mxu0
    %3071 = vmatprep.subr.bf16.mxu0 %v2103
    %3072 = vmatpush1.bf16.msra.mxu0 %v2102
    %3073 = vmatprep.subr.bf16.mxu0 %v2099
    %3074 = vmatpush1.bf16.msra.mxu0 %v2098
    %3075 = vmatprep.subr.bf16.mxu0 %v2095
    %3076 = vmatpush1.bf16.msra.mxu0 %v2094
    %3077 = vmatprep.subr.bf16.mxu0 %v2091
    %3078 = vmatpush1.bf16.msra.mxu0 %v2090
    %3079 = vmatprep.subr.bf16.mxu0 %v2087
    %3080 = vmatpush1.bf16.msra.mxu0 %v2086
    %3081 = vmatprep.subr.bf16.mxu0 %v2083
    %3082 = vmatpush1.bf16.msra.mxu0 %v2082
    %3083 = vmatprep.subr.bf16.mxu0 %v2079
    %3084 = vmatpush1.bf16.msra.mxu0 %v2078
    %3085 = vmatprep.subr.bf16.mxu0 %v2075
    %3086 = vmatpush1.bf16.msra.mxu0 %v2074
    %3087 = vmatprep.subr.bf16.mxu0 %v2135
    %3088 = vmatpush2.bf16.msra.mxu0 %v2134
    %3089 = vmatprep.subr.bf16.mxu0 %v2131
    %3090 = vmatpush2.bf16.msra.mxu0 %v2130
    %3091 = vmatprep.subr.bf16.mxu0 %v2127
    %3092 = vmatpush2.bf16.msra.mxu0 %v2126
    %3093 = vmatprep.subr.bf16.mxu0 %v2123
    %3094 = vmatpush2.bf16.msra.mxu0 %v2122
    %3095 = vmatprep.subr.bf16.mxu0 %v2119
    %3096 = vmatpush2.bf16.msra.mxu0 %v2118
    %3097 = vmatprep.subr.bf16.mxu0 %v2115
    %3098 = vmatpush2.bf16.msra.mxu0 %v2114
    %3099 = vmatprep.subr.bf16.mxu0 %v2111
    %3100 = vmatpush2.bf16.msra.mxu0 %v2110
    %3101 = vmatprep.subr.bf16.mxu0 %v2107
    %3102 = vmatpush2.bf16.msra.mxu0 %v2106
    %3103 = vmatprep.mubr.bf16.mxu0 %v190
    %3104 = vmatmul.mubr.bf16.gmra.mxu0 %v189
    %v3105 = vpop.f32.mrf.mxu0
    %v3106 = vadd.f32 %v3065, %v3105
    %v3107 = vpop.f32.mrf.mxu0
    %v3108 = vadd.f32 %v3067, %v3107
    %v3109 = vpop.f32.mrf.mxu0
    %v3110 = vpop.f32.mrf.mxu0
    %3111 = vdwg.mxu0
    %3112 = vmatprep.subr.bf16.mxu0 %v2167
    %3113 = vmatpush1.bf16.msra.mxu0 %v2166
    %3114 = vmatprep.subr.bf16.mxu0 %v2163
    %3115 = vmatpush1.bf16.msra.mxu0 %v2162
    %3116 = vmatprep.subr.bf16.mxu0 %v2159
    %3117 = vmatpush1.bf16.msra.mxu0 %v2158
    %3118 = vmatprep.subr.bf16.mxu0 %v2155
    %3119 = vmatpush1.bf16.msra.mxu0 %v2154
    %3120 = vmatprep.subr.bf16.mxu0 %v2151
    %3121 = vmatpush1.bf16.msra.mxu0 %v2150
    %3122 = vmatprep.subr.bf16.mxu0 %v2147
    %3123 = vmatpush1.bf16.msra.mxu0 %v2146
    %3124 = vmatprep.subr.bf16.mxu0 %v2143
    %3125 = vmatpush1.bf16.msra.mxu0 %v2142
    %3126 = vmatprep.subr.bf16.mxu0 %v2139
    %3127 = vmatpush1.bf16.msra.mxu0 %v2138
    %3128 = vmatprep.subr.bf16.mxu0 %v2199
    %3129 = vmatpush2.bf16.msra.mxu0 %v2198
    %3130 = vmatprep.subr.bf16.mxu0 %v2195
    %3131 = vmatpush2.bf16.msra.mxu0 %v2194
    %3132 = vmatprep.subr.bf16.mxu0 %v2191
    %3133 = vmatpush2.bf16.msra.mxu0 %v2190
    %3134 = vmatprep.subr.bf16.mxu0 %v2187
    %3135 = vmatpush2.bf16.msra.mxu0 %v2186
    %3136 = vmatprep.subr.bf16.mxu0 %v2183
    %3137 = vmatpush2.bf16.msra.mxu0 %v2182
    %3138 = vmatprep.subr.bf16.mxu0 %v2179
    %3139 = vmatpush2.bf16.msra.mxu0 %v2178
    %3140 = vmatprep.subr.bf16.mxu0 %v2175
    %3141 = vmatpush2.bf16.msra.mxu0 %v2174
    %3142 = vmatprep.subr.bf16.mxu0 %v2171
    %3143 = vmatpush2.bf16.msra.mxu0 %v2170
    %3144 = vmatprep.mubr.bf16.mxu0 %v192
    %3145 = vmatmul.mubr.bf16.gmra.mxu0 %v191
    %v3146 = vpop.f32.mrf.mxu0
    %v3147 = vadd.f32 %v3106, %v3146
    %v3148 = vpop.f32.mrf.mxu0
    %v3149 = vadd.f32 %v3108, %v3148
    %v3150 = vpop.f32.mrf.mxu0
    %v3151 = vpop.f32.mrf.mxu0
    %3152 = vdwg.mxu0
    %3153 = vmatprep.subr.bf16.mxu0 0
    %3154 = vmatpush1.bf16.msra.mxu0 0
    %3155 = vmatprep.subr.bf16.mxu0 0
    %3156 = vmatpush1.bf16.msra.mxu0 0
    %3157 = vmatprep.subr.bf16.mxu0 0
    %3158 = vmatpush1.bf16.msra.mxu0 0
    %3159 = vmatprep.subr.bf16.mxu0 0
    %3160 = vmatpush1.bf16.msra.mxu0 0
    %3161 = vmatprep.subr.bf16.mxu0 %v2215
    %3162 = vmatpush1.bf16.msra.mxu0 %v2214
    %3163 = vmatprep.subr.bf16.mxu0 %v2211
    %3164 = vmatpush1.bf16.msra.mxu0 %v2210
    %3165 = vmatprep.subr.bf16.mxu0 %v2207
    %3166 = vmatpush1.bf16.msra.mxu0 %v2206
    %3167 = vmatprep.subr.bf16.mxu0 %v2203
    %3168 = vmatpush1.bf16.msra.mxu0 %v2202
    %3169 = vmatprep.subr.bf16.mxu0 0
    %3170 = vmatpush2.bf16.msra.mxu0 0
    %3171 = vmatprep.subr.bf16.mxu0 0
    %3172 = vmatpush2.bf16.msra.mxu0 0
    %3173 = vmatprep.subr.bf16.mxu0 0
    %3174 = vmatpush2.bf16.msra.mxu0 0
    %3175 = vmatprep.subr.bf16.mxu0 0
    %3176 = vmatpush2.bf16.msra.mxu0 0
    %3177 = vmatprep.subr.bf16.mxu0 0
    %3178 = vmatpush2.bf16.msra.mxu0 0
    %3179 = vmatprep.subr.bf16.mxu0 0
    %3180 = vmatpush2.bf16.msra.mxu0 0
    %3181 = vmatprep.subr.bf16.mxu0 0
    %3182 = vmatpush2.bf16.msra.mxu0 0
    %3183 = vmatprep.subr.bf16.mxu0 0
    %3184 = vmatpush2.bf16.msra.mxu0 0
    %3185 = vmatprep.mubr.bf16.mxu0 0
    %3186 = vmatmul.mubr.bf16.gmra.mxu0 %v2618
    %v3187 = vpop.f32.mrf.mxu0
    %v3188 = vadd.f32 %v3147, %v3187
    %v3189 = vpop.f32.mrf.mxu0
    %v3190 = vadd.f32 %v3149, %v3189
    %v3191 = vpop.f32.mrf.mxu0
    %v3192 = vpop.f32.mrf.mxu0
    %3193 = vdwg.mxu0
    %v3194 = vmax.f32 %v2901, 0.0
    %v3195 = vmax.f32 %v2903, 0.0
    %v3196 = vmax.f32 %v3188, 0.0
    %v3197 = vmax.f32 %v3190, 0.0
    %v3198 = vpack.c.bf16 %v3194, %v3194
    %v3199 = vpack.c.bf16 %v3195, %v3195
    %v3200 = vpack.c.bf16 %v3196, %v3196
    %v3201 = vpack.c.bf16 %v3197, %v3197
    %v3202 = vld [vmem:[#allocation9] sm:$0xff]
    %v3203 = vld [vmem:[#allocation9 + $0x8] sm:$0xff]
    %v3204 = vld [vmem:[#allocation9 + $0x10] sm:$0xff]
    %v3205 = vld [vmem:[#allocation9 + $0x18] sm:$0xff]
    %v3206 = vld [vmem:[#allocation9 + $0x20] sm:$0xff]
    %v3207 = vld [vmem:[#allocation9 + $0x28] sm:$0xff]
    %v3208 = vld [vmem:[#allocation9 + $0x30] sm:$0xff]
    %v3209 = vld [vmem:[#allocation9 + $0x38] sm:$0xff]
    %v3210 = vld [vmem:[#allocation9 + $0x40] sm:$0xff]
    %v3211 = vld [vmem:[#allocation9 + $0x48] sm:$0xff]
    %v3212 = vld [vmem:[#allocation9 + $0x50] sm:$0xff]
    %v3213 = vld [vmem:[#allocation9 + $0x58] sm:$0xff]
    %v3214 = vld [vmem:[#allocation9 + $0x60] sm:$0xff]
    %v3215 = vld [vmem:[#allocation9 + $0x68] sm:$0xff]
    %v3216 = vld [vmem:[#allocation9 + $0x70] sm:$0xff]
    %v3217 = vld [vmem:[#allocation9 + $0x78] sm:$0xff]
    %v3218 = vld [vmem:[#allocation9 + $0x80] sm:$0xff]
    %v3219 = vld [vmem:[#allocation9 + $0x88] sm:$0xff]
    %v3220 = vld [vmem:[#allocation9 + $0x90] sm:$0xff]
    %v3221 = vld [vmem:[#allocation9 + $0x98] sm:$0xff]
    %v3222 = vld [vmem:[#allocation9 + $0xa0] sm:$0xff]
    %v3223 = vld [vmem:[#allocation9 + $0xa8] sm:$0xff]
    %v3224 = vld [vmem:[#allocation9 + $0xb0] sm:$0xff]
    %v3225 = vld [vmem:[#allocation9 + $0xb8] sm:$0xff]
    %v3226 = vld [vmem:[#allocation9 + $0xc0] sm:$0xff]
    %v3227 = vld [vmem:[#allocation9 + $0xc8] sm:$0xff]
    %v3228 = vld [vmem:[#allocation9 + $0xd0] sm:$0xff]
    %v3229 = vld [vmem:[#allocation9 + $0xd8] sm:$0xff]
    %v3230 = vld [vmem:[#allocation9 + $0xe0] sm:$0xff]
    %v3231 = vld [vmem:[#allocation9 + $0xe8] sm:$0xff]
    %v3232 = vld [vmem:[#allocation9 + $0xf0] sm:$0xff]
    %v3233 = vld [vmem:[#allocation9 + $0xf8] sm:$0xff]
    %v3234 = vld [vmem:[#allocation9 + $0x100] sm:$0xff]
    %v3235 = vld [vmem:[#allocation9 + $0x108] sm:$0xff]
    %v3236 = vld [vmem:[#allocation9 + $0x110] sm:$0xff]
    %v3237 = vld [vmem:[#allocation9 + $0x118] sm:$0xff]
    %v3238 = vld [vmem:[#allocation9 + $0x120] sm:$0xff]
    %v3239 = vld [vmem:[#allocation9 + $0x128] sm:$0xff]
    %v3240 = vld [vmem:[#allocation9 + $0x130] sm:$0xff]
    %v3241 = vld [vmem:[#allocation9 + $0x138] sm:$0xff]
    %v3242 = vld [vmem:[#allocation9 + $0x140] sm:$0xff]
    %v3243 = vld [vmem:[#allocation9 + $0x148] sm:$0xff]
    %v3244 = vld [vmem:[#allocation9 + $0x150] sm:$0xff]
    %v3245 = vld [vmem:[#allocation9 + $0x158] sm:$0xff]
    %v3246 = vld [vmem:[#allocation9 + $0x160] sm:$0xff]
    %v3247 = vld [vmem:[#allocation9 + $0x168] sm:$0xff]
    %v3248 = vld [vmem:[#allocation9 + $0x170] sm:$0xff]
    %v3249 = vld [vmem:[#allocation9 + $0x178] sm:$0xff]
    %v3250 = vld [vmem:[#allocation9 + $0x180] sm:$0xff]
    %v3251 = vld [vmem:[#allocation9 + $0x188] sm:$0xff]
    %v3252 = vld [vmem:[#allocation9 + $0x190] sm:$0xff]
    %v3253 = vld [vmem:[#allocation9 + $0x198] sm:$0xff]
    %v3254 = vld [vmem:[#allocation9 + $0x1a0] sm:$0xff]
    %v3255 = vld [vmem:[#allocation9 + $0x1a8] sm:$0xff]
    %v3256 = vld [vmem:[#allocation9 + $0x1b0] sm:$0xff]
    %v3257 = vld [vmem:[#allocation9 + $0x1b8] sm:$0xff]
    %v3258 = vld [vmem:[#allocation9 + $0x1c0] sm:$0xff]
    %v3259 = vld [vmem:[#allocation9 + $0x1c8] sm:$0xff]
    %v3260 = vld [vmem:[#allocation9 + $0x1d0] sm:$0xff]
    %v3261 = vld [vmem:[#allocation9 + $0x1d8] sm:$0xff]
    %v3262 = vld [vmem:[#allocation9 + $0x1e0] sm:$0xff]
    %v3263 = vld [vmem:[#allocation9 + $0x1e8] sm:$0xff]
    %v3264 = vld [vmem:[#allocation9 + $0x1f0] sm:$0xff]
    %v3265 = vld [vmem:[#allocation9 + $0x1f8] sm:$0xff]
    %v3266 = vld [vmem:[#allocation11] sm:$0x3]
    %v3268 = vlaneseq
    %v3269 = vshrl.u32 %v3268, 7
    %v3270 = vsub.s32 0, %v3269
    %v3271 = vrot.slane %v3266, %v3270
    %v3272 = vlaneseq
    %v3273 = vshrl.u32 %v3272, 7
    %v3274 = vsub.s32 1, %v3273
    %v3275 = vrot.slane %v3266, %v3274
    %v3342 = vunpack.c.l.b16 %v3202
    %v3343 = vunpack.c.h.b16 %v3202
    %v3344 = vunpack.c.l.b16 %v3203
    %v3345 = vunpack.c.h.b16 %v3203
    %v3346 = vunpack.c.l.b16 %v3204
    %v3347 = vunpack.c.h.b16 %v3204
    %v3348 = vunpack.c.l.b16 %v3205
    %v3349 = vunpack.c.h.b16 %v3205
    %v3350 = vunpack.c.l.b16 %v3206
    %v3351 = vunpack.c.h.b16 %v3206
    %v3352 = vunpack.c.l.b16 %v3207
    %v3353 = vunpack.c.h.b16 %v3207
    %v3354 = vunpack.c.l.b16 %v3208
    %v3355 = vunpack.c.h.b16 %v3208
    %v3356 = vunpack.c.l.b16 %v3209
    %v3357 = vunpack.c.h.b16 %v3209
    %v3358 = vunpack.c.l.b16 %v3210
    %v3359 = vunpack.c.h.b16 %v3210
    %v3360 = vunpack.c.l.b16 %v3211
    %v3361 = vunpack.c.h.b16 %v3211
    %v3362 = vunpack.c.l.b16 %v3212
    %v3363 = vunpack.c.h.b16 %v3212
    %v3364 = vunpack.c.l.b16 %v3213
    %v3365 = vunpack.c.h.b16 %v3213
    %v3366 = vunpack.c.l.b16 %v3214
    %v3367 = vunpack.c.h.b16 %v3214
    %v3368 = vunpack.c.l.b16 %v3215
    %v3369 = vunpack.c.h.b16 %v3215
    %v3370 = vunpack.c.l.b16 %v3216
    %v3371 = vunpack.c.h.b16 %v3216
    %v3372 = vunpack.c.l.b16 %v3217
    %v3373 = vunpack.c.h.b16 %v3217
    %v3374 = vunpack.c.l.b16 %v3218
    %v3375 = vunpack.c.h.b16 %v3218
    %v3376 = vunpack.c.l.b16 %v3219
    %v3377 = vunpack.c.h.b16 %v3219
    %v3378 = vunpack.c.l.b16 %v3220
    %v3379 = vunpack.c.h.b16 %v3220
    %v3380 = vunpack.c.l.b16 %v3221
    %v3381 = vunpack.c.h.b16 %v3221
    %v3382 = vunpack.c.l.b16 %v3222
    %v3383 = vunpack.c.h.b16 %v3222
    %v3384 = vunpack.c.l.b16 %v3223
    %v3385 = vunpack.c.h.b16 %v3223
    %v3386 = vunpack.c.l.b16 %v3224
    %v3387 = vunpack.c.h.b16 %v3224
    %v3388 = vunpack.c.l.b16 %v3225
    %v3389 = vunpack.c.h.b16 %v3225
    %v3390 = vunpack.c.l.b16 %v3226
    %v3391 = vunpack.c.h.b16 %v3226
    %v3392 = vunpack.c.l.b16 %v3227
    %v3393 = vunpack.c.h.b16 %v3227
    %v3394 = vunpack.c.l.b16 %v3228
    %v3395 = vunpack.c.h.b16 %v3228
    %v3396 = vunpack.c.l.b16 %v3229
    %v3397 = vunpack.c.h.b16 %v3229
    %v3398 = vunpack.c.l.b16 %v3230
    %v3399 = vunpack.c.h.b16 %v3230
    %v3400 = vunpack.c.l.b16 %v3231
    %v3401 = vunpack.c.h.b16 %v3231
    %v3402 = vunpack.c.l.b16 %v3232
    %v3403 = vunpack.c.h.b16 %v3232
    %v3404 = vunpack.c.l.b16 %v3233
    %v3405 = vunpack.c.h.b16 %v3233
    %v3406 = vunpack.c.l.b16 %v3234
    %v3407 = vunpack.c.h.b16 %v3234
    %v3408 = vunpack.c.l.b16 %v3235
    %v3409 = vunpack.c.h.b16 %v3235
    %v3410 = vunpack.c.l.b16 %v3236
    %v3411 = vunpack.c.h.b16 %v3236
    %v3412 = vunpack.c.l.b16 %v3237
    %v3413 = vunpack.c.h.b16 %v3237
    %v3414 = vunpack.c.l.b16 %v3238
    %v3415 = vunpack.c.h.b16 %v3238
    %v3416 = vunpack.c.l.b16 %v3239
    %v3417 = vunpack.c.h.b16 %v3239
    %v3418 = vunpack.c.l.b16 %v3240
    %v3419 = vunpack.c.h.b16 %v3240
    %v3420 = vunpack.c.l.b16 %v3241
    %v3421 = vunpack.c.h.b16 %v3241
    %v3422 = vunpack.c.l.b16 %v3242
    %v3423 = vunpack.c.h.b16 %v3242
    %v3424 = vunpack.c.l.b16 %v3243
    %v3425 = vunpack.c.h.b16 %v3243
    %v3426 = vunpack.c.l.b16 %v3244
    %v3427 = vunpack.c.h.b16 %v3244
    %v3428 = vunpack.c.l.b16 %v3245
    %v3429 = vunpack.c.h.b16 %v3245
    %v3430 = vunpack.c.l.b16 %v3246
    %v3431 = vunpack.c.h.b16 %v3246
    %v3432 = vunpack.c.l.b16 %v3247
    %v3433 = vunpack.c.h.b16 %v3247
    %v3434 = vunpack.c.l.b16 %v3248
    %v3435 = vunpack.c.h.b16 %v3248
    %v3436 = vunpack.c.l.b16 %v3249
    %v3437 = vunpack.c.h.b16 %v3249
    %v3438 = vunpack.c.l.b16 %v3250
    %v3439 = vunpack.c.h.b16 %v3250
    %v3440 = vunpack.c.l.b16 %v3251
    %v3441 = vunpack.c.h.b16 %v3251
    %v3442 = vunpack.c.l.b16 %v3252
    %v3443 = vunpack.c.h.b16 %v3252
    %v3444 = vunpack.c.l.b16 %v3253
    %v3445 = vunpack.c.h.b16 %v3253
    %v3446 = vunpack.c.l.b16 %v3254
    %v3447 = vunpack.c.h.b16 %v3254
    %v3448 = vunpack.c.l.b16 %v3255
    %v3449 = vunpack.c.h.b16 %v3255
    %v3450 = vunpack.c.l.b16 %v3256
    %v3451 = vunpack.c.h.b16 %v3256
    %v3452 = vunpack.c.l.b16 %v3257
    %v3453 = vunpack.c.h.b16 %v3257
    %v3454 = vunpack.c.l.b16 %v3258
    %v3455 = vunpack.c.h.b16 %v3258
    %v3456 = vunpack.c.l.b16 %v3259
    %v3457 = vunpack.c.h.b16 %v3259
    %v3458 = vunpack.c.l.b16 %v3260
    %v3459 = vunpack.c.h.b16 %v3260
    %v3460 = vunpack.c.l.b16 %v3261
    %v3461 = vunpack.c.h.b16 %v3261
    %v3462 = vunpack.c.l.b16 %v3262
    %v3463 = vunpack.c.h.b16 %v3262
    %v3464 = vunpack.c.l.b16 %v3263
    %v3465 = vunpack.c.h.b16 %v3263
    %v3466 = vunpack.c.l.b16 %v3264
    %v3467 = vunpack.c.h.b16 %v3264
    %v3468 = vunpack.c.l.b16 %v3265
    %v3469 = vunpack.c.h.b16 %v3265
    %v3470 = vpack.c.b16 %v3344, %v3342
    %v3471 = vpack.c.b16 %v3345, %v3343
    %v3472 = vpack.c.b16 %v3348, %v3346
    %v3473 = vpack.c.b16 %v3349, %v3347
    %v3474 = vpack.c.b16 %v3352, %v3350
    %v3475 = vpack.c.b16 %v3353, %v3351
    %v3476 = vpack.c.b16 %v3356, %v3354
    %v3477 = vpack.c.b16 %v3357, %v3355
    %v3478 = vpack.c.b16 %v3360, %v3358
    %v3479 = vpack.c.b16 %v3361, %v3359
    %v3480 = vpack.c.b16 %v3364, %v3362
    %v3481 = vpack.c.b16 %v3365, %v3363
    %v3482 = vpack.c.b16 %v3368, %v3366
    %v3483 = vpack.c.b16 %v3369, %v3367
    %v3484 = vpack.c.b16 %v3372, %v3370
    %v3485 = vpack.c.b16 %v3373, %v3371
    %v3486 = vpack.c.b16 %v3376, %v3374
    %v3487 = vpack.c.b16 %v3377, %v3375
    %v3488 = vpack.c.b16 %v3380, %v3378
    %v3489 = vpack.c.b16 %v3381, %v3379
    %v3490 = vpack.c.b16 %v3384, %v3382
    %v3491 = vpack.c.b16 %v3385, %v3383
    %v3492 = vpack.c.b16 %v3388, %v3386
    %v3493 = vpack.c.b16 %v3389, %v3387
    %v3494 = vpack.c.b16 %v3392, %v3390
    %v3495 = vpack.c.b16 %v3393, %v3391
    %v3496 = vpack.c.b16 %v3396, %v3394
    %v3497 = vpack.c.b16 %v3397, %v3395
    %v3498 = vpack.c.b16 %v3400, %v3398
    %v3499 = vpack.c.b16 %v3401, %v3399
    %v3500 = vpack.c.b16 %v3404, %v3402
    %v3501 = vpack.c.b16 %v3405, %v3403
    %v3502 = vpack.c.b16 %v3408, %v3406
    %v3503 = vpack.c.b16 %v3409, %v3407
    %v3504 = vpack.c.b16 %v3412, %v3410
    %v3505 = vpack.c.b16 %v3413, %v3411
    %v3506 = vpack.c.b16 %v3416, %v3414
    %v3507 = vpack.c.b16 %v3417, %v3415
    %v3508 = vpack.c.b16 %v3420, %v3418
    %v3509 = vpack.c.b16 %v3421, %v3419
    %v3510 = vpack.c.b16 %v3424, %v3422
    %v3511 = vpack.c.b16 %v3425, %v3423
    %v3512 = vpack.c.b16 %v3428, %v3426
    %v3513 = vpack.c.b16 %v3429, %v3427
    %v3514 = vpack.c.b16 %v3432, %v3430
    %v3515 = vpack.c.b16 %v3433, %v3431
    %v3516 = vpack.c.b16 %v3436, %v3434
    %v3517 = vpack.c.b16 %v3437, %v3435
    %v3518 = vpack.c.b16 %v3440, %v3438
    %v3519 = vpack.c.b16 %v3441, %v3439
    %v3520 = vpack.c.b16 %v3444, %v3442
    %v3521 = vpack.c.b16 %v3445, %v3443
    %v3522 = vpack.c.b16 %v3448, %v3446
    %v3523 = vpack.c.b16 %v3449, %v3447
    %v3524 = vpack.c.b16 %v3452, %v3450
    %v3525 = vpack.c.b16 %v3453, %v3451
    %v3526 = vpack.c.b16 %v3456, %v3454
    %v3527 = vpack.c.b16 %v3457, %v3455
    %v3528 = vpack.c.b16 %v3460, %v3458
    %v3529 = vpack.c.b16 %v3461, %v3459
    %v3530 = vpack.c.b16 %v3464, %v3462
    %v3531 = vpack.c.b16 %v3465, %v3463
    %v3532 = vpack.c.b16 %v3468, %v3466
    %v3533 = vpack.c.b16 %v3469, %v3467
    %3598 = vmatprep.subr.bf16.mxu0 %v3485
    %3599 = vmatpush1.bf16.msra.mxu0 %v3484
    %3600 = vmatprep.subr.bf16.mxu0 %v3483
    %3601 = vmatpush1.bf16.msra.mxu0 %v3482
    %3602 = vmatprep.subr.bf16.mxu0 %v3481
    %3603 = vmatpush1.bf16.msra.mxu0 %v3480
    %3604 = vmatprep.subr.bf16.mxu0 %v3479
    %3605 = vmatpush1.bf16.msra.mxu0 %v3478
    %3606 = vmatprep.subr.bf16.mxu0 %v3477
    %3607 = vmatpush1.bf16.msra.mxu0 %v3476
    %3608 = vmatprep.subr.bf16.mxu0 %v3475
    %3609 = vmatpush1.bf16.msra.mxu0 %v3474
    %3610 = vmatprep.subr.bf16.mxu0 %v3473
    %3611 = vmatpush1.bf16.msra.mxu0 %v3472
    %3612 = vmatprep.subr.bf16.mxu0 %v3471
    %3613 = vmatpush1.bf16.msra.mxu0 %v3470
    %3614 = vmatprep.subr.bf16.mxu0 %v3501
    %3615 = vmatpush2.bf16.msra.mxu0 %v3500
    %3616 = vmatprep.subr.bf16.mxu0 %v3499
    %3617 = vmatpush2.bf16.msra.mxu0 %v3498
    %3618 = vmatprep.subr.bf16.mxu0 %v3497
    %3619 = vmatpush2.bf16.msra.mxu0 %v3496
    %3620 = vmatprep.subr.bf16.mxu0 %v3495
    %3621 = vmatpush2.bf16.msra.mxu0 %v3494
    %3622 = vmatprep.subr.bf16.mxu0 %v3493
    %3623 = vmatpush2.bf16.msra.mxu0 %v3492
    %3624 = vmatprep.subr.bf16.mxu0 %v3491
    %3625 = vmatpush2.bf16.msra.mxu0 %v3490
    %3626 = vmatprep.subr.bf16.mxu0 %v3489
    %3627 = vmatpush2.bf16.msra.mxu0 %v3488
    %3628 = vmatprep.subr.bf16.mxu0 %v3487
    %3629 = vmatpush2.bf16.msra.mxu0 %v3486
    %3630 = vmatprep.mubr.bf16.mxu0 %v3199
    %3631 = vmatmul.mubr.bf16.gmra.mxu0 %v3198
    %v3632 = vpop.f32.mrf.mxu0
    %v3633 = vadd.f32 %v3271, %v3632
    %v3634 = vpop.f32.mrf.mxu0
    %v3635 = vadd.f32 %v3275, %v3634
    %v3636 = vpop.f32.mrf.mxu0
    %v3637 = vpop.f32.mrf.mxu0
    %3638 = vdwg.mxu0
    %3639 = vmatprep.subr.bf16.mxu0 %v3517
    %3640 = vmatpush1.bf16.msra.mxu0 %v3516
    %3641 = vmatprep.subr.bf16.mxu0 %v3515
    %3642 = vmatpush1.bf16.msra.mxu0 %v3514
    %3643 = vmatprep.subr.bf16.mxu0 %v3513
    %3644 = vmatpush1.bf16.msra.mxu0 %v3512
    %3645 = vmatprep.subr.bf16.mxu0 %v3511
    %3646 = vmatpush1.bf16.msra.mxu0 %v3510
    %3647 = vmatprep.subr.bf16.mxu0 %v3509
    %3648 = vmatpush1.bf16.msra.mxu0 %v3508
    %3649 = vmatprep.subr.bf16.mxu0 %v3507
    %3650 = vmatpush1.bf16.msra.mxu0 %v3506
    %3651 = vmatprep.subr.bf16.mxu0 %v3505
    %3652 = vmatpush1.bf16.msra.mxu0 %v3504
    %3653 = vmatprep.subr.bf16.mxu0 %v3503
    %3654 = vmatpush1.bf16.msra.mxu0 %v3502
    %3655 = vmatprep.subr.bf16.mxu0 %v3533
    %3656 = vmatpush2.bf16.msra.mxu0 %v3532
    %3657 = vmatprep.subr.bf16.mxu0 %v3531
    %3658 = vmatpush2.bf16.msra.mxu0 %v3530
    %3659 = vmatprep.subr.bf16.mxu0 %v3529
    %3660 = vmatpush2.bf16.msra.mxu0 %v3528
    %3661 = vmatprep.subr.bf16.mxu0 %v3527
    %3662 = vmatpush2.bf16.msra.mxu0 %v3526
    %3663 = vmatprep.subr.bf16.mxu0 %v3525
    %3664 = vmatpush2.bf16.msra.mxu0 %v3524
    %3665 = vmatprep.subr.bf16.mxu0 %v3523
    %3666 = vmatpush2.bf16.msra.mxu0 %v3522
    %3667 = vmatprep.subr.bf16.mxu0 %v3521
    %3668 = vmatpush2.bf16.msra.mxu0 %v3520
    %3669 = vmatprep.subr.bf16.mxu0 %v3519
    %3670 = vmatpush2.bf16.msra.mxu0 %v3518
    %3671 = vmatprep.mubr.bf16.mxu0 %v3201
    %3672 = vmatmul.mubr.bf16.gmra.mxu0 %v3200
    %v3673 = vpop.f32.mrf.mxu0
    %v3674 = vadd.f32 %v3633, %v3673
    %v3675 = vpop.f32.mrf.mxu0
    %v3676 = vadd.f32 %v3635, %v3675
    %v3677 = vpop.f32.mrf.mxu0
    %v3678 = vpop.f32.mrf.mxu0
    %3679 = vdwg.mxu0
    %v3680 = vmul.f32 %v3676, 1.442695
    %v3681 = vpow.pop %v3680
    %v3682 = vld [vmem:[#allocation12] sm:$0x3]
    %v3683 = vmul.f32 %v3681, %v3682
    %v3684 = vadd.f32 %v3674, %v3683
    %3685 = vst [vmem:[#allocation14] sm:$0x3] %v3684
    %3686 = vst [vmem:[#allocation14 + $0x2] sm:$0x3] %v3674
    %3687 = vst [vmem:[#allocation14 + $0x4] sm:$0x3] %v3681
    %v3688 = vmul.f32 %v3681, %v3681
    %v3689 = vmul.f32 %v3674, %v3674
    %v3690 = vadd.f32 %v3688, %v3689
    %v3691 = vmul.f32 %v3676, 2.0
    %v3692 = vsub.f32 %v3690, %v3691
    %v3693 = vsub.f32 %v3692, 1.0
    %vm3694 = vcmask 1041408
    %v3695 = vsel %vm3694, %v3693, 0.0
    %3696 = vadd.xlane.f32.xlu0 %v3695
    %v3697 = vpop.xlane.xlu0 %3696
    %v3698 = vrot.slane %v3697, 4
    %v3699 = vadd.f32 %v3697, %v3698
    %v3700 = vrot.slane %v3699, 2
    %v3701 = vadd.f32 %v3699, %v3700
    %v3702 = vrot.slane %v3701, 1
    %v3703 = vadd.f32 %v3701, %v3702
    %s3704 = vtos %v3703
    %s3705 = smul.f32 %s3704, 0.5
    %s3706 = scalar_lea.smem [#allocation15], 0
    %3707 = sst [smem:[%s3706]] %s3705
    // Predicated region
    $region50: #{tpu_custom_call.1} parent=1 // pred_check
      _
    $region51: #{tpu_custom_call.1} parent=1 // pred_check_branch
      %3709 = sbr.rel (0) target = $region53
    $region52: #{tpu_custom_call.1} parent=1 // pred_region
      %s3711 = ssub.s32 96, 96
      %3712 = vsyncadd [#allocation4], %s3711
      %s3714 = sshll.u32 [#allocation14], 4
      %s3715 = int_to_ptr.vmem [resolvable:$true] %s3714
      %3717 = dma.vmem_to_hbm [thread:$0]  %s3715, 96, %s6, [#allocation4]
    $region53: #{tpu_custom_call.1} parent=1 // pred_fallthru
      _
    // Predicated region
    $region54: #{tpu_custom_call.1} parent=1 // pred_check
      _
    $region55: #{tpu_custom_call.1} parent=1 // pred_check_branch
      %3719 = sbr.rel (0) target = $region57
    $region56: #{tpu_custom_call.1} parent=1 // pred_region
      %s3721 = ssub.s32 16, 16
      %3722 = vsyncadd [#allocation5], %s3721
      %3725 = dma.smem_to_hbm [#allocation15], 16, %s7, [#allocation5]
    $region57: #{tpu_custom_call.1} parent=1 // pred_fallthru
      _
    // Predicated region
    $region58: #{tpu_custom_call.1} parent=1 // pred_check
      _
    $region59: #{tpu_custom_call.1} parent=1 // pred_check_branch
      %3727 = sbr.rel (0) target = $region61
    $region60: #{tpu_custom_call.1} parent=1 // pred_region
      %3728 = dma.done [#allocation4], 96
    $region61: #{tpu_custom_call.1} parent=1 // pred_fallthru
      _
    // Predicated region
    $region62: #{tpu_custom_call.1} parent=1 // pred_check
      _
    $region63: #{tpu_custom_call.1} parent=1 // pred_check_branch
      %3730 = sbr.rel (0) target = $region65
    $region64: #{tpu_custom_call.1} parent=1 // pred_region
      %3731 = dma.done [#allocation5], 16
    $region65: #{tpu_custom_call.1} parent=1 // pred_fallthru
      _
    %3732 = sfence
    %3733 = vsyncpa [#allocation3], 1
    %3734 = vsyncpa [#allocation7], 1
    %3735 = vsyncpa [#allocation10], 1
    %3736 = vsyncpa [#allocation13], 1
    %3737 = vsyncpa [#allocation4], 1
    %3738 = vsyncpa [#allocation5], 1

</llo_original>
